<compile_context>
chip_gen: v7x
topology: tpu7x:2x2x1
jax: 0.10.0
libtpu: 0.0.40
codegen_flags: <defaults>
</compile_context>

<pallas_src>
import jax
import jax.numpy as jnp
from jax.experimental import pallas as pl
from jax.experimental.pallas import tpu as pltpu

_VMEM_LIMIT = 32 * 1024 * 1024   # raise v5e's 16 MiB default; safe on v6e/v7x


# ------------------------------ small helpers -------------------------------

def _round_up(x, m):
    return ((x + m - 1) // m) * m


def _pad_rows(x, rows):
    if rows > x.shape[0]:
        x = jnp.pad(x, ((0, rows - x.shape[0]),) + ((0, 0),) * (x.ndim - 1))
    return x


def _choose_tile(m, tile_max, mult):
    """Largest tile <= tile_max (multiple of `mult`); keep >=2 grid steps
    (v7x megacore) whenever there is enough work to split."""
    tile = min(tile_max, _round_up(m, mult))
    if _round_up(m, tile) // tile < 2 and m >= 2 * mult:
        tile = _round_up((m + 1) // 2, mult)
    return tile


def _full_spec(a):
    nd = a.ndim
    return pl.BlockSpec(a.shape, lambda i, _nd=nd: (0,) * _nd)


# ----------------------------- Pallas kernels ------------------------------

def _matmul_bias_relu_kernel(x_ref, w_ref, b_ref, o_ref):
    # (tm, K) @ (K, N) on the MXU (bf16 operands, f32 accumulate) + bias + ReLU.
    y = jnp.dot(x_ref[...], w_ref[...], preferred_element_type=jnp.float32)
    o_ref[...] = jnp.maximum(y + b_ref[...], 0.0).astype(o_ref.dtype)


def _tail_kernel(x_ref, w3_ref, b3_ref, w1_ref, b1_ref, w2_ref, b2_ref,
                 wo_ref, bo_ref, o_ref):
    # Fused pool2 + conv3 + flatten + fc1 + fc2 + fc3 + softmax, all in VMEM.
    x = x_ref[...]                                        # (tb, 5, 5, 128) bf16
    # pool2: 2x2, stride 1 -> (tb, 4, 4, 128)
    p = jnp.maximum(
        jnp.maximum(x[:, 0:4, 0:4, :], x[:, 0:4, 1:5, :]),
        jnp.maximum(x[:, 1:5, 0:4, :], x[:, 1:5, 1:5, :]))
    # conv3 (2x2, stride 2 == kernel -> static patch gather), fused with the
    # NCHW-style flatten + fc1 via pre-permuted per-position fc1 weight slices.
    acc1 = None
    for pq in range(4):
        r, c = 2 * (pq // 2), 2 * (pq % 2)
        cols = jnp.concatenate(
            [p[:, r, c, :], p[:, r, c + 1, :],
             p[:, r + 1, c, :], p[:, r + 1, c + 1, :]], axis=-1)   # (tb, 512)
        y3 = jnp.dot(cols, w3_ref[...], preferred_element_type=jnp.float32)
        y3 = jnp.maximum(y3 + b3_ref[...], 0.0)                    # (tb, 128)
        t = jnp.dot(y3.astype(w1_ref.dtype), w1_ref[pq],
                    preferred_element_type=jnp.float32)            # (tb, 768)
        acc1 = t if acc1 is None else acc1 + t
    h1 = jnp.maximum(acc1 + b1_ref[...], 0.0)                      # (tb, 768)
    h2 = jnp.dot(h1.astype(w2_ref.dtype), w2_ref[...],
                 preferred_element_type=jnp.float32)
    h2 = jnp.maximum(h2 + b2_ref[...], 0.0)                        # (tb, 32)
    logits = jnp.dot(h2.astype(wo_ref.dtype), wo_ref[...],
                     preferred_element_type=jnp.float32) + bo_ref[...]  # (tb,128)
    m = jnp.max(logits, axis=-1, keepdims=True)
    e = jnp.exp(logits - m)
    denom = jnp.sum(e, axis=-1, keepdims=True)
    # exact reciprocal: rows sum to 1 at f32 accuracy (review correctness note)
    o_ref[...] = e * pl.reciprocal(denom, approx=False)


# ---------------------------- kernel wrappers -------------------------------

def matmul_bias_relu(x, w, b_row, out_dtype=jnp.bfloat16, tm_max=512):
    """ReLU((M,K) @ (K,N) + b), tiled over M with a parallel (megacore) grid.

    `w` must already be bf16 (K, N); `b_row` already f32 (1, N) — no per-call
    weight re-layout (prepared once in prepare_actor_params)."""
    M, K = x.shape
    N = w.shape[1]
    tm = _choose_tile(M, tm_max, 16)
    Mp = _round_up(M, tm)
    xp = _pad_rows(x.astype(jnp.bfloat16), Mp)
    cost = pl.CostEstimate(
        flops=2 * Mp * K * N, transcendentals=0,
        bytes_accessed=Mp * K * 2 + K * N * 2 + N * 4 + Mp * N * 2)
    out = pl.pallas_call(
        _matmul_bias_relu_kernel,
        out_shape=jax.ShapeDtypeStruct((Mp, N), out_dtype),
        grid=(Mp // tm,),
        in_specs=[
            pl.BlockSpec((tm, K), lambda i: (i, 0)),
            pl.BlockSpec((K, N), lambda i: (0, 0)),
            pl.BlockSpec((1, N), lambda i: (0, 0)),
        ],
        out_specs=pl.BlockSpec((tm, N), lambda i: (i, 0)),
        compiler_params=pltpu.CompilerParams(
            dimension_semantics=("parallel",),
            vmem_limit_bytes=_VMEM_LIMIT),
        cost_estimate=cost,
    )(xp, w, b_row)
    return out[:M]


def conv_tail_mlp_softmax(x, w3, b3, w1p, b1, w2, b2, wo, bo, action_dim,
                          tb_max=128):
    """Fused pool2 + conv3 + flatten + fc1 + fc2 + fc3 + softmax (one call)."""
    N = x.shape[0]                                    # x: (N, 5, 5, 128) bf16
    tb = _choose_tile(N, tb_max, 8)
    Np = _round_up(N, tb)
    xp = _pad_rows(x, Np)
    flops_row = 2 * (4 * (512 * 128 + 128 * 768) + 768 * 32 + 32 * 128)
    wbytes = 2 * (512 * 128 + 4 * 128 * 768 + 768 * 32 + 32 * 128)
    cost = pl.CostEstimate(
        flops=Np * flops_row, transcendentals=Np * 128,
        bytes_accessed=Np * 25 * 128 * 2 + wbytes + Np * 128 * 4)
    out = pl.pallas_call(
        _tail_kernel,
        out_shape=jax.ShapeDtypeStruct((Np, 128), jnp.float32),
        grid=(Np // tb,),
        in_specs=[
            pl.BlockSpec((tb, 5, 5, 128), lambda i: (i, 0, 0, 0)),
            _full_spec(w3), _full_spec(b3),
            _full_spec(w1p), _full_spec(b1),
            _full_spec(w2), _full_spec(b2),
            _full_spec(wo), _full_spec(bo),
        ],
        out_specs=pl.BlockSpec((tb, 128), lambda i: (i, 0)),
        compiler_params=pltpu.CompilerParams(
            dimension_semantics=("parallel",),
            vmem_limit_bytes=_VMEM_LIMIT),
        cost_estimate=cost,
    )(xp, w3, b3, w1p, b1, w2, b2, wo, bo)
    return out[:N, :action_dim]


# ------------------------------ glue (plain JAX) ----------------------------

def _im2col(x_nhwc, kh, kw, stride, pad):
    # Patch gather only (index/reshape glue fused by XLA); the matmul is Pallas.
    # TODO(synk): move this gather inside the Pallas kernel (pl.ANY input +
    # manual halo DMA into a VMEM scratch) to avoid the HBM cols round trip.
    if pad:
        x_nhwc = jnp.pad(x_nhwc, ((0, 0), (pad, pad), (pad, pad), (0, 0)))
    n, h, w, c = x_nhwc.shape
    oh = (h - kh) // stride + 1
    ow = (w - kw) // stride + 1
    cols = []
    for i in range(kh):
        for j in range(kw):
            cols.append(x_nhwc[:, i:i + stride * (oh - 1) + 1:stride,
                                  j:j + stride * (ow - 1) + 1:stride, :])
    cols = jnp.stack(cols, axis=3)                    # (n, oh, ow, kh*kw, c)
    return cols.reshape(n * oh * ow, kh * kw * c), oh, ow


def conv2d_relu(x_nhwc, w_mat, b_row, kh, kw, stride, pad):
    n = x_nhwc.shape[0]
    cols, oh, ow = _im2col(x_nhwc.astype(jnp.bfloat16), kh, kw, stride, pad)
    out = matmul_bias_relu(cols, w_mat, b_row)        # Pallas tiled MXU matmul
    return out.reshape(n, oh, ow, w_mat.shape[1])


def maxpool2d(x_nhwc, stride):
    # 2x2 max pool as a max over 4 strided views; plain jnp so XLA fuses it.
    n, h, w, c = x_nhwc.shape
    oh = (h - 2) // stride + 1
    ow = (w - 2) // stride + 1
    out = None
    for a in range(2):
        for b in range(2):
            v = x_nhwc[:, a:a + stride * (oh - 1) + 1:stride,
                          b:b + stride * (ow - 1) + 1:stride, :]
            out = v if out is None else jnp.maximum(out, v)
    return out


def _conv_weight_matrix(w_oihw):
    # (oc, ic, kh, kw) -> (kh*kw*ic, oc), matching the im2col column order.
    oc, ic, kh, kw = w_oihw.shape
    return jnp.transpose(w_oihw, (2, 3, 1, 0)).reshape(kh * kw * ic, oc)


# ------------------------------- Actor model --------------------------------

def init_params(key, c, action_dim):
    ks = jax.random.split(key, 12)

    def u(k, shape, fan_in):
        lim = 1.0 / jnp.sqrt(jnp.float32(fan_in))
        return jax.random.uniform(k, shape, jnp.float32, -lim, lim)

    return {
        "w1": u(ks[0], (64, c, 8, 8), c * 8 * 8),
        "b1": u(ks[1], (64,), c * 8 * 8),
        "w2": u(ks[2], (128, 64, 4, 4), 64 * 4 * 4),
        "b2": u(ks[3], (128,), 64 * 4 * 4),
        "w3": u(ks[4], (128, 128, 2, 2), 128 * 2 * 2),
        "b3": u(ks[5], (128,), 128 * 2 * 2),
        # FC weights stored as (in, out)
        "fc1_w": u(ks[6], (128 * 4, 128 * 6), 128 * 4),
        "fc1_b": u(ks[7], (128 * 6,), 128 * 4),
        "fc2_w": u(ks[8], (128 * 6, 32), 128 * 6),
        "fc2_b": u(ks[9], (32,), 128 * 6),
        "fc3_w": u(ks[10], (32, action_dim), 32),
        "fc3_b": u(ks[11], (action_dim,), 32),
    }


def prepare_actor_params(params, action_dim):
    """One-time weight re-layout / cast, hoisted out of the per-step forward."""
    bf, f32 = jnp.bfloat16, jnp.float32
    return {
        "w1": _conv_weight_matrix(params["w1"]).astype(bf),        # (256, 64)
        "b1": params["b1"].reshape(1, -1).astype(f32),
        "w2": _conv_weight_matrix(params["w2"]).astype(bf),        # (1024, 128)
        "b2": params["b2"].reshape(1, -1).astype(f32),
        "w3": _conv_weight_matrix(params["w3"]).astype(bf),        # (512, 128)
        "b3": params["b3"].reshape(1, -1).astype(f32),
        # fc1 rows re-permuted from torch's NCHW flatten order (c*4 + p*2 + q)
        # to (pq, c) so the fused tail kernel never transposes activations.
        "fc1_w": params["fc1_w"].reshape(128, 4, 128 * 6)
                               .transpose(1, 0, 2).astype(bf),     # (4,128,768)
        "fc1_b": params["fc1_b"].reshape(1, -1).astype(f32),
        "fc2_w": params["fc2_w"].astype(bf),                       # (768, 32)
        "fc2_b": params["fc2_b"].reshape(1, -1).astype(f32),
        # fc3 padded to 128 lane-dense columns; padded bias = -1e30 so softmax
        # probability on padded lanes is exactly 0.
        "fc3_w": jnp.pad(params["fc3_w"],
                         ((0, 0), (0, 128 - action_dim))).astype(bf),  # (32,128)
        "fc3_b": jnp.pad(params["fc3_b"].astype(f32), (0, 128 - action_dim),
                         constant_values=-1e30).reshape(1, -1),
    }


def actor_forward(prep, s_nchw, action_dim):
    x = jnp.transpose(s_nchw, (0, 2, 3, 1))                            # -> NHWC
    x = conv2d_relu(x, prep["w1"], prep["b1"], 8, 8, stride=4, pad=2)  # (N,21,21,64)
    x = maxpool2d(x, stride=2)                                         # (N,10,10,64)
    x = conv2d_relu(x, prep["w2"], prep["b2"], 4, 4, stride=2, pad=1)  # (N,5,5,128)
    # pool2 + conv3 + flatten + fc1/fc2/fc3 + softmax: one fused Pallas call.
    return conv_tail_mlp_softmax(
        x, prep["w3"], prep["b3"], prep["fc1_w"], prep["fc1_b"],
        prep["fc2_w"], prep["fc2_b"], prep["fc3_w"], prep["fc3_b"],
        action_dim)                                                    # (N, A)


if __name__ == "__main__":
    key = jax.random.PRNGKey(0)
    k_x, k_p = jax.random.split(key)

    batch, c, action_dim = 2, 4, 6
    # 84x84 input (smallest size family consistent with out.view(-1, 128*2*2))
    s = jax.random.normal(k_x, (batch, c, 84, 84), jnp.float32)
    params = init_params(k_p, c, action_dim)

    # one-time weight re-layout (NOT in the per-step forward)
    prep = jax.block_until_ready(prepare_actor_params(params, action_dim))

    fwd = jax.jit(actor_forward, static_argnames=("action_dim",))
    out = fwd(prep, s, action_dim=action_dim)
    out = jax.block_until_ready(out)

    assert out.shape == (batch, action_dim), out.shape
    assert bool(jnp.all(jnp.isfinite(out)))
    assert bool(jnp.all(out >= 0.0))
    # f32 logits/exp/sum + exact reciprocal -> rows sum to 1 tightly
    assert bool(jnp.allclose(jnp.sum(out, axis=1), 1.0, atol=2e-3))
    print("KERNEL_OK")
</pallas_src>

<mosaic_0001>
module attributes {stable_mosaic.version = 11 : i64} {
  func.func @_matmul_bias_relu_kernel(%arg0: i32, %arg1: memref<512x256xbf16, #tpu.memory_space<vmem>>, %arg2: memref<256x64xbf16, #tpu.memory_space<vmem>>, %arg3: memref<1x64xf32, #tpu.memory_space<vmem>>, %arg4: memref<512x64xbf16, #tpu.memory_space<vmem>>) attributes {dimension_semantics = [#tpu.dimension_semantics<parallel>], iteration_bounds = array<i64: 2>, scalar_prefetch = 0 : i64, scratch_operands = 0 : i64, tpu.core_type = #tpu.core_type<tc>, window_params = [{transform_indices = @transform_0, window_bounds = array<i64: 512, 256>}, {pipeline_mode = #tpu.pipeline_mode<synchronous>, transform_indices = @transform_1, window_bounds = array<i64: 256, 64>}, {pipeline_mode = #tpu.pipeline_mode<synchronous>, transform_indices = @transform_2, window_bounds = array<i64: 1, 64>}, {transform_indices = @transform_3, window_bounds = array<i64: 512, 64>}]} {
    %c0 = arith.constant 0 : index
    %c0_0 = arith.constant 0 : index
    %0 = vector.load %arg1[%c0, %c0_0] : memref<512x256xbf16, #tpu.memory_space<vmem>>, vector<512x256xbf16>
    %c0_1 = arith.constant 0 : index
    %c0_2 = arith.constant 0 : index
    %1 = vector.load %arg2[%c0_1, %c0_2] : memref<256x64xbf16, #tpu.memory_space<vmem>>, vector<256x64xbf16>
    %cst = arith.constant dense<0.000000e+00> : vector<512x64xf32>
    %2 = tpu.matmul %0, %1, %cst {dimension_numbers = #tpu.dot_dimension_numbers<[1], [0], [0], [1], [0, 0, 1, 1], [], []>} : vector<512x256xbf16>, vector<256x64xbf16>, vector<512x64xf32> -> vector<512x64xf32>
    %c0_3 = arith.constant 0 : index
    %c0_4 = arith.constant 0 : index
    %3 = vector.load %arg3[%c0_3, %c0_4] : memref<1x64xf32, #tpu.memory_space<vmem>>, vector<1x64xf32>
    %4 = vector.broadcast %3 : vector<1x64xf32> to vector<512x64xf32>
    %5 = arith.addf %2, %4 : vector<512x64xf32>
    %cst_5 = arith.constant 0.000000e+00 : f32
    %6 = vector.broadcast %cst_5 : f32 to vector<512x64xf32>
    %7 = arith.maximumf %5, %6 : vector<512x64xf32>
    %8 = arith.truncf %7 : vector<512x64xf32> to vector<512x64xbf16>
    %c0_6 = arith.constant 0 : index
    %c0_7 = arith.constant 0 : index
    %9 = vector.load %arg4[%c0_6, %c0_7] : memref<512x64xbf16, #tpu.memory_space<vmem>>, vector<512x64xbf16>
    tpu.vector_store %arg4[%c0_6, %c0_7], %8 {strides = array<i32>} : memref<512x64xbf16, #tpu.memory_space<vmem>>, vector<512x64xbf16>,
    return
  }
  func.func @transform_0(%arg0: i32) -> (i32, i32) {
    %c0_i32 = arith.constant 0 : i32
    %c0_i32_0 = arith.constant 0 : i32
    return %arg0, %c0_i32 : i32, i32
  }
  func.func @transform_1(%arg0: i32) -> (i32, i32) {
    %c0_i32 = arith.constant 0 : i32
    %c0_i32_0 = arith.constant 0 : i32
    %c0_i32_1 = arith.constant 0 : i32
    return %c0_i32, %c0_i32_0 : i32, i32
  }
  func.func @transform_2(%arg0: i32) -> (i32, i32) {
    %c0_i32 = arith.constant 0 : i32
    %c0_i32_0 = arith.constant 0 : i32
    %c0_i32_1 = arith.constant 0 : i32
    return %c0_i32, %c0_i32_0 : i32, i32
  }
  func.func @transform_3(%arg0: i32) -> (i32, i32) {
    %c0_i32 = arith.constant 0 : i32
    %c0_i32_0 = arith.constant 0 : i32
    return %arg0, %c0_i32 : i32, i32
  }
}

module attributes {stable_mosaic.version = 11 : i64} {
  func.func @_matmul_bias_relu_kernel(%arg0: i32, %arg1: memref<32x1024xbf16, #tpu.memory_space<vmem>>, %arg2: memref<1024x128xbf16, #tpu.memory_space<vmem>>, %arg3: memref<1x128xf32, #tpu.memory_space<vmem>>, %arg4: memref<32x128xbf16, #tpu.memory_space<vmem>>) attributes {dimension_semantics = [#tpu.dimension_semantics<parallel>], iteration_bounds = array<i64: 2>, scalar_prefetch = 0 : i64, scratch_operands = 0 : i64, tpu.core_type = #tpu.core_type<tc>, window_params = [{transform_indices = @transform_0, window_bounds = array<i64: 32, 1024>}, {pipeline_mode = #tpu.pipeline_mode<synchronous>, transform_indices = @transform_1, window_bounds = array<i64: 1024, 128>}, {pipeline_mode = #tpu.pipeline_mode<synchronous>, transform_indices = @transform_2, window_bounds = array<i64: 1, 128>}, {transform_indices = @transform_3, window_bounds = array<i64: 32, 128>}]} {
    %c0 = arith.constant 0 : index
    %c0_0 = arith.constant 0 : index
    %0 = vector.load %arg1[%c0, %c0_0] : memref<32x1024xbf16, #tpu.memory_space<vmem>>, vector<32x1024xbf16>
    %c0_1 = arith.constant 0 : index
    %c0_2 = arith.constant 0 : index
    %1 = vector.load %arg2[%c0_1, %c0_2] : memref<1024x128xbf16, #tpu.memory_space<vmem>>, vector<1024x128xbf16>
    %cst = arith.constant dense<0.000000e+00> : vector<32x128xf32>
    %2 = tpu.matmul %0, %1, %cst {dimension_numbers = #tpu.dot_dimension_numbers<[1], [0], [0], [1], [0, 0, 1, 1], [], []>} : vector<32x1024xbf16>, vector<1024x128xbf16>, vector<32x128xf32> -> vector<32x128xf32>
    %c0_3 = arith.constant 0 : index
    %c0_4 = arith.constant 0 : index
    %3 = vector.load %arg3[%c0_3, %c0_4] : memref<1x128xf32, #tpu.memory_space<vmem>>, vector<1x128xf32>
    %4 = vector.broadcast %3 : vector<1x128xf32> to vector<32x128xf32>
    %5 = arith.addf %2, %4 : vector<32x128xf32>
    %cst_5 = arith.constant 0.000000e+00 : f32
    %6 = vector.broadcast %cst_5 : f32 to vector<32x128xf32>
    %7 = arith.maximumf %5, %6 : vector<32x128xf32>
    %8 = arith.truncf %7 : vector<32x128xf32> to vector<32x128xbf16>
    %c0_6 = arith.constant 0 : index
    %c0_7 = arith.constant 0 : index
    %9 = vector.load %arg4[%c0_6, %c0_7] : memref<32x128xbf16, #tpu.memory_space<vmem>>, vector<32x128xbf16>
    tpu.vector_store %arg4[%c0_6, %c0_7], %8 {strides = array<i32>} : memref<32x128xbf16, #tpu.memory_space<vmem>>, vector<32x128xbf16>,
    return
  }
  func.func @transform_0(%arg0: i32) -> (i32, i32) {
    %c0_i32 = arith.constant 0 : i32
    %c0_i32_0 = arith.constant 0 : i32
    return %arg0, %c0_i32 : i32, i32
  }
  func.func @transform_1(%arg0: i32) -> (i32, i32) {
    %c0_i32 = arith.constant 0 : i32
    %c0_i32_0 = arith.constant 0 : i32
    %c0_i32_1 = arith.constant 0 : i32
    return %c0_i32, %c0_i32_0 : i32, i32
  }
  func.func @transform_2(%arg0: i32) -> (i32, i32) {
    %c0_i32 = arith.constant 0 : i32
    %c0_i32_0 = arith.constant 0 : i32
    %c0_i32_1 = arith.constant 0 : i32
    return %c0_i32, %c0_i32_0 : i32, i32
  }
  func.func @transform_3(%arg0: i32) -> (i32, i32) {
    %c0_i32 = arith.constant 0 : i32
    %c0_i32_0 = arith.constant 0 : i32
    return %arg0, %c0_i32 : i32, i32
  }
}

module attributes {stable_mosaic.version = 11 : i64} {
  func.func @_tail_kernel(%arg0: i32, %arg1: memref<8x5x5x128xbf16, #tpu.memory_space<vmem>>, %arg2: memref<512x128xbf16, #tpu.memory_space<vmem>>, %arg3: memref<1x128xf32, #tpu.memory_space<vmem>>, %arg4: memref<4x128x768xbf16, #tpu.memory_space<vmem>>, %arg5: memref<1x768xf32, #tpu.memory_space<vmem>>, %arg6: memref<768x32xbf16, #tpu.memory_space<vmem>>, %arg7: memref<1x32xf32, #tpu.memory_space<vmem>>, %arg8: memref<32x128xbf16, #tpu.memory_space<vmem>>, %arg9: memref<1x128xf32, #tpu.memory_space<vmem>>, %arg10: memref<8x128xf32, #tpu.memory_space<vmem>>) attributes {dimension_semantics = [#tpu.dimension_semantics<parallel>], iteration_bounds = array<i64: 1>, scalar_prefetch = 0 : i64, scratch_operands = 0 : i64, tpu.core_type = #tpu.core_type<tc>, window_params = [{transform_indices = @transform_0, window_bounds = array<i64: 8, 5, 5, 128>}, {pipeline_mode = #tpu.pipeline_mode<synchronous>, transform_indices = @transform_1, window_bounds = array<i64: 512, 128>}, {pipeline_mode = #tpu.pipeline_mode<synchronous>, transform_indices = @transform_2, window_bounds = array<i64: 1, 128>}, {pipeline_mode = #tpu.pipeline_mode<synchronous>, transform_indices = @transform_3, window_bounds = array<i64: 4, 128, 768>}, {pipeline_mode = #tpu.pipeline_mode<synchronous>, transform_indices = @transform_4, window_bounds = array<i64: 1, 768>}, {pipeline_mode = #tpu.pipeline_mode<synchronous>, transform_indices = @transform_5, window_bounds = array<i64: 768, 32>}, {pipeline_mode = #tpu.pipeline_mode<synchronous>, transform_indices = @transform_6, window_bounds = array<i64: 1, 32>}, {pipeline_mode = #tpu.pipeline_mode<synchronous>, transform_indices = @transform_7, window_bounds = array<i64: 32, 128>}, {pipeline_mode = #tpu.pipeline_mode<synchronous>, transform_indices = @transform_8, window_bounds = array<i64: 1, 128>}, {transform_indices = @transform_9, window_bounds = array<i64: 8, 128>}]} {
    %c0 = arith.constant 0 : index
    %c0_0 = arith.constant 0 : index
    %c0_1 = arith.constant 0 : index
    %c0_2 = arith.constant 0 : index
    %0 = vector.load %arg1[%c0, %c0_0, %c0_1, %c0_2] : memref<8x5x5x128xbf16, #tpu.memory_space<vmem>>, vector<8x5x5x128xbf16>
    %1 = vector.extract_strided_slice %0 {offsets = [0, 0, 0, 0], sizes = [8, 4, 4, 128], strides = [1, 1, 1, 1]} : vector<8x5x5x128xbf16> to vector<8x4x4x128xbf16>
    %2 = vector.extract_strided_slice %0 {offsets = [0, 0, 1, 0], sizes = [8, 4, 4, 128], strides = [1, 1, 1, 1]} : vector<8x5x5x128xbf16> to vector<8x4x4x128xbf16>
    %3 = arith.maximumf %1, %2 : vector<8x4x4x128xbf16>
    %4 = vector.extract_strided_slice %0 {offsets = [0, 1, 0, 0], sizes = [8, 4, 4, 128], strides = [1, 1, 1, 1]} : vector<8x5x5x128xbf16> to vector<8x4x4x128xbf16>
    %5 = vector.extract_strided_slice %0 {offsets = [0, 1, 1, 0], sizes = [8, 4, 4, 128], strides = [1, 1, 1, 1]} : vector<8x5x5x128xbf16> to vector<8x4x4x128xbf16>
    %6 = arith.maximumf %4, %5 : vector<8x4x4x128xbf16>
    %7 = arith.maximumf %3, %6 : vector<8x4x4x128xbf16>
    %8 = vector.extract_strided_slice %7 {offsets = [0, 0, 0, 0], sizes = [8, 1, 1, 128], strides = [1, 1, 1, 1]} : vector<8x4x4x128xbf16> to vector<8x1x1x128xbf16>
    %9 = vector.shape_cast %8 : vector<8x1x1x128xbf16> to vector<8x128xbf16>
    %10 = vector.extract_strided_slice %7 {offsets = [0, 0, 1, 0], sizes = [8, 1, 1, 128], strides = [1, 1, 1, 1]} : vector<8x4x4x128xbf16> to vector<8x1x1x128xbf16>
    %11 = vector.shape_cast %10 : vector<8x1x1x128xbf16> to vector<8x128xbf16>
    %12 = vector.extract_strided_slice %7 {offsets = [0, 1, 0, 0], sizes = [8, 1, 1, 128], strides = [1, 1, 1, 1]} : vector<8x4x4x128xbf16> to vector<8x1x1x128xbf16>
    %13 = vector.shape_cast %12 : vector<8x1x1x128xbf16> to vector<8x128xbf16>
    %14 = vector.extract_strided_slice %7 {offsets = [0, 1, 1, 0], sizes = [8, 1, 1, 128], strides = [1, 1, 1, 1]} : vector<8x4x4x128xbf16> to vector<8x1x1x128xbf16>
    %15 = vector.shape_cast %14 : vector<8x1x1x128xbf16> to vector<8x128xbf16>
    %16 = tpu.concatenate %9, %11, %13, %15 in 1 : vector<8x128xbf16>, vector<8x128xbf16>, vector<8x128xbf16>, vector<8x128xbf16> -> vector<8x512xbf16>
    %c0_3 = arith.constant 0 : index
    %c0_4 = arith.constant 0 : index
    %17 = vector.load %arg2[%c0_3, %c0_4] : memref<512x128xbf16, #tpu.memory_space<vmem>>, vector<512x128xbf16>
    %cst = arith.constant dense<0.000000e+00> : vector<8x128xf32>
    %18 = tpu.matmul %16, %17, %cst {dimension_numbers = #tpu.dot_dimension_numbers<[1], [0], [0], [1], [0, 0, 1, 1], [], []>} : vector<8x512xbf16>, vector<512x128xbf16>, vector<8x128xf32> -> vector<8x128xf32>
    %c0_5 = arith.constant 0 : index
    %c0_6 = arith.constant 0 : index
    %19 = vector.load %arg3[%c0_5, %c0_6] : memref<1x128xf32, #tpu.memory_space<vmem>>, vector<1x128xf32>
    %20 = vector.broadcast %19 : vector<1x128xf32> to vector<8x128xf32>
    %21 = arith.addf %18, %20 : vector<8x128xf32>
    %cst_7 = arith.constant 0.000000e+00 : f32
    %22 = vector.broadcast %cst_7 : f32 to vector<8x128xf32>
    %23 = arith.maximumf %21, %22 : vector<8x128xf32>
    %24 = arith.truncf %23 : vector<8x128xf32> to vector<8x128xbf16>
    %c0_8 = arith.constant 0 : index
    %c0_9 = arith.constant 0 : index
    %c0_10 = arith.constant 0 : index
    %25 = vector.load %arg4[%c0_8, %c0_9, %c0_10] : memref<4x128x768xbf16, #tpu.memory_space<vmem>>, vector<1x128x768xbf16>
    %26 = vector.shape_cast %25 : vector<1x128x768xbf16> to vector<128x768xbf16>
    %cst_11 = arith.constant dense<0.000000e+00> : vector<8x768xf32>
    %27 = tpu.matmul %24, %26, %cst_11 {dimension_numbers = #tpu.dot_dimension_numbers<[1], [0], [0], [1], [0, 0, 1, 1], [], []>} : vector<8x128xbf16>, vector<128x768xbf16>, vector<8x768xf32> -> vector<8x768xf32>
    %28 = vector.extract_strided_slice %7 {offsets = [0, 0, 2, 0], sizes = [8, 1, 1, 128], strides = [1, 1, 1, 1]} : vector<8x4x4x128xbf16> to vector<8x1x1x128xbf16>
    %29 = vector.shape_cast %28 : vector<8x1x1x128xbf16> to vector<8x128xbf16>
    %30 = vector.extract_strided_slice %7 {offsets = [0, 0, 3, 0], sizes = [8, 1, 1, 128], strides = [1, 1, 1, 1]} : vector<8x4x4x128xbf16> to vector<8x1x1x128xbf16>
    %31 = vector.shape_cast %30 : vector<8x1x1x128xbf16> to vector<8x128xbf16>
    %32 = vector.extract_strided_slice %7 {offsets = [0, 1, 2, 0], sizes = [8, 1, 1, 128], strides = [1, 1, 1, 1]} : vector<8x4x4x128xbf16> to vector<8x1x1x128xbf16>
    %33 = vector.shape_cast %32 : vector<8x1x1x128xbf16> to vector<8x128xbf16>
    %34 = vector.extract_strided_slice %7 {offsets = [0, 1, 3, 0], sizes = [8, 1, 1, 128], strides = [1, 1, 1, 1]} : vector<8x4x4x128xbf16> to vector<8x1x1x128xbf16>
    %35 = vector.shape_cast %34 : vector<8x1x1x128xbf16> to vector<8x128xbf16>
    %36 = tpu.concatenate %29, %31, %33, %35 in 1 : vector<8x128xbf16>, vector<8x128xbf16>, vector<8x128xbf16>, vector<8x128xbf16> -> vector<8x512xbf16>
    %c0_12 = arith.constant 0 : index
    %c0_13 = arith.constant 0 : index
    %37 = vector.load %arg2[%c0_12, %c0_13] : memref<512x128xbf16, #tpu.memory_space<vmem>>, vector<512x128xbf16>
    %cst_14 = arith.constant dense<0.000000e+00> : vector<8x128xf32>
    %38 = tpu.matmul %36, %37, %cst_14 {dimension_numbers = #tpu.dot_dimension_numbers<[1], [0], [0], [1], [0, 0, 1, 1], [], []>} : vector<8x512xbf16>, vector<512x128xbf16>, vector<8x128xf32> -> vector<8x128xf32>
    %c0_15 = arith.constant 0 : index
    %c0_16 = arith.constant 0 : index
    %39 = vector.load %arg3[%c0_15, %c0_16] : memref<1x128xf32, #tpu.memory_space<vmem>>, vector<1x128xf32>
    %40 = vector.broadcast %39 : vector<1x128xf32> to vector<8x128xf32>
    %41 = arith.addf %38, %40 : vector<8x128xf32>
    %cst_17 = arith.constant 0.000000e+00 : f32
    %42 = vector.broadcast %cst_17 : f32 to vector<8x128xf32>
    %43 = arith.maximumf %41, %42 : vector<8x128xf32>
    %44 = arith.truncf %43 : vector<8x128xf32> to vector<8x128xbf16>
    %c1 = arith.constant 1 : index
    %c0_18 = arith.constant 0 : index
    %c0_19 = arith.constant 0 : index
    %45 = vector.load %arg4[%c1, %c0_18, %c0_19] : memref<4x128x768xbf16, #tpu.memory_space<vmem>>, vector<1x128x768xbf16>
    %46 = vector.shape_cast %45 : vector<1x128x768xbf16> to vector<128x768xbf16>
    %cst_20 = arith.constant dense<0.000000e+00> : vector<8x768xf32>
    %47 = tpu.matmul %44, %46, %cst_20 {dimension_numbers = #tpu.dot_dimension_numbers<[1], [0], [0], [1], [0, 0, 1, 1], [], []>} : vector<8x128xbf16>, vector<128x768xbf16>, vector<8x768xf32> -> vector<8x768xf32>
    %48 = arith.addf %27, %47 : vector<8x768xf32>
    %49 = vector.extract_strided_slice %7 {offsets = [0, 2, 0, 0], sizes = [8, 1, 1, 128], strides = [1, 1, 1, 1]} : vector<8x4x4x128xbf16> to vector<8x1x1x128xbf16>
    %50 = vector.shape_cast %49 : vector<8x1x1x128xbf16> to vector<8x128xbf16>
    %51 = vector.extract_strided_slice %7 {offsets = [0, 2, 1, 0], sizes = [8, 1, 1, 128], strides = [1, 1, 1, 1]} : vector<8x4x4x128xbf16> to vector<8x1x1x128xbf16>
    %52 = vector.shape_cast %51 : vector<8x1x1x128xbf16> to vector<8x128xbf16>
    %53 = vector.extract_strided_slice %7 {offsets = [0, 3, 0, 0], sizes = [8, 1, 1, 128], strides = [1, 1, 1, 1]} : vector<8x4x4x128xbf16> to vector<8x1x1x128xbf16>
    %54 = vector.shape_cast %53 : vector<8x1x1x128xbf16> to vector<8x128xbf16>
    %55 = vector.extract_strided_slice %7 {offsets = [0, 3, 1, 0], sizes = [8, 1, 1, 128], strides = [1, 1, 1, 1]} : vector<8x4x4x128xbf16> to vector<8x1x1x128xbf16>
    %56 = vector.shape_cast %55 : vector<8x1x1x128xbf16> to vector<8x128xbf16>
    %57 = tpu.concatenate %50, %52, %54, %56 in 1 : vector<8x128xbf16>, vector<8x128xbf16>, vector<8x128xbf16>, vector<8x128xbf16> -> vector<8x512xbf16>
    %c0_21 = arith.constant 0 : index
    %c0_22 = arith.constant 0 : index
    %58 = vector.load %arg2[%c0_21, %c0_22] : memref<512x128xbf16, #tpu.memory_space<vmem>>, vector<512x128xbf16>
    %cst_23 = arith.constant dense<0.000000e+00> : vector<8x128xf32>
    %59 = tpu.matmul %57, %58, %cst_23 {dimension_numbers = #tpu.dot_dimension_numbers<[1], [0], [0], [1], [0, 0, 1, 1], [], []>} : vector<8x512xbf16>, vector<512x128xbf16>, vector<8x128xf32> -> vector<8x128xf32>
    %c0_24 = arith.constant 0 : index
    %c0_25 = arith.constant 0 : index
    %60 = vector.load %arg3[%c0_24, %c0_25] : memref<1x128xf32, #tpu.memory_space<vmem>>, vector<1x128xf32>
    %61 = vector.broadcast %60 : vector<1x128xf32> to vector<8x128xf32>
    %62 = arith.addf %59, %61 : vector<8x128xf32>
    %cst_26 = arith.constant 0.000000e+00 : f32
    %63 = vector.broadcast %cst_26 : f32 to vector<8x128xf32>
    %64 = arith.maximumf %62, %63 : vector<8x128xf32>
    %65 = arith.truncf %64 : vector<8x128xf32> to vector<8x128xbf16>
    %c2 = arith.constant 2 : index
    %c0_27 = arith.constant 0 : index
    %c0_28 = arith.constant 0 : index
    %66 = vector.load %arg4[%c2, %c0_27, %c0_28] : memref<4x128x768xbf16, #tpu.memory_space<vmem>>, vector<1x128x768xbf16>
    %67 = vector.shape_cast %66 : vector<1x128x768xbf16> to vector<128x768xbf16>
    %cst_29 = arith.constant dense<0.000000e+00> : vector<8x768xf32>
    %68 = tpu.matmul %65, %67, %cst_29 {dimension_numbers = #tpu.dot_dimension_numbers<[1], [0], [0], [1], [0, 0, 1, 1], [], []>} : vector<8x128xbf16>, vector<128x768xbf16>, vector<8x768xf32> -> vector<8x768xf32>
    %69 = arith.addf %48, %68 : vector<8x768xf32>
    %70 = vector.extract_strided_slice %7 {offsets = [0, 2, 2, 0], sizes = [8, 1, 1, 128], strides = [1, 1, 1, 1]} : vector<8x4x4x128xbf16> to vector<8x1x1x128xbf16>
    %71 = vector.shape_cast %70 : vector<8x1x1x128xbf16> to vector<8x128xbf16>
    %72 = vector.extract_strided_slice %7 {offsets = [0, 2, 3, 0], sizes = [8, 1, 1, 128], strides = [1, 1, 1, 1]} : vector<8x4x4x128xbf16> to vector<8x1x1x128xbf16>
    %73 = vector.shape_cast %72 : vector<8x1x1x128xbf16> to vector<8x128xbf16>
    %74 = vector.extract_strided_slice %7 {offsets = [0, 3, 2, 0], sizes = [8, 1, 1, 128], strides = [1, 1, 1, 1]} : vector<8x4x4x128xbf16> to vector<8x1x1x128xbf16>
    %75 = vector.shape_cast %74 : vector<8x1x1x128xbf16> to vector<8x128xbf16>
    %76 = vector.extract_strided_slice %7 {offsets = [0, 3, 3, 0], sizes = [8, 1, 1, 128], strides = [1, 1, 1, 1]} : vector<8x4x4x128xbf16> to vector<8x1x1x128xbf16>
    %77 = vector.shape_cast %76 : vector<8x1x1x128xbf16> to vector<8x128xbf16>
    %78 = tpu.concatenate %71, %73, %75, %77 in 1 : vector<8x128xbf16>, vector<8x128xbf16>, vector<8x128xbf16>, vector<8x128xbf16> -> vector<8x512xbf16>
    %c0_30 = arith.constant 0 : index
    %c0_31 = arith.constant 0 : index
    %79 = vector.load %arg2[%c0_30, %c0_31] : memref<512x128xbf16, #tpu.memory_space<vmem>>, vector<512x128xbf16>
    %cst_32 = arith.constant dense<0.000000e+00> : vector<8x128xf32>
    %80 = tpu.matmul %78, %79, %cst_32 {dimension_numbers = #tpu.dot_dimension_numbers<[1], [0], [0], [1], [0, 0, 1, 1], [], []>} : vector<8x512xbf16>, vector<512x128xbf16>, vector<8x128xf32> -> vector<8x128xf32>
    %c0_33 = arith.constant 0 : index
    %c0_34 = arith.constant 0 : index
    %81 = vector.load %arg3[%c0_33, %c0_34] : memref<1x128xf32, #tpu.memory_space<vmem>>, vector<1x128xf32>
    %82 = vector.broadcast %81 : vector<1x128xf32> to vector<8x128xf32>
    %83 = arith.addf %80, %82 : vector<8x128xf32>
    %cst_35 = arith.constant 0.000000e+00 : f32
    %84 = vector.broadcast %cst_35 : f32 to vector<8x128xf32>
    %85 = arith.maximumf %83, %84 : vector<8x128xf32>
    %86 = arith.truncf %85 : vector<8x128xf32> to vector<8x128xbf16>
    %c3 = arith.constant 3 : index
    %c0_36 = arith.constant 0 : index
    %c0_37 = arith.constant 0 : index
    %87 = vector.load %arg4[%c3, %c0_36, %c0_37] : memref<4x128x768xbf16, #tpu.memory_space<vmem>>, vector<1x128x768xbf16>
    %88 = vector.shape_cast %87 : vector<1x128x768xbf16> to vector<128x768xbf16>
    %cst_38 = arith.constant dense<0.000000e+00> : vector<8x768xf32>
    %89 = tpu.matmul %86, %88, %cst_38 {dimension_numbers = #tpu.dot_dimension_numbers<[1], [0], [0], [1], [0, 0, 1, 1], [], []>} : vector<8x128xbf16>, vector<128x768xbf16>, vector<8x768xf32> -> vector<8x768xf32>
    %90 = arith.addf %69, %89 : vector<8x768xf32>
    %c0_39 = arith.constant 0 : index
    %c0_40 = arith.constant 0 : index
    %91 = vector.load %arg5[%c0_39, %c0_40] : memref<1x768xf32, #tpu.memory_space<vmem>>, vector<1x768xf32>
    %92 = vector.broadcast %91 : vector<1x768xf32> to vector<8x768xf32>
    %93 = arith.addf %90, %92 : vector<8x768xf32>
    %cst_41 = arith.constant 0.000000e+00 : f32
    %94 = vector.broadcast %cst_41 : f32 to vector<8x768xf32>
    %95 = arith.maximumf %93, %94 : vector<8x768xf32>
    %96 = arith.truncf %95 : vector<8x768xf32> to vector<8x768xbf16>
    %c0_42 = arith.constant 0 : index
    %c0_43 = arith.constant 0 : index
    %97 = vector.load %arg6[%c0_42, %c0_43] : memref<768x32xbf16, #tpu.memory_space<vmem>>, vector<768x32xbf16>
    %cst_44 = arith.constant dense<0.000000e+00> : vector<8x32xf32>
    %98 = tpu.matmul %96, %97, %cst_44 {dimension_numbers = #tpu.dot_dimension_numbers<[1], [0], [0], [1], [0, 0, 1, 1], [], []>} : vector<8x768xbf16>, vector<768x32xbf16>, vector<8x32xf32> -> vector<8x32xf32>
    %c0_45 = arith.constant 0 : index
    %c0_46 = arith.constant 0 : index
    %99 = vector.load %arg7[%c0_45, %c0_46] : memref<1x32xf32, #tpu.memory_space<vmem>>, vector<1x32xf32>
    %100 = vector.broadcast %99 : vector<1x32xf32> to vector<8x32xf32>
    %101 = arith.addf %98, %100 : vector<8x32xf32>
    %cst_47 = arith.constant 0.000000e+00 : f32
    %102 = vector.broadcast %cst_47 : f32 to vector<8x32xf32>
    %103 = arith.maximumf %101, %102 : vector<8x32xf32>
    %104 = arith.truncf %103 : vector<8x32xf32> to vector<8x32xbf16>
    %c0_48 = arith.constant 0 : index
    %c0_49 = arith.constant 0 : index
    %105 = vector.load %arg8[%c0_48, %c0_49] : memref<32x128xbf16, #tpu.memory_space<vmem>>, vector<32x128xbf16>
    %cst_50 = arith.constant dense<0.000000e+00> : vector<8x128xf32>
    %106 = tpu.matmul %104, %105, %cst_50 {dimension_numbers = #tpu.dot_dimension_numbers<[1], [0], [0], [1], [0, 0, 1, 1], [], []>} : vector<8x32xbf16>, vector<32x128xbf16>, vector<8x128xf32> -> vector<8x128xf32>
    %c0_51 = arith.constant 0 : index
    %c0_52 = arith.constant 0 : index
    %107 = vector.load %arg9[%c0_51, %c0_52] : memref<1x128xf32, #tpu.memory_space<vmem>>, vector<1x128xf32>
    %108 = vector.broadcast %107 : vector<1x128xf32> to vector<8x128xf32>
    %109 = arith.addf %106, %108 : vector<8x128xf32>
    %cst_53 = arith.constant dense<0xFF800000> : vector<8xf32>
    %110 = vector.multi_reduction <maximumf>, %109, %cst_53 [1] : vector<8x128xf32> to vector<8xf32>
    %111 = vector.shape_cast %110 : vector<8xf32> to vector<8x1xf32>
    %112 = vector.broadcast %111 : vector<8x1xf32> to vector<8x128xf32>
    %113 = arith.subf %109, %112 : vector<8x128xf32>
    %114 = math.exp %113 : vector<8x128xf32>
    %cst_54 = arith.constant dense<0.000000e+00> : vector<8xf32>
    %115 = vector.multi_reduction <add>, %114, %cst_54 [1] : vector<8x128xf32> to vector<8xf32>
    %116 = vector.shape_cast %115 : vector<8xf32> to vector<8x1xf32>
    %117 = tpu.reciprocal %116 : vector<8x1xf32> -> vector<8x1xf32>
    %118 = vector.broadcast %117 : vector<8x1xf32> to vector<8x128xf32>
    %119 = arith.mulf %114, %118 : vector<8x128xf32>
    %c0_55 = arith.constant 0 : index
    %c0_56 = arith.constant 0 : index
    %120 = vector.load %arg10[%c0_55, %c0_56] : memref<8x128xf32, #tpu.memory_space<vmem>>, vector<8x128xf32>
    tpu.vector_store %arg10[%c0_55, %c0_56], %119 {strides = array<i32>} : memref<8x128xf32, #tpu.memory_space<vmem>>, vector<8x128xf32>,
    return
  }
  func.func @transform_0(%arg0: i32) -> (i32, i32, i32, i32) {
    %c0_i32 = arith.constant 0 : i32
    %c0_i32_0 = arith.constant 0 : i32
    %c0_i32_1 = arith.constant 0 : i32
    %c0_i32_2 = arith.constant 0 : i32
    return %arg0, %c0_i32, %c0_i32_0, %c0_i32_1 : i32, i32, i32, i32
  }
  func.func @transform_1(%arg0: i32) -> (i32, i32) {
    %c0_i32 = arith.constant 0 : i32
    %c0_i32_0 = arith.constant 0 : i32
    %c0_i32_1 = arith.constant 0 : i32
    return %c0_i32, %c0_i32_0 : i32, i32
  }
  func.func @transform_2(%arg0: i32) -> (i32, i32) {
    %c0_i32 = arith.constant 0 : i32
    %c0_i32_0 = arith.constant 0 : i32
    %c0_i32_1 = arith.constant 0 : i32
    return %c0_i32, %c0_i32_0 : i32, i32
  }
  func.func @transform_3(%arg0: i32) -> (i32, i32, i32) {
    %c0_i32 = arith.constant 0 : i32
    %c0_i32_0 = arith.constant 0 : i32
    %c0_i32_1 = arith.constant 0 : i32
    %c0_i32_2 = arith.constant 0 : i32
    return %c0_i32, %c0_i32_0, %c0_i32_1 : i32, i32, i32
  }
  func.func @transform_4(%arg0: i32) -> (i32, i32) {
    %c0_i32 = arith.constant 0 : i32
    %c0_i32_0 = arith.constant 0 : i32
    %c0_i32_1 = arith.constant 0 : i32
    return %c0_i32, %c0_i32_0 : i32, i32
  }
  func.func @transform_5(%arg0: i32) -> (i32, i32) {
    %c0_i32 = arith.constant 0 : i32
    %c0_i32_0 = arith.constant 0 : i32
    %c0_i32_1 = arith.constant 0 : i32
    return %c0_i32, %c0_i32_0 : i32, i32
  }
  func.func @transform_6(%arg0: i32) -> (i32, i32) {
    %c0_i32 = arith.constant 0 : i32
    %c0_i32_0 = arith.constant 0 : i32
    %c0_i32_1 = arith.constant 0 : i32
    return %c0_i32, %c0_i32_0 : i32, i32
  }
  func.func @transform_7(%arg0: i32) -> (i32, i32) {
    %c0_i32 = arith.constant 0 : i32
    %c0_i32_0 = arith.constant 0 : i32
    %c0_i32_1 = arith.constant 0 : i32
    return %c0_i32, %c0_i32_0 : i32, i32
  }
  func.func @transform_8(%arg0: i32) -> (i32, i32) {
    %c0_i32 = arith.constant 0 : i32
    %c0_i32_0 = arith.constant 0 : i32
    %c0_i32_1 = arith.constant 0 : i32
    return %c0_i32, %c0_i32_0 : i32, i32
  }
  func.func @transform_9(%arg0: i32) -> (i32, i32) {
    %c0_i32 = arith.constant 0 : i32
    %c0_i32_0 = arith.constant 0 : i32
    return %arg0, %c0_i32 : i32, i32
  }
}

</mosaic_0001>

<llo_original>
// kernel: actor_forward.3
$region0: #{actor_forward.3}
  #allocation0 [shape = 'u32[]', space=smem, size = 0x4, offset = 0x4, fixed_abs, tag = 'smem constant byte address 0x4 - core index']
  #allocation1 [shape = 'u32[144,128]{1,0:T(1,128)}', space=vmem, size = 0x12000, scoped, tag = 'internal scratch']
  %s0 = inlined_call_operand.vmem [shape: bf16[1024,256], index: 0, kind: input, shape index: {}]
  %s1 = inlined_call_operand.vmem [shape: bf16[256,64], index: 1, kind: input, shape index: {}]
  %s2 = inlined_call_operand.vmem [shape: f32[1,64], index: 2, kind: input, shape index: {}]
  %s3 = inlined_call_operand.vmem [shape: bf16[1024,64], index: 3, kind: output, shape index: {}]
  %s4 = sld [smem:[#allocation0]]
  $region45: #{actor_forward.3} parent=0
    _
  %s6 = ssub.s32 1, %s4
  %s7 = scalar_select 0, %s6, %s4
  loop: start=0, step=1, limit=4
  $region2: #{actor_forward.3} parent=0 // loop_pre_header
    _
  $region3: #{actor_forward.3} parent=0 // loop_header
    %s9 = sphi 0, %s13
    %p10 = scmp.ge.s32.totalorder %s9, 4
    %s19 = sphi 0, %s21
    %s22 = sphi 0, %s19
    %s23 = sphi 0, %s22
    %s39 = sphi 0, %s23
    %s43 = sphi 0, %s43
    %s45 = sphi 0, %s43
    %s46 = sphi 0, %s45
    %s60 = sphi 0, %s46
    %s64 = sphi 0, %s64
    %s66 = sphi 0, %s64
    %s67 = sphi 0, %s66
    %s81 = sphi 0, %s67
    %s87 = sphi 0, %s89
    %s90 = sphi 0, %s87
    %s91 = sphi 0, %s90
    %s107 = sphi 0, %s91
  $region4: #{actor_forward.3} parent=0 // loop_header_branch
    %12 = sbr.rel (%p10) target = $region8
  $region5: #{actor_forward.3} parent=0 // loop_body
    %s14 = ssub.s32 %s9, 1
    %s15 = ssub.s32 %s9, 2
    %s16 = sadd.s32 %s9, 1
    %s17 = ssub.s32 %s9, %s16
    %p18 = scmp.eq.s32.totalorder %s17, 0
    %s20 = sadd.s32 %s19, 1
    %s21 = scalar_select %p18, %s19, %s20
    %p24 = pneg %p18
    %p25 = scmp.eq.s32.totalorder %s9, 1
    %p26 = por %p24, %p25
    %p27 = scmp.ne.s32.totalorder %s19, %s22
    %p28 = scmp.eq.s32.totalorder %s9, 0
    %p29 = por %p27, %p28
    %p30 = scmp.ne.s32.totalorder %s19, %s22
    %p31 = scmp.eq.s32.totalorder %s14, 1
    %p32 = por %p30, %p31
    %p33 = scmp.ne.s32.totalorder %s22, %s23
    %p34 = scmp.eq.s32.totalorder %s14, 0
    %p35 = por %p33, %p34
    %p36 = scmp.ne.s32.totalorder %s22, %s23
    %p37 = scmp.eq.s32.totalorder %s15, 1
    %p38 = por %p36, %p37
    %p40 = scmp.ne.s32.totalorder %s23, %s39
    %p41 = scmp.eq.s32.totalorder %s15, 0
    %p42 = por %p40, %p41
    %s44 = sadd.s32 %s43, 1
    %p47 = scmp.eq.s32.totalorder %s9, 1
    %p48 = scmp.ne.s32.totalorder %s43, %s45
    %p49 = scmp.eq.s32.totalorder %s9, 0
    %p50 = por %p48, %p49
    %p51 = scmp.ne.s32.totalorder %s43, %s45
    %p52 = scmp.eq.s32.totalorder %s14, 1
    %p53 = por %p51, %p52
    %p54 = scmp.ne.s32.totalorder %s45, %s46
    %p55 = scmp.eq.s32.totalorder %s14, 0
    %p56 = por %p54, %p55
    %p57 = scmp.ne.s32.totalorder %s45, %s46
    %p58 = scmp.eq.s32.totalorder %s15, 1
    %p59 = por %p57, %p58
    %p61 = scmp.ne.s32.totalorder %s46, %s60
    %p62 = scmp.eq.s32.totalorder %s15, 0
    %p63 = por %p61, %p62
    %s65 = sadd.s32 %s64, 1
    %p68 = scmp.eq.s32.totalorder %s9, 1
    %p69 = scmp.ne.s32.totalorder %s64, %s66
    %p70 = scmp.eq.s32.totalorder %s9, 0
    %p71 = por %p69, %p70
    %p72 = scmp.ne.s32.totalorder %s64, %s66
    %p73 = scmp.eq.s32.totalorder %s14, 1
    %p74 = por %p72, %p73
    %p75 = scmp.ne.s32.totalorder %s66, %s67
    %p76 = scmp.eq.s32.totalorder %s14, 0
    %p77 = por %p75, %p76
    %p78 = scmp.ne.s32.totalorder %s66, %s67
    %p79 = scmp.eq.s32.totalorder %s15, 1
    %p80 = por %p78, %p79
    %p82 = scmp.ne.s32.totalorder %s67, %s81
    %p83 = scmp.eq.s32.totalorder %s15, 0
    %p84 = por %p82, %p83
    %s85 = ssub.s32 %s9, %s16
    %p86 = scmp.eq.s32.totalorder %s85, 0
    %s88 = sadd.s32 %s87, 1
    %s89 = scalar_select %p86, %s87, %s88
    %p92 = pneg %p86
    %p93 = scmp.eq.s32.totalorder %s9, 1
    %p94 = por %p92, %p93
    %p95 = scmp.ne.s32.totalorder %s87, %s90
    %p96 = scmp.eq.s32.totalorder %s9, 0
    %p97 = por %p95, %p96
    %p98 = scmp.ne.s32.totalorder %s87, %s90
    %p99 = scmp.eq.s32.totalorder %s14, 1
    %p100 = por %p98, %p99
    %p101 = scmp.ne.s32.totalorder %s90, %s91
    %p102 = scmp.eq.s32.totalorder %s14, 0
    %p103 = por %p101, %p102
    %p104 = scmp.ne.s32.totalorder %s90, %s91
    %p105 = scmp.eq.s32.totalorder %s15, 1
    %p106 = por %p104, %p105
    %p108 = scmp.ne.s32.totalorder %s91, %s107
    %p109 = scmp.eq.s32.totalorder %s15, 0
    %p110 = por %p108, %p109
    %p111 = scmp.le.s32.totalorder 1, %s9
    %p112 = scmp.lt.s32.totalorder %s9, 3
    %p113 = pnand %p111, %p112
    %p114 = pneg %p113
    // Predicated region
    $region9: #{actor_forward.3} parent=5 // pred_check
      _
    $region10: #{actor_forward.3} parent=5 // pred_check_branch
      %116 = sbr.rel (%p113) target = $region12
    $region11: #{actor_forward.3} parent=5 // pred_region
      %s117 = ssub.s32 %s9, 1
      // Predicated region
      $region13: #{actor_forward.3} parent=11 // pred_check
        %p118 = pneg %p56
      $region14: #{actor_forward.3} parent=11 // pred_check_branch
        %120 = sbr.rel (%p118) target = $region16
      $region15: #{actor_forward.3} parent=11 // pred_region
        _
      $region16: #{actor_forward.3} parent=11 // pred_fallthru
        _
      // Predicated region
      $region17: #{actor_forward.3} parent=11 // pred_check
        %p121 = pneg %p77
      $region18: #{actor_forward.3} parent=11 // pred_check_branch
        %123 = sbr.rel (%p121) target = $region20
      $region19: #{actor_forward.3} parent=11 // pred_region
        _
      $region20: #{actor_forward.3} parent=11 // pred_fallthru
        _
    $region12: #{actor_forward.3} parent=5 // pred_fallthru
      _
    %p124 = scmp.lt.s32.totalorder %s9, 2
    // Predicated region
    $region21: #{actor_forward.3} parent=5 // pred_check
      %p125 = pneg %p124
    $region22: #{actor_forward.3} parent=5 // pred_check_branch
      %127 = sbr.rel (%p125) target = $region24
    $region23: #{actor_forward.3} parent=5 // pred_region
      // Predicated region
      $region25: #{actor_forward.3} parent=23 // pred_check
        %p128 = pneg %p29
      $region26: #{actor_forward.3} parent=23 // pred_check_branch
        %130 = sbr.rel (%p128) target = $region28
      $region27: #{actor_forward.3} parent=23 // pred_region
        %s131 = smul.u32 64, %s9
        %p132 = scmp.lt.s32.totalorder %s131, 127
        %s133 = scalar_select %p132, %s131, 127
        %s134 = smul.addr %s133, 2
        %s135 = smul.addr %s134, 4
        %s136 = scalar_lea.vmem %s0, %s135
        %s137 = smul.u32 64, %s9
      $region28: #{actor_forward.3} parent=23 // pred_fallthru
        _
    $region24: #{actor_forward.3} parent=5 // pred_fallthru
      _
    %p138 = scmp.le.s32.totalorder 1, %s9
    %p139 = scmp.lt.s32.totalorder %s9, 3
    %p140 = pnand %p138, %p139
    %p141 = pneg %p140
    // Predicated region
    $region29: #{actor_forward.3} parent=5 // pred_check
      _
    $region30: #{actor_forward.3} parent=5 // pred_check_branch
      %143 = sbr.rel (%p140) target = $region32
    $region31: #{actor_forward.3} parent=5 // pred_region
      %s144 = ssub.s32 %s9, 1
      %s145 = smul.u32 64, %s14
      %p146 = scmp.lt.s32.totalorder %s145, 127
      %s147 = scalar_select %p146, %s145, 127
      %s148 = smul.addr %s147, 2
      %s149 = smul.addr %s148, 4
      %s150 = scalar_lea.vmem %s0, %s149
      %p151 = pneg %p35
      %p152 = pneg %p32
      %p153 = pneg %p56
      %p154 = pneg %p53
      %p155 = pneg %p77
      %p156 = pneg %p74
      %p157 = pneg %p103
      %p158 = pneg %p100
      %s159 = smul.u32 64, %s14
      %p160 = scmp.lt.s32.totalorder %s159, 127
      %s161 = scalar_select %p160, %s159, 127
      %s162 = smul.addr %s161, 4
      %s163 = scalar_lea.vmem %s3, %s162
      %s164 = smul.u32 64, %s14
      %p165 = scmp.lt.s32.totalorder %s164, 127
      %s166 = scalar_select %p165, %s164, 127
      %s167 = smul.addr %s166, 2
      %s168 = smul.addr %s167, 4
      %s169 = scalar_lea.vmem %s0, %s168
      %s170 = smul.u32 64, %s14
      %s171 = smul.u32 64, %s14
      %p172 = scmp.lt.s32.totalorder %s171, 127
      %s173 = scalar_select %p172, %s171, 127
      %s174 = smul.addr %s173, 4
      %s175 = scalar_lea.vmem %s3, %s174
      %s176 = smul.u32 64, %s14
      %v178 = vld [vmem:[%s169] sm:$0xff]
      %v179 = vld [vmem:[%s169 + $0x8] sm:$0xff]
      %v180 = vld [vmem:[%s169 + $0x10] sm:$0xff]
      %v181 = vld [vmem:[%s169 + $0x18] sm:$0xff]
      %v182 = vld [vmem:[%s169 + $0x20] sm:$0xff]
      %v183 = vld [vmem:[%s169 + $0x28] sm:$0xff]
      %v184 = vld [vmem:[%s169 + $0x30] sm:$0xff]
      %v185 = vld [vmem:[%s169 + $0x38] sm:$0xff]
      %v186 = vld [vmem:[%s169 + $0x40] sm:$0xff]
      %v187 = vld [vmem:[%s169 + $0x48] sm:$0xff]
      %v188 = vld [vmem:[%s169 + $0x50] sm:$0xff]
      %v189 = vld [vmem:[%s169 + $0x58] sm:$0xff]
      %v190 = vld [vmem:[%s169 + $0x60] sm:$0xff]
      %v191 = vld [vmem:[%s169 + $0x68] sm:$0xff]
      %v192 = vld [vmem:[%s169 + $0x70] sm:$0xff]
      %v193 = vld [vmem:[%s169 + $0x78] sm:$0xff]
      %v194 = vld [vmem:[%s169 + $0x80] sm:$0xff]
      %v195 = vld [vmem:[%s169 + $0x88] sm:$0xff]
      %v196 = vld [vmem:[%s169 + $0x90] sm:$0xff]
      %v197 = vld [vmem:[%s169 + $0x98] sm:$0xff]
      %v198 = vld [vmem:[%s169 + $0xa0] sm:$0xff]
      %v199 = vld [vmem:[%s169 + $0xa8] sm:$0xff]
      %v200 = vld [vmem:[%s169 + $0xb0] sm:$0xff]
      %v201 = vld [vmem:[%s169 + $0xb8] sm:$0xff]
      %v202 = vld [vmem:[%s169 + $0xc0] sm:$0xff]
      %v203 = vld [vmem:[%s169 + $0xc8] sm:$0xff]
      %v204 = vld [vmem:[%s169 + $0xd0] sm:$0xff]
      %v205 = vld [vmem:[%s169 + $0xd8] sm:$0xff]
      %v206 = vld [vmem:[%s169 + $0xe0] sm:$0xff]
      %v207 = vld [vmem:[%s169 + $0xe8] sm:$0xff]
      %v208 = vld [vmem:[%s169 + $0xf0] sm:$0xff]
      %v209 = vld [vmem:[%s169 + $0xf8] sm:$0xff]
      %v210 = vld [vmem:[%s169 + $0x100] sm:$0xff]
      %v211 = vld [vmem:[%s169 + $0x108] sm:$0xff]
      %v212 = vld [vmem:[%s169 + $0x110] sm:$0xff]
      %v213 = vld [vmem:[%s169 + $0x118] sm:$0xff]
      %v214 = vld [vmem:[%s169 + $0x120] sm:$0xff]
      %v215 = vld [vmem:[%s169 + $0x128] sm:$0xff]
      %v216 = vld [vmem:[%s169 + $0x130] sm:$0xff]
      %v217 = vld [vmem:[%s169 + $0x138] sm:$0xff]
      %v218 = vld [vmem:[%s169 + $0x140] sm:$0xff]
      %v219 = vld [vmem:[%s169 + $0x148] sm:$0xff]
      %v220 = vld [vmem:[%s169 + $0x150] sm:$0xff]
      %v221 = vld [vmem:[%s169 + $0x158] sm:$0xff]
      %v222 = vld [vmem:[%s169 + $0x160] sm:$0xff]
      %v223 = vld [vmem:[%s169 + $0x168] sm:$0xff]
      %v224 = vld [vmem:[%s169 + $0x170] sm:$0xff]
      %v225 = vld [vmem:[%s169 + $0x178] sm:$0xff]
      %v226 = vld [vmem:[%s169 + $0x180] sm:$0xff]
      %v227 = vld [vmem:[%s169 + $0x188] sm:$0xff]
      %v228 = vld [vmem:[%s169 + $0x190] sm:$0xff]
      %v229 = vld [vmem:[%s169 + $0x198] sm:$0xff]
      %v230 = vld [vmem:[%s169 + $0x1a0] sm:$0xff]
      %v231 = vld [vmem:[%s169 + $0x1a8] sm:$0xff]
      %v232 = vld [vmem:[%s169 + $0x1b0] sm:$0xff]
      %v233 = vld [vmem:[%s169 + $0x1b8] sm:$0xff]
      %v234 = vld [vmem:[%s169 + $0x1c0] sm:$0xff]
      %v235 = vld [vmem:[%s169 + $0x1c8] sm:$0xff]
      %v236 = vld [vmem:[%s169 + $0x1d0] sm:$0xff]
      %v237 = vld [vmem:[%s169 + $0x1d8] sm:$0xff]
      %v238 = vld [vmem:[%s169 + $0x1e0] sm:$0xff]
      %v239 = vld [vmem:[%s169 + $0x1e8] sm:$0xff]
      %v240 = vld [vmem:[%s169 + $0x1f0] sm:$0xff]
      %v241 = vld [vmem:[%s169 + $0x1f8] sm:$0xff]
      %v242 = vld [vmem:[%s1] sm:$0xf]
      %v243 = vld [vmem:[%s1 + $0x4] sm:$0xf]
      %v244 = vld [vmem:[%s1 + $0x8] sm:$0xf]
      %v245 = vld [vmem:[%s1 + $0xc] sm:$0xf]
      %v246 = vld [vmem:[%s1 + $0x10] sm:$0xf]
      %v247 = vld [vmem:[%s1 + $0x14] sm:$0xf]
      %v248 = vld [vmem:[%s1 + $0x18] sm:$0xf]
      %v249 = vld [vmem:[%s1 + $0x1c] sm:$0xf]
      %v250 = vld [vmem:[%s1 + $0x20] sm:$0xf]
      %v251 = vld [vmem:[%s1 + $0x24] sm:$0xf]
      %v252 = vld [vmem:[%s1 + $0x28] sm:$0xf]
      %v253 = vld [vmem:[%s1 + $0x2c] sm:$0xf]
      %v254 = vld [vmem:[%s1 + $0x30] sm:$0xf]
      %v255 = vld [vmem:[%s1 + $0x34] sm:$0xf]
      %v256 = vld [vmem:[%s1 + $0x38] sm:$0xf]
      %v257 = vld [vmem:[%s1 + $0x3c] sm:$0xf]
      %v258 = vld [vmem:[%s1 + $0x40] sm:$0xf]
      %v259 = vld [vmem:[%s1 + $0x44] sm:$0xf]
      %v260 = vld [vmem:[%s1 + $0x48] sm:$0xf]
      %v261 = vld [vmem:[%s1 + $0x4c] sm:$0xf]
      %v262 = vld [vmem:[%s1 + $0x50] sm:$0xf]
      %v263 = vld [vmem:[%s1 + $0x54] sm:$0xf]
      %v264 = vld [vmem:[%s1 + $0x58] sm:$0xf]
      %v265 = vld [vmem:[%s1 + $0x5c] sm:$0xf]
      %v266 = vld [vmem:[%s1 + $0x60] sm:$0xf]
      %v267 = vld [vmem:[%s1 + $0x64] sm:$0xf]
      %v268 = vld [vmem:[%s1 + $0x68] sm:$0xf]
      %v269 = vld [vmem:[%s1 + $0x6c] sm:$0xf]
      %v270 = vld [vmem:[%s1 + $0x70] sm:$0xf]
      %v271 = vld [vmem:[%s1 + $0x74] sm:$0xf]
      %v272 = vld [vmem:[%s1 + $0x78] sm:$0xf]
      %v273 = vld [vmem:[%s1 + $0x7c] sm:$0xf]
      %v274 = vld [vmem:[%s2] sm:$0x1]
      %v276 = vlaneseq
      %v277 = vshrl.u32 %v276, 7
      %v278 = vsub.s32 0, %v277
      %v279 = vrot.slane %v274, %v278
      %v345 = vunpack.c.l.b16 %v178
      %v346 = vunpack.c.h.b16 %v178
      %v347 = vunpack.c.l.b16 %v179
      %v348 = vunpack.c.h.b16 %v179
      %v349 = vunpack.c.l.b16 %v180
      %v350 = vunpack.c.h.b16 %v180
      %v351 = vunpack.c.l.b16 %v181
      %v352 = vunpack.c.h.b16 %v181
      %v353 = vunpack.c.l.b16 %v182
      %v354 = vunpack.c.h.b16 %v182
      %v355 = vunpack.c.l.b16 %v183
      %v356 = vunpack.c.h.b16 %v183
      %v357 = vunpack.c.l.b16 %v184
      %v358 = vunpack.c.h.b16 %v184
      %v359 = vunpack.c.l.b16 %v185
      %v360 = vunpack.c.h.b16 %v185
      %v361 = vunpack.c.l.b16 %v186
      %v362 = vunpack.c.h.b16 %v186
      %v363 = vunpack.c.l.b16 %v187
      %v364 = vunpack.c.h.b16 %v187
      %v365 = vunpack.c.l.b16 %v188
      %v366 = vunpack.c.h.b16 %v188
      %v367 = vunpack.c.l.b16 %v189
      %v368 = vunpack.c.h.b16 %v189
      %v369 = vunpack.c.l.b16 %v190
      %v370 = vunpack.c.h.b16 %v190
      %v371 = vunpack.c.l.b16 %v191
      %v372 = vunpack.c.h.b16 %v191
      %v373 = vunpack.c.l.b16 %v192
      %v374 = vunpack.c.h.b16 %v192
      %v375 = vunpack.c.l.b16 %v193
      %v376 = vunpack.c.h.b16 %v193
      %v377 = vunpack.c.l.b16 %v194
      %v378 = vunpack.c.h.b16 %v194
      %v379 = vunpack.c.l.b16 %v195
      %v380 = vunpack.c.h.b16 %v195
      %v381 = vunpack.c.l.b16 %v196
      %v382 = vunpack.c.h.b16 %v196
      %v383 = vunpack.c.l.b16 %v197
      %v384 = vunpack.c.h.b16 %v197
      %v385 = vunpack.c.l.b16 %v198
      %v386 = vunpack.c.h.b16 %v198
      %v387 = vunpack.c.l.b16 %v199
      %v388 = vunpack.c.h.b16 %v199
      %v389 = vunpack.c.l.b16 %v200
      %v390 = vunpack.c.h.b16 %v200
      %v391 = vunpack.c.l.b16 %v201
      %v392 = vunpack.c.h.b16 %v201
      %v393 = vunpack.c.l.b16 %v202
      %v394 = vunpack.c.h.b16 %v202
      %v395 = vunpack.c.l.b16 %v203
      %v396 = vunpack.c.h.b16 %v203
      %v397 = vunpack.c.l.b16 %v204
      %v398 = vunpack.c.h.b16 %v204
      %v399 = vunpack.c.l.b16 %v205
      %v400 = vunpack.c.h.b16 %v205
      %v401 = vunpack.c.l.b16 %v206
      %v402 = vunpack.c.h.b16 %v206
      %v403 = vunpack.c.l.b16 %v207
      %v404 = vunpack.c.h.b16 %v207
      %v405 = vunpack.c.l.b16 %v208
      %v406 = vunpack.c.h.b16 %v208
      %v407 = vunpack.c.l.b16 %v209
      %v408 = vunpack.c.h.b16 %v209
      %v409 = vunpack.c.l.b16 %v210
      %v410 = vunpack.c.h.b16 %v210
      %v411 = vunpack.c.l.b16 %v211
      %v412 = vunpack.c.h.b16 %v211
      %v413 = vunpack.c.l.b16 %v212
      %v414 = vunpack.c.h.b16 %v212
      %v415 = vunpack.c.l.b16 %v213
      %v416 = vunpack.c.h.b16 %v213
      %v417 = vunpack.c.l.b16 %v214
      %v418 = vunpack.c.h.b16 %v214
      %v419 = vunpack.c.l.b16 %v215
      %v420 = vunpack.c.h.b16 %v215
      %v421 = vunpack.c.l.b16 %v216
      %v422 = vunpack.c.h.b16 %v216
      %v423 = vunpack.c.l.b16 %v217
      %v424 = vunpack.c.h.b16 %v217
      %v425 = vunpack.c.l.b16 %v218
      %v426 = vunpack.c.h.b16 %v218
      %v427 = vunpack.c.l.b16 %v219
      %v428 = vunpack.c.h.b16 %v219
      %v429 = vunpack.c.l.b16 %v220
      %v430 = vunpack.c.h.b16 %v220
      %v431 = vunpack.c.l.b16 %v221
      %v432 = vunpack.c.h.b16 %v221
      %v433 = vunpack.c.l.b16 %v222
      %v434 = vunpack.c.h.b16 %v222
      %v435 = vunpack.c.l.b16 %v223
      %v436 = vunpack.c.h.b16 %v223
      %v437 = vunpack.c.l.b16 %v224
      %v438 = vunpack.c.h.b16 %v224
      %v439 = vunpack.c.l.b16 %v225
      %v440 = vunpack.c.h.b16 %v225
      %v441 = vunpack.c.l.b16 %v226
      %v442 = vunpack.c.h.b16 %v226
      %v443 = vunpack.c.l.b16 %v227
      %v444 = vunpack.c.h.b16 %v227
      %v445 = vunpack.c.l.b16 %v228
      %v446 = vunpack.c.h.b16 %v228
      %v447 = vunpack.c.l.b16 %v229
      %v448 = vunpack.c.h.b16 %v229
      %v449 = vunpack.c.l.b16 %v230
      %v450 = vunpack.c.h.b16 %v230
      %v451 = vunpack.c.l.b16 %v231
      %v452 = vunpack.c.h.b16 %v231
      %v453 = vunpack.c.l.b16 %v232
      %v454 = vunpack.c.h.b16 %v232
      %v455 = vunpack.c.l.b16 %v233
      %v456 = vunpack.c.h.b16 %v233
      %v457 = vunpack.c.l.b16 %v234
      %v458 = vunpack.c.h.b16 %v234
      %v459 = vunpack.c.l.b16 %v235
      %v460 = vunpack.c.h.b16 %v235
      %v461 = vunpack.c.l.b16 %v236
      %v462 = vunpack.c.h.b16 %v236
      %v463 = vunpack.c.l.b16 %v237
      %v464 = vunpack.c.h.b16 %v237
      %v465 = vunpack.c.l.b16 %v238
      %v466 = vunpack.c.h.b16 %v238
      %v467 = vunpack.c.l.b16 %v239
      %v468 = vunpack.c.h.b16 %v239
      %v469 = vunpack.c.l.b16 %v240
      %v470 = vunpack.c.h.b16 %v240
      %v471 = vunpack.c.l.b16 %v241
      %v472 = vunpack.c.h.b16 %v241
      %v473 = vpack.c.b16 %v347, %v345
      %v474 = vpack.c.b16 %v348, %v346
      %v475 = vpack.c.b16 %v351, %v349
      %v476 = vpack.c.b16 %v352, %v350
      %v477 = vpack.c.b16 %v355, %v353
      %v478 = vpack.c.b16 %v356, %v354
      %v479 = vpack.c.b16 %v359, %v357
      %v480 = vpack.c.b16 %v360, %v358
      %v481 = vpack.c.b16 %v363, %v361
      %v482 = vpack.c.b16 %v364, %v362
      %v483 = vpack.c.b16 %v367, %v365
      %v484 = vpack.c.b16 %v368, %v366
      %v485 = vpack.c.b16 %v371, %v369
      %v486 = vpack.c.b16 %v372, %v370
      %v487 = vpack.c.b16 %v375, %v373
      %v488 = vpack.c.b16 %v376, %v374
      %v489 = vpack.c.b16 %v379, %v377
      %v490 = vpack.c.b16 %v380, %v378
      %v491 = vpack.c.b16 %v383, %v381
      %v492 = vpack.c.b16 %v384, %v382
      %v493 = vpack.c.b16 %v387, %v385
      %v494 = vpack.c.b16 %v388, %v386
      %v495 = vpack.c.b16 %v391, %v389
      %v496 = vpack.c.b16 %v392, %v390
      %v497 = vpack.c.b16 %v395, %v393
      %v498 = vpack.c.b16 %v396, %v394
      %v499 = vpack.c.b16 %v399, %v397
      %v500 = vpack.c.b16 %v400, %v398
      %v501 = vpack.c.b16 %v403, %v401
      %v502 = vpack.c.b16 %v404, %v402
      %v503 = vpack.c.b16 %v407, %v405
      %v504 = vpack.c.b16 %v408, %v406
      %v505 = vpack.c.b16 %v411, %v409
      %v506 = vpack.c.b16 %v412, %v410
      %v507 = vpack.c.b16 %v415, %v413
      %v508 = vpack.c.b16 %v416, %v414
      %v509 = vpack.c.b16 %v419, %v417
      %v510 = vpack.c.b16 %v420, %v418
      %v511 = vpack.c.b16 %v423, %v421
      %v512 = vpack.c.b16 %v424, %v422
      %v513 = vpack.c.b16 %v427, %v425
      %v514 = vpack.c.b16 %v428, %v426
      %v515 = vpack.c.b16 %v431, %v429
      %v516 = vpack.c.b16 %v432, %v430
      %v517 = vpack.c.b16 %v435, %v433
      %v518 = vpack.c.b16 %v436, %v434
      %v519 = vpack.c.b16 %v439, %v437
      %v520 = vpack.c.b16 %v440, %v438
      %v521 = vpack.c.b16 %v443, %v441
      %v522 = vpack.c.b16 %v444, %v442
      %v523 = vpack.c.b16 %v447, %v445
      %v524 = vpack.c.b16 %v448, %v446
      %v525 = vpack.c.b16 %v451, %v449
      %v526 = vpack.c.b16 %v452, %v450
      %v527 = vpack.c.b16 %v455, %v453
      %v528 = vpack.c.b16 %v456, %v454
      %v529 = vpack.c.b16 %v459, %v457
      %v530 = vpack.c.b16 %v460, %v458
      %v531 = vpack.c.b16 %v463, %v461
      %v532 = vpack.c.b16 %v464, %v462
      %v533 = vpack.c.b16 %v467, %v465
      %v534 = vpack.c.b16 %v468, %v466
      %v535 = vpack.c.b16 %v471, %v469
      %v536 = vpack.c.b16 %v472, %v470
      %v633 = vunpack.c.l.b16 %v242
      %v634 = vunpack.c.l.b16 %v243
      %v635 = vunpack.c.l.b16 %v244
      %v636 = vunpack.c.l.b16 %v245
      %v637 = vunpack.c.l.b16 %v246
      %v638 = vunpack.c.l.b16 %v247
      %v639 = vunpack.c.l.b16 %v248
      %v640 = vunpack.c.l.b16 %v249
      %v641 = vunpack.c.l.b16 %v250
      %v642 = vunpack.c.l.b16 %v251
      %v643 = vunpack.c.l.b16 %v252
      %v644 = vunpack.c.l.b16 %v253
      %v645 = vunpack.c.l.b16 %v254
      %v646 = vunpack.c.l.b16 %v255
      %v647 = vunpack.c.l.b16 %v256
      %v648 = vunpack.c.l.b16 %v257
      %v649 = vunpack.c.l.b16 %v258
      %v650 = vunpack.c.l.b16 %v259
      %v651 = vunpack.c.l.b16 %v260
      %v652 = vunpack.c.l.b16 %v261
      %v653 = vunpack.c.l.b16 %v262
      %v654 = vunpack.c.l.b16 %v263
      %v655 = vunpack.c.l.b16 %v264
      %v656 = vunpack.c.l.b16 %v265
      %v657 = vunpack.c.l.b16 %v266
      %v658 = vunpack.c.l.b16 %v267
      %v659 = vunpack.c.l.b16 %v268
      %v660 = vunpack.c.l.b16 %v269
      %v661 = vunpack.c.l.b16 %v270
      %v662 = vunpack.c.l.b16 %v271
      %v663 = vunpack.c.l.b16 %v272
      %v664 = vunpack.c.l.b16 %v273
      %v665 = vpack.c.b16 %v634, %v633
      %v666 = vpack.c.b16 %v636, %v635
      %v667 = vpack.c.b16 %v638, %v637
      %v668 = vpack.c.b16 %v640, %v639
      %v669 = vpack.c.b16 %v642, %v641
      %v670 = vpack.c.b16 %v644, %v643
      %v671 = vpack.c.b16 %v646, %v645
      %v672 = vpack.c.b16 %v648, %v647
      %v673 = vpack.c.b16 %v650, %v649
      %v674 = vpack.c.b16 %v652, %v651
      %v675 = vpack.c.b16 %v654, %v653
      %v676 = vpack.c.b16 %v656, %v655
      %v677 = vpack.c.b16 %v658, %v657
      %v678 = vpack.c.b16 %v660, %v659
      %v679 = vpack.c.b16 %v662, %v661
      %v680 = vpack.c.b16 %v664, %v663
      %697 = vmatprep.subr.bf16.mxu0 0
      %698 = vmatpush1.bf16.msra.mxu0 %v665
      %699 = vmatprep.subr.bf16.mxu0 0
      %700 = vmatpush1.bf16.msra.mxu0 %v666
      %701 = vmatprep.subr.bf16.mxu0 0
      %702 = vmatpush1.bf16.msra.mxu0 %v667
      %703 = vmatprep.subr.bf16.mxu0 0
      %704 = vmatpush1.bf16.msra.mxu0 %v668
      %705 = vmatprep.subr.bf16.mxu0 0
      %706 = vmatpush1.bf16.msra.mxu0 %v669
      %707 = vmatprep.subr.bf16.mxu0 0
      %708 = vmatpush1.bf16.msra.mxu0 %v670
      %709 = vmatprep.subr.bf16.mxu0 0
      %710 = vmatpush1.bf16.msra.mxu0 %v671
      %711 = vmatprep.subr.bf16.mxu0 0
      %712 = vmatpush1.bf16.msra.mxu0 %v672
      %713 = vmatprep.subr.bf16.mxu0 0
      %714 = vmatpush1.bf16.msra.mxu0 %v673
      %715 = vmatprep.subr.bf16.mxu0 0
      %716 = vmatpush1.bf16.msra.mxu0 %v674
      %717 = vmatprep.subr.bf16.mxu0 0
      %718 = vmatpush1.bf16.msra.mxu0 %v675
      %719 = vmatprep.subr.bf16.mxu0 0
      %720 = vmatpush1.bf16.msra.mxu0 %v676
      %721 = vmatprep.subr.bf16.mxu0 0
      %722 = vmatpush1.bf16.msra.mxu0 %v677
      %723 = vmatprep.subr.bf16.mxu0 0
      %724 = vmatpush1.bf16.msra.mxu0 %v678
      %725 = vmatprep.subr.bf16.mxu0 0
      %726 = vmatpush1.bf16.msra.mxu0 %v679
      %727 = vmatprep.subr.bf16.mxu0 0
      %728 = vmatpush1.bf16.msra.mxu0 %v680
      %729 = vmatprep.mubr.bf16.mxu0 %v474
      %730 = vmatmul.mubr.bf16.gmra.mrb[0].mxu0 %v473
      %v731 = vpop.f32.mrb[0].mxu0
      %v732 = vadd.f32 %v279, %v731
      %v733 = vpop.f32.mrb[0].mxu0
      %v734 = vpop.f32.mrb[0].mxu0
      %v735 = vadd.f32 %v279, %v734
      %v736 = vpop.f32.mrb[0].mxu0
      %737 = vmatprep.mubr.bf16.mxu0 %v476
      %738 = vmatmul.mubr.bf16.gmra.mrb[0].mxu0 %v475
      %v739 = vpop.f32.mrb[0].mxu0
      %v740 = vadd.f32 %v279, %v739
      %v741 = vpop.f32.mrb[0].mxu0
      %v742 = vpop.f32.mrb[0].mxu0
      %v743 = vadd.f32 %v279, %v742
      %v744 = vpop.f32.mrb[0].mxu0
      %745 = vmatprep.mubr.bf16.mxu0 %v478
      %746 = vmatmul.mubr.bf16.gmra.mrb[0].mxu0 %v477
      %v747 = vpop.f32.mrb[0].mxu0
      %v748 = vadd.f32 %v279, %v747
      %v749 = vpop.f32.mrb[0].mxu0
      %v750 = vpop.f32.mrb[0].mxu0
      %v751 = vadd.f32 %v279, %v750
      %v752 = vpop.f32.mrb[0].mxu0
      %753 = vmatprep.mubr.bf16.mxu0 %v480
      %754 = vmatmul.mubr.bf16.gmra.mrb[0].mxu0 %v479
      %v755 = vpop.f32.mrb[0].mxu0
      %v756 = vadd.f32 %v279, %v755
      %v757 = vpop.f32.mrb[0].mxu0
      %v758 = vpop.f32.mrb[0].mxu0
      %v759 = vadd.f32 %v279, %v758
      %v760 = vpop.f32.mrb[0].mxu0
      %761 = vmatprep.mubr.bf16.mxu0 %v482
      %762 = vmatmul.mubr.bf16.gmra.mrb[0].mxu0 %v481
      %v763 = vpop.f32.mrb[0].mxu0
      %v764 = vadd.f32 %v279, %v763
      %v765 = vpop.f32.mrb[0].mxu0
      %v766 = vpop.f32.mrb[0].mxu0
      %v767 = vadd.f32 %v279, %v766
      %v768 = vpop.f32.mrb[0].mxu0
      %769 = vmatprep.mubr.bf16.mxu0 %v484
      %770 = vmatmul.mubr.bf16.gmra.mrb[0].mxu0 %v483
      %v771 = vpop.f32.mrb[0].mxu0
      %v772 = vadd.f32 %v279, %v771
      %v773 = vpop.f32.mrb[0].mxu0
      %v774 = vpop.f32.mrb[0].mxu0
      %v775 = vadd.f32 %v279, %v774
      %v776 = vpop.f32.mrb[0].mxu0
      %777 = vmatprep.mubr.bf16.mxu0 %v486
      %778 = vmatmul.mubr.bf16.gmra.mrb[0].mxu0 %v485
      %v779 = vpop.f32.mrb[0].mxu0
      %v780 = vadd.f32 %v279, %v779
      %v781 = vpop.f32.mrb[0].mxu0
      %v782 = vpop.f32.mrb[0].mxu0
      %v783 = vadd.f32 %v279, %v782
      %v784 = vpop.f32.mrb[0].mxu0
      %785 = vmatprep.mubr.bf16.mxu0 %v488
      %786 = vmatmul.mubr.bf16.gmra.mrb[0].mxu0 %v487
      %v787 = vpop.f32.mrb[0].mxu0
      %v788 = vadd.f32 %v279, %v787
      %v789 = vpop.f32.mrb[0].mxu0
      %v790 = vpop.f32.mrb[0].mxu0
      %v791 = vadd.f32 %v279, %v790
      %v792 = vpop.f32.mrb[0].mxu0
      %793 = vmatprep.mubr.bf16.mxu0 %v490
      %794 = vmatmul.mubr.bf16.gmra.mrb[0].mxu0 %v489
      %v795 = vpop.f32.mrb[0].mxu0
      %v796 = vadd.f32 %v279, %v795
      %v797 = vpop.f32.mrb[0].mxu0
      %v798 = vpop.f32.mrb[0].mxu0
      %v799 = vadd.f32 %v279, %v798
      %v800 = vpop.f32.mrb[0].mxu0
      %801 = vmatprep.mubr.bf16.mxu0 %v492
      %802 = vmatmul.mubr.bf16.gmra.mrb[0].mxu0 %v491
      %v803 = vpop.f32.mrb[0].mxu0
      %v804 = vadd.f32 %v279, %v803
      %v805 = vpop.f32.mrb[0].mxu0
      %v806 = vpop.f32.mrb[0].mxu0
      %v807 = vadd.f32 %v279, %v806
      %v808 = vpop.f32.mrb[0].mxu0
      %809 = vmatprep.mubr.bf16.mxu0 %v494
      %810 = vmatmul.mubr.bf16.gmra.mrb[0].mxu0 %v493
      %v811 = vpop.f32.mrb[0].mxu0
      %v812 = vadd.f32 %v279, %v811
      %v813 = vpop.f32.mrb[0].mxu0
      %v814 = vpop.f32.mrb[0].mxu0
      %v815 = vadd.f32 %v279, %v814
      %v816 = vpop.f32.mrb[0].mxu0
      %817 = vmatprep.mubr.bf16.mxu0 %v496
      %818 = vmatmul.mubr.bf16.gmra.mrb[0].mxu0 %v495
      %v819 = vpop.f32.mrb[0].mxu0
      %v820 = vadd.f32 %v279, %v819
      %v821 = vpop.f32.mrb[0].mxu0
      %v822 = vpop.f32.mrb[0].mxu0
      %v823 = vadd.f32 %v279, %v822
      %v824 = vpop.f32.mrb[0].mxu0
      %825 = vmatprep.mubr.bf16.mxu0 %v498
      %826 = vmatmul.mubr.bf16.gmra.mrb[0].mxu0 %v497
      %v827 = vpop.f32.mrb[0].mxu0
      %v828 = vadd.f32 %v279, %v827
      %v829 = vpop.f32.mrb[0].mxu0
      %v830 = vpop.f32.mrb[0].mxu0
      %v831 = vadd.f32 %v279, %v830
      %v832 = vpop.f32.mrb[0].mxu0
      %833 = vmatprep.mubr.bf16.mxu0 %v500
      %834 = vmatmul.mubr.bf16.gmra.mrb[0].mxu0 %v499
      %v835 = vpop.f32.mrb[0].mxu0
      %v836 = vadd.f32 %v279, %v835
      %v837 = vpop.f32.mrb[0].mxu0
      %v838 = vpop.f32.mrb[0].mxu0
      %v839 = vadd.f32 %v279, %v838
      %v840 = vpop.f32.mrb[0].mxu0
      %841 = vmatprep.mubr.bf16.mxu0 %v502
      %842 = vmatmul.mubr.bf16.gmra.mrb[0].mxu0 %v501
      %v843 = vpop.f32.mrb[0].mxu0
      %v844 = vadd.f32 %v279, %v843
      %v845 = vpop.f32.mrb[0].mxu0
      %v846 = vpop.f32.mrb[0].mxu0
      %v847 = vadd.f32 %v279, %v846
      %v848 = vpop.f32.mrb[0].mxu0
      %849 = vmatprep.mubr.bf16.mxu0 %v504
      %850 = vmatmul.mubr.bf16.gmra.mrb[0].mxu0 %v503
      %v851 = vpop.f32.mrb[0].mxu0
      %v852 = vadd.f32 %v279, %v851
      %v853 = vpop.f32.mrb[0].mxu0
      %v854 = vpop.f32.mrb[0].mxu0
      %v855 = vadd.f32 %v279, %v854
      %v856 = vpop.f32.mrb[0].mxu0
      %857 = vmatprep.mubr.bf16.mxu0 %v506
      %858 = vmatmul.mubr.bf16.gmra.mrb[0].mxu0 %v505
      %v859 = vpop.f32.mrb[0].mxu0
      %v860 = vadd.f32 %v279, %v859
      %v861 = vpop.f32.mrb[0].mxu0
      %v862 = vpop.f32.mrb[0].mxu0
      %v863 = vadd.f32 %v279, %v862
      %v864 = vpop.f32.mrb[0].mxu0
      %865 = vmatprep.mubr.bf16.mxu0 %v508
      %866 = vmatmul.mubr.bf16.gmra.mrb[0].mxu0 %v507
      %v867 = vpop.f32.mrb[0].mxu0
      %v868 = vadd.f32 %v279, %v867
      %v869 = vpop.f32.mrb[0].mxu0
      %v870 = vpop.f32.mrb[0].mxu0
      %v871 = vadd.f32 %v279, %v870
      %v872 = vpop.f32.mrb[0].mxu0
      %873 = vmatprep.mubr.bf16.mxu0 %v510
      %874 = vmatmul.mubr.bf16.gmra.mrb[0].mxu0 %v509
      %v875 = vpop.f32.mrb[0].mxu0
      %v876 = vadd.f32 %v279, %v875
      %v877 = vpop.f32.mrb[0].mxu0
      %v878 = vpop.f32.mrb[0].mxu0
      %v879 = vadd.f32 %v279, %v878
      %v880 = vpop.f32.mrb[0].mxu0
      %881 = vmatprep.mubr.bf16.mxu0 %v512
      %882 = vmatmul.mubr.bf16.gmra.mrb[0].mxu0 %v511
      %v883 = vpop.f32.mrb[0].mxu0
      %v884 = vadd.f32 %v279, %v883
      %v885 = vpop.f32.mrb[0].mxu0
      %v886 = vpop.f32.mrb[0].mxu0
      %v887 = vadd.f32 %v279, %v886
      %v888 = vpop.f32.mrb[0].mxu0
      %889 = vmatprep.mubr.bf16.mxu0 %v514
      %890 = vmatmul.mubr.bf16.gmra.mrb[0].mxu0 %v513
      %v891 = vpop.f32.mrb[0].mxu0
      %v892 = vadd.f32 %v279, %v891
      %v893 = vpop.f32.mrb[0].mxu0
      %v894 = vpop.f32.mrb[0].mxu0
      %v895 = vadd.f32 %v279, %v894
      %v896 = vpop.f32.mrb[0].mxu0
      %897 = vmatprep.mubr.bf16.mxu0 %v516
      %898 = vmatmul.mubr.bf16.gmra.mrb[0].mxu0 %v515
      %v899 = vpop.f32.mrb[0].mxu0
      %v900 = vadd.f32 %v279, %v899
      %v901 = vpop.f32.mrb[0].mxu0
      %v902 = vpop.f32.mrb[0].mxu0
      %v903 = vadd.f32 %v279, %v902
      %v904 = vpop.f32.mrb[0].mxu0
      %905 = vmatprep.mubr.bf16.mxu0 %v518
      %906 = vmatmul.mubr.bf16.gmra.mrb[0].mxu0 %v517
      %v907 = vpop.f32.mrb[0].mxu0
      %v908 = vadd.f32 %v279, %v907
      %v909 = vpop.f32.mrb[0].mxu0
      %v910 = vpop.f32.mrb[0].mxu0
      %v911 = vadd.f32 %v279, %v910
      %v912 = vpop.f32.mrb[0].mxu0
      %913 = vmatprep.mubr.bf16.mxu0 %v520
      %914 = vmatmul.mubr.bf16.gmra.mrb[0].mxu0 %v519
      %v915 = vpop.f32.mrb[0].mxu0
      %v916 = vadd.f32 %v279, %v915
      %v917 = vpop.f32.mrb[0].mxu0
      %v918 = vpop.f32.mrb[0].mxu0
      %v919 = vadd.f32 %v279, %v918
      %v920 = vpop.f32.mrb[0].mxu0
      %921 = vmatprep.mubr.bf16.mxu0 %v522
      %922 = vmatmul.mubr.bf16.gmra.mrb[0].mxu0 %v521
      %v923 = vpop.f32.mrb[0].mxu0
      %v924 = vadd.f32 %v279, %v923
      %v925 = vpop.f32.mrb[0].mxu0
      %v926 = vpop.f32.mrb[0].mxu0
      %v927 = vadd.f32 %v279, %v926
      %v928 = vpop.f32.mrb[0].mxu0
      %929 = vmatprep.mubr.bf16.mxu0 %v524
      %930 = vmatmul.mubr.bf16.gmra.mrb[0].mxu0 %v523
      %v931 = vpop.f32.mrb[0].mxu0
      %v932 = vadd.f32 %v279, %v931
      %v933 = vpop.f32.mrb[0].mxu0
      %v934 = vpop.f32.mrb[0].mxu0
      %v935 = vadd.f32 %v279, %v934
      %v936 = vpop.f32.mrb[0].mxu0
      %937 = vmatprep.mubr.bf16.mxu0 %v526
      %938 = vmatmul.mubr.bf16.gmra.mrb[0].mxu0 %v525
      %v939 = vpop.f32.mrb[0].mxu0
      %v940 = vadd.f32 %v279, %v939
      %v941 = vpop.f32.mrb[0].mxu0
      %v942 = vpop.f32.mrb[0].mxu0
      %v943 = vadd.f32 %v279, %v942
      %v944 = vpop.f32.mrb[0].mxu0
      %945 = vmatprep.mubr.bf16.mxu0 %v528
      %946 = vmatmul.mubr.bf16.gmra.mrb[0].mxu0 %v527
      %v947 = vpop.f32.mrb[0].mxu0
      %v948 = vadd.f32 %v279, %v947
      %v949 = vpop.f32.mrb[0].mxu0
      %v950 = vpop.f32.mrb[0].mxu0
      %v951 = vadd.f32 %v279, %v950
      %v952 = vpop.f32.mrb[0].mxu0
      %953 = vmatprep.mubr.bf16.mxu0 %v530
      %954 = vmatmul.mubr.bf16.gmra.mrb[0].mxu0 %v529
      %v955 = vpop.f32.mrb[0].mxu0
      %v956 = vadd.f32 %v279, %v955
      %v957 = vpop.f32.mrb[0].mxu0
      %v958 = vpop.f32.mrb[0].mxu0
      %v959 = vadd.f32 %v279, %v958
      %v960 = vpop.f32.mrb[0].mxu0
      %961 = vmatprep.mubr.bf16.mxu0 %v532
      %962 = vmatmul.mubr.bf16.gmra.mrb[0].mxu0 %v531
      %v963 = vpop.f32.mrb[0].mxu0
      %v964 = vadd.f32 %v279, %v963
      %v965 = vpop.f32.mrb[0].mxu0
      %v966 = vpop.f32.mrb[0].mxu0
      %v967 = vadd.f32 %v279, %v966
      %v968 = vpop.f32.mrb[0].mxu0
      %969 = vmatprep.mubr.bf16.mxu0 %v534
      %970 = vmatmul.mubr.bf16.gmra.mrb[0].mxu0 %v533
      %v971 = vpop.f32.mrb[0].mxu0
      %v972 = vadd.f32 %v279, %v971
      %v973 = vpop.f32.mrb[0].mxu0
      %v974 = vpop.f32.mrb[0].mxu0
      %v975 = vadd.f32 %v279, %v974
      %v976 = vpop.f32.mrb[0].mxu0
      %977 = vmatprep.mubr.bf16.mxu0 %v536
      %978 = vmatmul.mubr.bf16.gmra.mrb[0].mxu0 %v535
      %v979 = vpop.f32.mrb[0].mxu0
      %v980 = vadd.f32 %v279, %v979
      %v981 = vpop.f32.mrb[0].mxu0
      %v982 = vpop.f32.mrb[0].mxu0
      %v983 = vadd.f32 %v279, %v982
      %v984 = vpop.f32.mrb[0].mxu0
      %985 = vdwg.mxu0
      %v986 = vmax.f32 %v732, 0.0
      %v987 = vmax.f32 %v735, 0.0
      %v988 = vmax.f32 %v740, 0.0
      %v989 = vmax.f32 %v743, 0.0
      %v990 = vmax.f32 %v748, 0.0
      %v991 = vmax.f32 %v751, 0.0
      %v992 = vmax.f32 %v756, 0.0
      %v993 = vmax.f32 %v759, 0.0
      %v994 = vmax.f32 %v764, 0.0
      %v995 = vmax.f32 %v767, 0.0
      %v996 = vmax.f32 %v772, 0.0
      %v997 = vmax.f32 %v775, 0.0
      %v998 = vmax.f32 %v780, 0.0
      %v999 = vmax.f32 %v783, 0.0
      %v1000 = vmax.f32 %v788, 0.0
      %v1001 = vmax.f32 %v791, 0.0
      %v1002 = vmax.f32 %v796, 0.0
      %v1003 = vmax.f32 %v799, 0.0
      %v1004 = vmax.f32 %v804, 0.0
      %v1005 = vmax.f32 %v807, 0.0
      %v1006 = vmax.f32 %v812, 0.0
      %v1007 = vmax.f32 %v815, 0.0
      %v1008 = vmax.f32 %v820, 0.0
      %v1009 = vmax.f32 %v823, 0.0
      %v1010 = vmax.f32 %v828, 0.0
      %v1011 = vmax.f32 %v831, 0.0
      %v1012 = vmax.f32 %v836, 0.0
      %v1013 = vmax.f32 %v839, 0.0
      %v1014 = vmax.f32 %v844, 0.0
      %v1015 = vmax.f32 %v847, 0.0
      %v1016 = vmax.f32 %v852, 0.0
      %v1017 = vmax.f32 %v855, 0.0
      %v1018 = vmax.f32 %v860, 0.0
      %v1019 = vmax.f32 %v863, 0.0
      %v1020 = vmax.f32 %v868, 0.0
      %v1021 = vmax.f32 %v871, 0.0
      %v1022 = vmax.f32 %v876, 0.0
      %v1023 = vmax.f32 %v879, 0.0
      %v1024 = vmax.f32 %v884, 0.0
      %v1025 = vmax.f32 %v887, 0.0
      %v1026 = vmax.f32 %v892, 0.0
      %v1027 = vmax.f32 %v895, 0.0
      %v1028 = vmax.f32 %v900, 0.0
      %v1029 = vmax.f32 %v903, 0.0
      %v1030 = vmax.f32 %v908, 0.0
      %v1031 = vmax.f32 %v911, 0.0
      %v1032 = vmax.f32 %v916, 0.0
      %v1033 = vmax.f32 %v919, 0.0
      %v1034 = vmax.f32 %v924, 0.0
      %v1035 = vmax.f32 %v927, 0.0
      %v1036 = vmax.f32 %v932, 0.0
      %v1037 = vmax.f32 %v935, 0.0
      %v1038 = vmax.f32 %v940, 0.0
      %v1039 = vmax.f32 %v943, 0.0
      %v1040 = vmax.f32 %v948, 0.0
      %v1041 = vmax.f32 %v951, 0.0
      %v1042 = vmax.f32 %v956, 0.0
      %v1043 = vmax.f32 %v959, 0.0
      %v1044 = vmax.f32 %v964, 0.0
      %v1045 = vmax.f32 %v967, 0.0
      %v1046 = vmax.f32 %v972, 0.0
      %v1047 = vmax.f32 %v975, 0.0
      %v1048 = vmax.f32 %v980, 0.0
      %v1049 = vmax.f32 %v983, 0.0
      %v1050 = vpack.c.bf16 %v987, %v986
      %v1051 = vpack.c.bf16 %v989, %v988
      %v1052 = vpack.c.bf16 %v991, %v990
      %v1053 = vpack.c.bf16 %v993, %v992
      %v1054 = vpack.c.bf16 %v995, %v994
      %v1055 = vpack.c.bf16 %v997, %v996
      %v1056 = vpack.c.bf16 %v999, %v998
      %v1057 = vpack.c.bf16 %v1001, %v1000
      %v1058 = vpack.c.bf16 %v1003, %v1002
      %v1059 = vpack.c.bf16 %v1005, %v1004
      %v1060 = vpack.c.bf16 %v1007, %v1006
      %v1061 = vpack.c.bf16 %v1009, %v1008
      %v1062 = vpack.c.bf16 %v1011, %v1010
      %v1063 = vpack.c.bf16 %v1013, %v1012
      %v1064 = vpack.c.bf16 %v1015, %v1014
      %v1065 = vpack.c.bf16 %v1017, %v1016
      %v1066 = vpack.c.bf16 %v1019, %v1018
      %v1067 = vpack.c.bf16 %v1021, %v1020
      %v1068 = vpack.c.bf16 %v1023, %v1022
      %v1069 = vpack.c.bf16 %v1025, %v1024
      %v1070 = vpack.c.bf16 %v1027, %v1026
      %v1071 = vpack.c.bf16 %v1029, %v1028
      %v1072 = vpack.c.bf16 %v1031, %v1030
      %v1073 = vpack.c.bf16 %v1033, %v1032
      %v1074 = vpack.c.bf16 %v1035, %v1034
      %v1075 = vpack.c.bf16 %v1037, %v1036
      %v1076 = vpack.c.bf16 %v1039, %v1038
      %v1077 = vpack.c.bf16 %v1041, %v1040
      %v1078 = vpack.c.bf16 %v1043, %v1042
      %v1079 = vpack.c.bf16 %v1045, %v1044
      %v1080 = vpack.c.bf16 %v1047, %v1046
      %v1081 = vpack.c.bf16 %v1049, %v1048
      %v1114 = vunpack.c.l.b16 %v1050
      %v1115 = vunpack.c.h.b16 %v1050
      %v1116 = vunpack.c.l.b16 %v1051
      %v1117 = vunpack.c.h.b16 %v1051
      %v1118 = vunpack.c.l.b16 %v1052
      %v1119 = vunpack.c.h.b16 %v1052
      %v1120 = vunpack.c.l.b16 %v1053
      %v1121 = vunpack.c.h.b16 %v1053
      %v1122 = vunpack.c.l.b16 %v1054
      %v1123 = vunpack.c.h.b16 %v1054
      %v1124 = vunpack.c.l.b16 %v1055
      %v1125 = vunpack.c.h.b16 %v1055
      %v1126 = vunpack.c.l.b16 %v1056
      %v1127 = vunpack.c.h.b16 %v1056
      %v1128 = vunpack.c.l.b16 %v1057
      %v1129 = vunpack.c.h.b16 %v1057
      %v1130 = vunpack.c.l.b16 %v1058
      %v1131 = vunpack.c.h.b16 %v1058
      %v1132 = vunpack.c.l.b16 %v1059
      %v1133 = vunpack.c.h.b16 %v1059
      %v1134 = vunpack.c.l.b16 %v1060
      %v1135 = vunpack.c.h.b16 %v1060
      %v1136 = vunpack.c.l.b16 %v1061
      %v1137 = vunpack.c.h.b16 %v1061
      %v1138 = vunpack.c.l.b16 %v1062
      %v1139 = vunpack.c.h.b16 %v1062
      %v1140 = vunpack.c.l.b16 %v1063
      %v1141 = vunpack.c.h.b16 %v1063
      %v1142 = vunpack.c.l.b16 %v1064
      %v1143 = vunpack.c.h.b16 %v1064
      %v1144 = vunpack.c.l.b16 %v1065
      %v1145 = vunpack.c.h.b16 %v1065
      %v1146 = vunpack.c.l.b16 %v1066
      %v1147 = vunpack.c.h.b16 %v1066
      %v1148 = vunpack.c.l.b16 %v1067
      %v1149 = vunpack.c.h.b16 %v1067
      %v1150 = vunpack.c.l.b16 %v1068
      %v1151 = vunpack.c.h.b16 %v1068
      %v1152 = vunpack.c.l.b16 %v1069
      %v1153 = vunpack.c.h.b16 %v1069
      %v1154 = vunpack.c.l.b16 %v1070
      %v1155 = vunpack.c.h.b16 %v1070
      %v1156 = vunpack.c.l.b16 %v1071
      %v1157 = vunpack.c.h.b16 %v1071
      %v1158 = vunpack.c.l.b16 %v1072
      %v1159 = vunpack.c.h.b16 %v1072
      %v1160 = vunpack.c.l.b16 %v1073
      %v1161 = vunpack.c.h.b16 %v1073
      %v1162 = vunpack.c.l.b16 %v1074
      %v1163 = vunpack.c.h.b16 %v1074
      %v1164 = vunpack.c.l.b16 %v1075
      %v1165 = vunpack.c.h.b16 %v1075
      %v1166 = vunpack.c.l.b16 %v1076
      %v1167 = vunpack.c.h.b16 %v1076
      %v1168 = vunpack.c.l.b16 %v1077
      %v1169 = vunpack.c.h.b16 %v1077
      %v1170 = vunpack.c.l.b16 %v1078
      %v1171 = vunpack.c.h.b16 %v1078
      %v1172 = vunpack.c.l.b16 %v1079
      %v1173 = vunpack.c.h.b16 %v1079
      %v1174 = vunpack.c.l.b16 %v1080
      %v1175 = vunpack.c.h.b16 %v1080
      %v1176 = vunpack.c.l.b16 %v1081
      %v1177 = vunpack.c.h.b16 %v1081
      %v1178 = vpack.c.b16 %v1114, %v1114
      %v1179 = vpack.c.b16 %v1115, %v1115
      %v1180 = vpack.c.b16 %v1116, %v1116
      %v1181 = vpack.c.b16 %v1117, %v1117
      %v1182 = vpack.c.b16 %v1118, %v1118
      %v1183 = vpack.c.b16 %v1119, %v1119
      %v1184 = vpack.c.b16 %v1120, %v1120
      %v1185 = vpack.c.b16 %v1121, %v1121
      %v1186 = vpack.c.b16 %v1122, %v1122
      %v1187 = vpack.c.b16 %v1123, %v1123
      %v1188 = vpack.c.b16 %v1124, %v1124
      %v1189 = vpack.c.b16 %v1125, %v1125
      %v1190 = vpack.c.b16 %v1126, %v1126
      %v1191 = vpack.c.b16 %v1127, %v1127
      %v1192 = vpack.c.b16 %v1128, %v1128
      %v1193 = vpack.c.b16 %v1129, %v1129
      %v1194 = vpack.c.b16 %v1130, %v1130
      %v1195 = vpack.c.b16 %v1131, %v1131
      %v1196 = vpack.c.b16 %v1132, %v1132
      %v1197 = vpack.c.b16 %v1133, %v1133
      %v1198 = vpack.c.b16 %v1134, %v1134
      %v1199 = vpack.c.b16 %v1135, %v1135
      %v1200 = vpack.c.b16 %v1136, %v1136
      %v1201 = vpack.c.b16 %v1137, %v1137
      %v1202 = vpack.c.b16 %v1138, %v1138
      %v1203 = vpack.c.b16 %v1139, %v1139
      %v1204 = vpack.c.b16 %v1140, %v1140
      %v1205 = vpack.c.b16 %v1141, %v1141
      %v1206 = vpack.c.b16 %v1142, %v1142
      %v1207 = vpack.c.b16 %v1143, %v1143
      %v1208 = vpack.c.b16 %v1144, %v1144
      %v1209 = vpack.c.b16 %v1145, %v1145
      %v1210 = vpack.c.b16 %v1146, %v1146
      %v1211 = vpack.c.b16 %v1147, %v1147
      %v1212 = vpack.c.b16 %v1148, %v1148
      %v1213 = vpack.c.b16 %v1149, %v1149
      %v1214 = vpack.c.b16 %v1150, %v1150
      %v1215 = vpack.c.b16 %v1151, %v1151
      %v1216 = vpack.c.b16 %v1152, %v1152
      %v1217 = vpack.c.b16 %v1153, %v1153
      %v1218 = vpack.c.b16 %v1154, %v1154
      %v1219 = vpack.c.b16 %v1155, %v1155
      %v1220 = vpack.c.b16 %v1156, %v1156
      %v1221 = vpack.c.b16 %v1157, %v1157
      %v1222 = vpack.c.b16 %v1158, %v1158
      %v1223 = vpack.c.b16 %v1159, %v1159
      %v1224 = vpack.c.b16 %v1160, %v1160
      %v1225 = vpack.c.b16 %v1161, %v1161
      %v1226 = vpack.c.b16 %v1162, %v1162
      %v1227 = vpack.c.b16 %v1163, %v1163
      %v1228 = vpack.c.b16 %v1164, %v1164
      %v1229 = vpack.c.b16 %v1165, %v1165
      %v1230 = vpack.c.b16 %v1166, %v1166
      %v1231 = vpack.c.b16 %v1167, %v1167
      %v1232 = vpack.c.b16 %v1168, %v1168
      %v1233 = vpack.c.b16 %v1169, %v1169
      %v1234 = vpack.c.b16 %v1170, %v1170
      %v1235 = vpack.c.b16 %v1171, %v1171
      %v1236 = vpack.c.b16 %v1172, %v1172
      %v1237 = vpack.c.b16 %v1173, %v1173
      %v1238 = vpack.c.b16 %v1174, %v1174
      %v1239 = vpack.c.b16 %v1175, %v1175
      %v1240 = vpack.c.b16 %v1176, %v1176
      %v1241 = vpack.c.b16 %v1177, %v1177
      %vm1306 = vcmask 519168
      %1307 = vst.msk [vmem:[%s175] sm:$0xf] %vm1306, %v1178
      %1308 = vst.msk [vmem:[%s175 + $0x4] sm:$0xf] %vm1306, %v1179
      %1309 = vst.msk [vmem:[%s175 + $0x8] sm:$0xf] %vm1306, %v1180
      %1310 = vst.msk [vmem:[%s175 + $0xc] sm:$0xf] %vm1306, %v1181
      %1311 = vst.msk [vmem:[%s175 + $0x10] sm:$0xf] %vm1306, %v1182
      %1312 = vst.msk [vmem:[%s175 + $0x14] sm:$0xf] %vm1306, %v1183
      %1313 = vst.msk [vmem:[%s175 + $0x18] sm:$0xf] %vm1306, %v1184
      %1314 = vst.msk [vmem:[%s175 + $0x1c] sm:$0xf] %vm1306, %v1185
      %1315 = vst.msk [vmem:[%s175 + $0x20] sm:$0xf] %vm1306, %v1186
      %1316 = vst.msk [vmem:[%s175 + $0x24] sm:$0xf] %vm1306, %v1187
      %1317 = vst.msk [vmem:[%s175 + $0x28] sm:$0xf] %vm1306, %v1188
      %1318 = vst.msk [vmem:[%s175 + $0x2c] sm:$0xf] %vm1306, %v1189
      %1319 = vst.msk [vmem:[%s175 + $0x30] sm:$0xf] %vm1306, %v1190
      %1320 = vst.msk [vmem:[%s175 + $0x34] sm:$0xf] %vm1306, %v1191
      %1321 = vst.msk [vmem:[%s175 + $0x38] sm:$0xf] %vm1306, %v1192
      %1322 = vst.msk [vmem:[%s175 + $0x3c] sm:$0xf] %vm1306, %v1193
      %1323 = vst.msk [vmem:[%s175 + $0x40] sm:$0xf] %vm1306, %v1194
      %1324 = vst.msk [vmem:[%s175 + $0x44] sm:$0xf] %vm1306, %v1195
      %1325 = vst.msk [vmem:[%s175 + $0x48] sm:$0xf] %vm1306, %v1196
      %1326 = vst.msk [vmem:[%s175 + $0x4c] sm:$0xf] %vm1306, %v1197
      %1327 = vst.msk [vmem:[%s175 + $0x50] sm:$0xf] %vm1306, %v1198
      %1328 = vst.msk [vmem:[%s175 + $0x54] sm:$0xf] %vm1306, %v1199
      %1329 = vst.msk [vmem:[%s175 + $0x58] sm:$0xf] %vm1306, %v1200
      %1330 = vst.msk [vmem:[%s175 + $0x5c] sm:$0xf] %vm1306, %v1201
      %1331 = vst.msk [vmem:[%s175 + $0x60] sm:$0xf] %vm1306, %v1202
      %1332 = vst.msk [vmem:[%s175 + $0x64] sm:$0xf] %vm1306, %v1203
      %1333 = vst.msk [vmem:[%s175 + $0x68] sm:$0xf] %vm1306, %v1204
      %1334 = vst.msk [vmem:[%s175 + $0x6c] sm:$0xf] %vm1306, %v1205
      %1335 = vst.msk [vmem:[%s175 + $0x70] sm:$0xf] %vm1306, %v1206
      %1336 = vst.msk [vmem:[%s175 + $0x74] sm:$0xf] %vm1306, %v1207
      %1337 = vst.msk [vmem:[%s175 + $0x78] sm:$0xf] %vm1306, %v1208
      %1338 = vst.msk [vmem:[%s175 + $0x7c] sm:$0xf] %vm1306, %v1209
      %1339 = vst.msk [vmem:[%s175 + $0x80] sm:$0xf] %vm1306, %v1210
      %1340 = vst.msk [vmem:[%s175 + $0x84] sm:$0xf] %vm1306, %v1211
      %1341 = vst.msk [vmem:[%s175 + $0x88] sm:$0xf] %vm1306, %v1212
      %1342 = vst.msk [vmem:[%s175 + $0x8c] sm:$0xf] %vm1306, %v1213
      %1343 = vst.msk [vmem:[%s175 + $0x90] sm:$0xf] %vm1306, %v1214
      %1344 = vst.msk [vmem:[%s175 + $0x94] sm:$0xf] %vm1306, %v1215
      %1345 = vst.msk [vmem:[%s175 + $0x98] sm:$0xf] %vm1306, %v1216
      %1346 = vst.msk [vmem:[%s175 + $0x9c] sm:$0xf] %vm1306, %v1217
      %1347 = vst.msk [vmem:[%s175 + $0xa0] sm:$0xf] %vm1306, %v1218
      %1348 = vst.msk [vmem:[%s175 + $0xa4] sm:$0xf] %vm1306, %v1219
      %1349 = vst.msk [vmem:[%s175 + $0xa8] sm:$0xf] %vm1306, %v1220
      %1350 = vst.msk [vmem:[%s175 + $0xac] sm:$0xf] %vm1306, %v1221
      %1351 = vst.msk [vmem:[%s175 + $0xb0] sm:$0xf] %vm1306, %v1222
      %1352 = vst.msk [vmem:[%s175 + $0xb4] sm:$0xf] %vm1306, %v1223
      %1353 = vst.msk [vmem:[%s175 + $0xb8] sm:$0xf] %vm1306, %v1224
      %1354 = vst.msk [vmem:[%s175 + $0xbc] sm:$0xf] %vm1306, %v1225
      %1355 = vst.msk [vmem:[%s175 + $0xc0] sm:$0xf] %vm1306, %v1226
      %1356 = vst.msk [vmem:[%s175 + $0xc4] sm:$0xf] %vm1306, %v1227
      %1357 = vst.msk [vmem:[%s175 + $0xc8] sm:$0xf] %vm1306, %v1228
      %1358 = vst.msk [vmem:[%s175 + $0xcc] sm:$0xf] %vm1306, %v1229
      %1359 = vst.msk [vmem:[%s175 + $0xd0] sm:$0xf] %vm1306, %v1230
      %1360 = vst.msk [vmem:[%s175 + $0xd4] sm:$0xf] %vm1306, %v1231
      %1361 = vst.msk [vmem:[%s175 + $0xd8] sm:$0xf] %vm1306, %v1232
      %1362 = vst.msk [vmem:[%s175 + $0xdc] sm:$0xf] %vm1306, %v1233
      %1363 = vst.msk [vmem:[%s175 + $0xe0] sm:$0xf] %vm1306, %v1234
      %1364 = vst.msk [vmem:[%s175 + $0xe4] sm:$0xf] %vm1306, %v1235
      %1365 = vst.msk [vmem:[%s175 + $0xe8] sm:$0xf] %vm1306, %v1236
      %1366 = vst.msk [vmem:[%s175 + $0xec] sm:$0xf] %vm1306, %v1237
      %1367 = vst.msk [vmem:[%s175 + $0xf0] sm:$0xf] %vm1306, %v1238
      %1368 = vst.msk [vmem:[%s175 + $0xf4] sm:$0xf] %vm1306, %v1239
      %1369 = vst.msk [vmem:[%s175 + $0xf8] sm:$0xf] %vm1306, %v1240
      %1370 = vst.msk [vmem:[%s175 + $0xfc] sm:$0xf] %vm1306, %v1241
      %s1371 = smul.u32 64, %s14
      %p1372 = scmp.lt.s32.totalorder %s1371, 127
      %s1373 = scalar_select %p1372, %s1371, 127
      %s1374 = smul.addr %s1373, 4
      %s1375 = scalar_lea.vmem %s3, %s1374
      // Predicated region
      $region33: #{actor_forward.3} parent=31 // pred_check
        %p1376 = pneg %p100
      $region34: #{actor_forward.3} parent=31 // pred_check_branch
        %1378 = sbr.rel (%p1376) target = $region36
      $region35: #{actor_forward.3} parent=31 // pred_region
        %s1379 = smul.u32 64, %s14
      $region36: #{actor_forward.3} parent=31 // pred_fallthru
        _
    $region32: #{actor_forward.3} parent=5 // pred_fallthru
      _
    %p1380 = scmp.le.s32.totalorder 2, %s9
    // Predicated region
    $region37: #{actor_forward.3} parent=5 // pred_check
      %p1381 = pneg %p1380
    $region38: #{actor_forward.3} parent=5 // pred_check_branch
      %1383 = sbr.rel (%p1381) target = $region40
    $region39: #{actor_forward.3} parent=5 // pred_region
      %s1384 = ssub.s32 %s9, 2
      // Predicated region
      $region41: #{actor_forward.3} parent=39 // pred_check
        %p1385 = pneg %p106
      $region42: #{actor_forward.3} parent=39 // pred_check_branch
        %1387 = sbr.rel (%p1385) target = $region44
      $region43: #{actor_forward.3} parent=39 // pred_region
        %s1388 = smul.u32 64, %s15
        %p1389 = scmp.lt.s32.totalorder %s1388, 127
        %s1390 = scalar_select %p1389, %s1388, 127
        %s1391 = smul.addr %s1390, 4
        %s1392 = scalar_lea.vmem %s3, %s1391
      $region44: #{actor_forward.3} parent=39 // pred_fallthru
        _
    $region40: #{actor_forward.3} parent=5 // pred_fallthru
      _
  $region6: #{actor_forward.3} parent=0 // loop_footer
    %s13 = sadd.s32 1, %s9
  $region7: #{actor_forward.3} parent=0 // loop_footer_branch
    %8 = sbr.rel target = $region3
  $region8: #{actor_forward.3} parent=0 // loop_exit
    _

// kernel: actor_forward.4
$region0: #{actor_forward.4}
  #allocation0 [shape = 'u32[]', space=smem, size = 0x4, offset = 0x4, fixed_abs, tag = 'smem constant byte address 0x4 - core index']
  #allocation1 [shape = 'u32[144,128]{1,0:T(1,128)}', space=vmem, size = 0x12000, scoped, tag = 'internal scratch']
  %s0 = inlined_call_operand.vmem [shape: bf16[64,1024], index: 0, kind: input, shape index: {}]
  %s1 = inlined_call_operand.vmem [shape: bf16[1024,128], index: 1, kind: input, shape index: {}]
  %s2 = inlined_call_operand.vmem [shape: f32[1,128], index: 2, kind: input, shape index: {}]
  %s3 = inlined_call_operand.vmem [shape: bf16[64,128], index: 3, kind: output, shape index: {}]
  %s4 = sld [smem:[#allocation0]]
  $region45: #{actor_forward.4} parent=0
    _
  %s6 = ssub.s32 1, %s4
  %s7 = scalar_select 0, %s6, %s4
  loop: start=0, step=1, limit=4
  $region2: #{actor_forward.4} parent=0 // loop_pre_header
    _
  $region3: #{actor_forward.4} parent=0 // loop_header
    %s9 = sphi 0, %s13
    %p10 = scmp.ge.s32.totalorder %s9, 4
    %s19 = sphi 0, %s21
    %s22 = sphi 0, %s19
    %s23 = sphi 0, %s22
    %s39 = sphi 0, %s23
    %s43 = sphi 0, %s43
    %s45 = sphi 0, %s43
    %s46 = sphi 0, %s45
    %s60 = sphi 0, %s46
    %s64 = sphi 0, %s64
    %s66 = sphi 0, %s64
    %s67 = sphi 0, %s66
    %s81 = sphi 0, %s67
    %s87 = sphi 0, %s89
    %s90 = sphi 0, %s87
    %s91 = sphi 0, %s90
    %s107 = sphi 0, %s91
  $region4: #{actor_forward.4} parent=0 // loop_header_branch
    %12 = sbr.rel (%p10) target = $region8
  $region5: #{actor_forward.4} parent=0 // loop_body
    %s14 = ssub.s32 %s9, 1
    %s15 = ssub.s32 %s9, 2
    %s16 = sadd.s32 %s9, 1
    %s17 = ssub.s32 %s9, %s16
    %p18 = scmp.eq.s32.totalorder %s17, 0
    %s20 = sadd.s32 %s19, 1
    %s21 = scalar_select %p18, %s19, %s20
    %p24 = pneg %p18
    %p25 = scmp.eq.s32.totalorder %s9, 1
    %p26 = por %p24, %p25
    %p27 = scmp.ne.s32.totalorder %s19, %s22
    %p28 = scmp.eq.s32.totalorder %s9, 0
    %p29 = por %p27, %p28
    %p30 = scmp.ne.s32.totalorder %s19, %s22
    %p31 = scmp.eq.s32.totalorder %s14, 1
    %p32 = por %p30, %p31
    %p33 = scmp.ne.s32.totalorder %s22, %s23
    %p34 = scmp.eq.s32.totalorder %s14, 0
    %p35 = por %p33, %p34
    %p36 = scmp.ne.s32.totalorder %s22, %s23
    %p37 = scmp.eq.s32.totalorder %s15, 1
    %p38 = por %p36, %p37
    %p40 = scmp.ne.s32.totalorder %s23, %s39
    %p41 = scmp.eq.s32.totalorder %s15, 0
    %p42 = por %p40, %p41
    %s44 = sadd.s32 %s43, 1
    %p47 = scmp.eq.s32.totalorder %s9, 1
    %p48 = scmp.ne.s32.totalorder %s43, %s45
    %p49 = scmp.eq.s32.totalorder %s9, 0
    %p50 = por %p48, %p49
    %p51 = scmp.ne.s32.totalorder %s43, %s45
    %p52 = scmp.eq.s32.totalorder %s14, 1
    %p53 = por %p51, %p52
    %p54 = scmp.ne.s32.totalorder %s45, %s46
    %p55 = scmp.eq.s32.totalorder %s14, 0
    %p56 = por %p54, %p55
    %p57 = scmp.ne.s32.totalorder %s45, %s46
    %p58 = scmp.eq.s32.totalorder %s15, 1
    %p59 = por %p57, %p58
    %p61 = scmp.ne.s32.totalorder %s46, %s60
    %p62 = scmp.eq.s32.totalorder %s15, 0
    %p63 = por %p61, %p62
    %s65 = sadd.s32 %s64, 1
    %p68 = scmp.eq.s32.totalorder %s9, 1
    %p69 = scmp.ne.s32.totalorder %s64, %s66
    %p70 = scmp.eq.s32.totalorder %s9, 0
    %p71 = por %p69, %p70
    %p72 = scmp.ne.s32.totalorder %s64, %s66
    %p73 = scmp.eq.s32.totalorder %s14, 1
    %p74 = por %p72, %p73
    %p75 = scmp.ne.s32.totalorder %s66, %s67
    %p76 = scmp.eq.s32.totalorder %s14, 0
    %p77 = por %p75, %p76
    %p78 = scmp.ne.s32.totalorder %s66, %s67
    %p79 = scmp.eq.s32.totalorder %s15, 1
    %p80 = por %p78, %p79
    %p82 = scmp.ne.s32.totalorder %s67, %s81
    %p83 = scmp.eq.s32.totalorder %s15, 0
    %p84 = por %p82, %p83
    %s85 = ssub.s32 %s9, %s16
    %p86 = scmp.eq.s32.totalorder %s85, 0
    %s88 = sadd.s32 %s87, 1
    %s89 = scalar_select %p86, %s87, %s88
    %p92 = pneg %p86
    %p93 = scmp.eq.s32.totalorder %s9, 1
    %p94 = por %p92, %p93
    %p95 = scmp.ne.s32.totalorder %s87, %s90
    %p96 = scmp.eq.s32.totalorder %s9, 0
    %p97 = por %p95, %p96
    %p98 = scmp.ne.s32.totalorder %s87, %s90
    %p99 = scmp.eq.s32.totalorder %s14, 1
    %p100 = por %p98, %p99
    %p101 = scmp.ne.s32.totalorder %s90, %s91
    %p102 = scmp.eq.s32.totalorder %s14, 0
    %p103 = por %p101, %p102
    %p104 = scmp.ne.s32.totalorder %s90, %s91
    %p105 = scmp.eq.s32.totalorder %s15, 1
    %p106 = por %p104, %p105
    %p108 = scmp.ne.s32.totalorder %s91, %s107
    %p109 = scmp.eq.s32.totalorder %s15, 0
    %p110 = por %p108, %p109
    %p111 = scmp.le.s32.totalorder 1, %s9
    %p112 = scmp.lt.s32.totalorder %s9, 3
    %p113 = pnand %p111, %p112
    %p114 = pneg %p113
    // Predicated region
    $region9: #{actor_forward.4} parent=5 // pred_check
      _
    $region10: #{actor_forward.4} parent=5 // pred_check_branch
      %116 = sbr.rel (%p113) target = $region12
    $region11: #{actor_forward.4} parent=5 // pred_region
      %s117 = ssub.s32 %s9, 1
      // Predicated region
      $region13: #{actor_forward.4} parent=11 // pred_check
        %p118 = pneg %p56
      $region14: #{actor_forward.4} parent=11 // pred_check_branch
        %120 = sbr.rel (%p118) target = $region16
      $region15: #{actor_forward.4} parent=11 // pred_region
        _
      $region16: #{actor_forward.4} parent=11 // pred_fallthru
        _
      // Predicated region
      $region17: #{actor_forward.4} parent=11 // pred_check
        %p121 = pneg %p77
      $region18: #{actor_forward.4} parent=11 // pred_check_branch
        %123 = sbr.rel (%p121) target = $region20
      $region19: #{actor_forward.4} parent=11 // pred_region
        _
      $region20: #{actor_forward.4} parent=11 // pred_fallthru
        _
    $region12: #{actor_forward.4} parent=5 // pred_fallthru
      _
    %p124 = scmp.lt.s32.totalorder %s9, 2
    // Predicated region
    $region21: #{actor_forward.4} parent=5 // pred_check
      %p125 = pneg %p124
    $region22: #{actor_forward.4} parent=5 // pred_check_branch
      %127 = sbr.rel (%p125) target = $region24
    $region23: #{actor_forward.4} parent=5 // pred_region
      // Predicated region
      $region25: #{actor_forward.4} parent=23 // pred_check
        %p128 = pneg %p29
      $region26: #{actor_forward.4} parent=23 // pred_check_branch
        %130 = sbr.rel (%p128) target = $region28
      $region27: #{actor_forward.4} parent=23 // pred_region
        %s131 = smul.u32 4, %s9
        %p132 = scmp.lt.s32.totalorder %s131, 7
        %s133 = scalar_select %p132, %s131, 7
        %s134 = smul.addr %s133, 8
        %s135 = smul.addr %s134, 4
        %s136 = scalar_lea.vmem %s0, %s135
        %s137 = smul.u32 4, %s9
      $region28: #{actor_forward.4} parent=23 // pred_fallthru
        _
    $region24: #{actor_forward.4} parent=5 // pred_fallthru
      _
    %p138 = scmp.le.s32.totalorder 1, %s9
    %p139 = scmp.lt.s32.totalorder %s9, 3
    %p140 = pnand %p138, %p139
    %p141 = pneg %p140
    // Predicated region
    $region29: #{actor_forward.4} parent=5 // pred_check
      _
    $region30: #{actor_forward.4} parent=5 // pred_check_branch
      %143 = sbr.rel (%p140) target = $region32
    $region31: #{actor_forward.4} parent=5 // pred_region
      %s144 = ssub.s32 %s9, 1
      %s145 = smul.u32 4, %s14
      %p146 = scmp.lt.s32.totalorder %s145, 7
      %s147 = scalar_select %p146, %s145, 7
      %s148 = smul.addr %s147, 8
      %s149 = smul.addr %s148, 4
      %s150 = scalar_lea.vmem %s0, %s149
      %p151 = pneg %p35
      %p152 = pneg %p32
      %p153 = pneg %p56
      %p154 = pneg %p53
      %p155 = pneg %p77
      %p156 = pneg %p74
      %p157 = pneg %p103
      %p158 = pneg %p100
      %s159 = smul.u32 4, %s14
      %p160 = scmp.lt.s32.totalorder %s159, 7
      %s161 = scalar_select %p160, %s159, 7
      %s162 = smul.addr %s161, 4
      %s163 = scalar_lea.vmem %s3, %s162
      %s164 = smul.u32 4, %s14
      %p165 = scmp.lt.s32.totalorder %s164, 7
      %s166 = scalar_select %p165, %s164, 7
      %s167 = smul.addr %s166, 8
      %s168 = smul.addr %s167, 4
      %s169 = scalar_lea.vmem %s0, %s168
      %s170 = smul.u32 4, %s14
      %s171 = smul.u32 4, %s14
      %p172 = scmp.lt.s32.totalorder %s171, 7
      %s173 = scalar_select %p172, %s171, 7
      %s174 = smul.addr %s173, 4
      %s175 = scalar_lea.vmem %s3, %s174
      %s176 = smul.u32 4, %s14
      %v178 = vld [vmem:[%s169] sm:$0xff]
      %v179 = vld [vmem:[%s169 + $0x8] sm:$0xff]
      %v180 = vld [vmem:[%s169 + $0x10] sm:$0xff]
      %v181 = vld [vmem:[%s169 + $0x18] sm:$0xff]
      %v182 = vld [vmem:[%s169 + $0x20] sm:$0xff]
      %v183 = vld [vmem:[%s169 + $0x28] sm:$0xff]
      %v184 = vld [vmem:[%s169 + $0x30] sm:$0xff]
      %v185 = vld [vmem:[%s169 + $0x38] sm:$0xff]
      %v186 = vld [vmem:[%s169 + $0x40] sm:$0xff]
      %v187 = vld [vmem:[%s169 + $0x48] sm:$0xff]
      %v188 = vld [vmem:[%s169 + $0x50] sm:$0xff]
      %v189 = vld [vmem:[%s169 + $0x58] sm:$0xff]
      %v190 = vld [vmem:[%s169 + $0x60] sm:$0xff]
      %v191 = vld [vmem:[%s169 + $0x68] sm:$0xff]
      %v192 = vld [vmem:[%s169 + $0x70] sm:$0xff]
      %v193 = vld [vmem:[%s169 + $0x78] sm:$0xff]
      %v194 = vld [vmem:[%s1] sm:$0xf]
      %v195 = vld [vmem:[%s1 + $0x4] sm:$0xf]
      %v196 = vld [vmem:[%s1 + $0x8] sm:$0xf]
      %v197 = vld [vmem:[%s1 + $0xc] sm:$0xf]
      %v198 = vld [vmem:[%s1 + $0x10] sm:$0xf]
      %v199 = vld [vmem:[%s1 + $0x14] sm:$0xf]
      %v200 = vld [vmem:[%s1 + $0x18] sm:$0xf]
      %v201 = vld [vmem:[%s1 + $0x1c] sm:$0xf]
      %v202 = vld [vmem:[%s1 + $0x20] sm:$0xf]
      %v203 = vld [vmem:[%s1 + $0x24] sm:$0xf]
      %v204 = vld [vmem:[%s1 + $0x28] sm:$0xf]
      %v205 = vld [vmem:[%s1 + $0x2c] sm:$0xf]
      %v206 = vld [vmem:[%s1 + $0x30] sm:$0xf]
      %v207 = vld [vmem:[%s1 + $0x34] sm:$0xf]
      %v208 = vld [vmem:[%s1 + $0x38] sm:$0xf]
      %v209 = vld [vmem:[%s1 + $0x3c] sm:$0xf]
      %v210 = vld [vmem:[%s1 + $0x40] sm:$0xf]
      %v211 = vld [vmem:[%s1 + $0x44] sm:$0xf]
      %v212 = vld [vmem:[%s1 + $0x48] sm:$0xf]
      %v213 = vld [vmem:[%s1 + $0x4c] sm:$0xf]
      %v214 = vld [vmem:[%s1 + $0x50] sm:$0xf]
      %v215 = vld [vmem:[%s1 + $0x54] sm:$0xf]
      %v216 = vld [vmem:[%s1 + $0x58] sm:$0xf]
      %v217 = vld [vmem:[%s1 + $0x5c] sm:$0xf]
      %v218 = vld [vmem:[%s1 + $0x60] sm:$0xf]
      %v219 = vld [vmem:[%s1 + $0x64] sm:$0xf]
      %v220 = vld [vmem:[%s1 + $0x68] sm:$0xf]
      %v221 = vld [vmem:[%s1 + $0x6c] sm:$0xf]
      %v222 = vld [vmem:[%s1 + $0x70] sm:$0xf]
      %v223 = vld [vmem:[%s1 + $0x74] sm:$0xf]
      %v224 = vld [vmem:[%s1 + $0x78] sm:$0xf]
      %v225 = vld [vmem:[%s1 + $0x7c] sm:$0xf]
      %v226 = vld [vmem:[%s1 + $0x80] sm:$0xf]
      %v227 = vld [vmem:[%s1 + $0x84] sm:$0xf]
      %v228 = vld [vmem:[%s1 + $0x88] sm:$0xf]
      %v229 = vld [vmem:[%s1 + $0x8c] sm:$0xf]
      %v230 = vld [vmem:[%s1 + $0x90] sm:$0xf]
      %v231 = vld [vmem:[%s1 + $0x94] sm:$0xf]
      %v232 = vld [vmem:[%s1 + $0x98] sm:$0xf]
      %v233 = vld [vmem:[%s1 + $0x9c] sm:$0xf]
      %v234 = vld [vmem:[%s1 + $0xa0] sm:$0xf]
      %v235 = vld [vmem:[%s1 + $0xa4] sm:$0xf]
      %v236 = vld [vmem:[%s1 + $0xa8] sm:$0xf]
      %v237 = vld [vmem:[%s1 + $0xac] sm:$0xf]
      %v238 = vld [vmem:[%s1 + $0xb0] sm:$0xf]
      %v239 = vld [vmem:[%s1 + $0xb4] sm:$0xf]
      %v240 = vld [vmem:[%s1 + $0xb8] sm:$0xf]
      %v241 = vld [vmem:[%s1 + $0xbc] sm:$0xf]
      %v242 = vld [vmem:[%s1 + $0xc0] sm:$0xf]
      %v243 = vld [vmem:[%s1 + $0xc4] sm:$0xf]
      %v244 = vld [vmem:[%s1 + $0xc8] sm:$0xf]
      %v245 = vld [vmem:[%s1 + $0xcc] sm:$0xf]
      %v246 = vld [vmem:[%s1 + $0xd0] sm:$0xf]
      %v247 = vld [vmem:[%s1 + $0xd4] sm:$0xf]
      %v248 = vld [vmem:[%s1 + $0xd8] sm:$0xf]
      %v249 = vld [vmem:[%s1 + $0xdc] sm:$0xf]
      %v250 = vld [vmem:[%s1 + $0xe0] sm:$0xf]
      %v251 = vld [vmem:[%s1 + $0xe4] sm:$0xf]
      %v252 = vld [vmem:[%s1 + $0xe8] sm:$0xf]
      %v253 = vld [vmem:[%s1 + $0xec] sm:$0xf]
      %v254 = vld [vmem:[%s1 + $0xf0] sm:$0xf]
      %v255 = vld [vmem:[%s1 + $0xf4] sm:$0xf]
      %v256 = vld [vmem:[%s1 + $0xf8] sm:$0xf]
      %v257 = vld [vmem:[%s1 + $0xfc] sm:$0xf]
      %v258 = vld [vmem:[%s1 + $0x100] sm:$0xf]
      %v259 = vld [vmem:[%s1 + $0x104] sm:$0xf]
      %v260 = vld [vmem:[%s1 + $0x108] sm:$0xf]
      %v261 = vld [vmem:[%s1 + $0x10c] sm:$0xf]
      %v262 = vld [vmem:[%s1 + $0x110] sm:$0xf]
      %v263 = vld [vmem:[%s1 + $0x114] sm:$0xf]
      %v264 = vld [vmem:[%s1 + $0x118] sm:$0xf]
      %v265 = vld [vmem:[%s1 + $0x11c] sm:$0xf]
      %v266 = vld [vmem:[%s1 + $0x120] sm:$0xf]
      %v267 = vld [vmem:[%s1 + $0x124] sm:$0xf]
      %v268 = vld [vmem:[%s1 + $0x128] sm:$0xf]
      %v269 = vld [vmem:[%s1 + $0x12c] sm:$0xf]
      %v270 = vld [vmem:[%s1 + $0x130] sm:$0xf]
      %v271 = vld [vmem:[%s1 + $0x134] sm:$0xf]
      %v272 = vld [vmem:[%s1 + $0x138] sm:$0xf]
      %v273 = vld [vmem:[%s1 + $0x13c] sm:$0xf]
      %v274 = vld [vmem:[%s1 + $0x140] sm:$0xf]
      %v275 = vld [vmem:[%s1 + $0x144] sm:$0xf]
      %v276 = vld [vmem:[%s1 + $0x148] sm:$0xf]
      %v277 = vld [vmem:[%s1 + $0x14c] sm:$0xf]
      %v278 = vld [vmem:[%s1 + $0x150] sm:$0xf]
      %v279 = vld [vmem:[%s1 + $0x154] sm:$0xf]
      %v280 = vld [vmem:[%s1 + $0x158] sm:$0xf]
      %v281 = vld [vmem:[%s1 + $0x15c] sm:$0xf]
      %v282 = vld [vmem:[%s1 + $0x160] sm:$0xf]
      %v283 = vld [vmem:[%s1 + $0x164] sm:$0xf]
      %v284 = vld [vmem:[%s1 + $0x168] sm:$0xf]
      %v285 = vld [vmem:[%s1 + $0x16c] sm:$0xf]
      %v286 = vld [vmem:[%s1 + $0x170] sm:$0xf]
      %v287 = vld [vmem:[%s1 + $0x174] sm:$0xf]
      %v288 = vld [vmem:[%s1 + $0x178] sm:$0xf]
      %v289 = vld [vmem:[%s1 + $0x17c] sm:$0xf]
      %v290 = vld [vmem:[%s1 + $0x180] sm:$0xf]
      %v291 = vld [vmem:[%s1 + $0x184] sm:$0xf]
      %v292 = vld [vmem:[%s1 + $0x188] sm:$0xf]
      %v293 = vld [vmem:[%s1 + $0x18c] sm:$0xf]
      %v294 = vld [vmem:[%s1 + $0x190] sm:$0xf]
      %v295 = vld [vmem:[%s1 + $0x194] sm:$0xf]
      %v296 = vld [vmem:[%s1 + $0x198] sm:$0xf]
      %v297 = vld [vmem:[%s1 + $0x19c] sm:$0xf]
      %v298 = vld [vmem:[%s1 + $0x1a0] sm:$0xf]
      %v299 = vld [vmem:[%s1 + $0x1a4] sm:$0xf]
      %v300 = vld [vmem:[%s1 + $0x1a8] sm:$0xf]
      %v301 = vld [vmem:[%s1 + $0x1ac] sm:$0xf]
      %v302 = vld [vmem:[%s1 + $0x1b0] sm:$0xf]
      %v303 = vld [vmem:[%s1 + $0x1b4] sm:$0xf]
      %v304 = vld [vmem:[%s1 + $0x1b8] sm:$0xf]
      %v305 = vld [vmem:[%s1 + $0x1bc] sm:$0xf]
      %v306 = vld [vmem:[%s1 + $0x1c0] sm:$0xf]
      %v307 = vld [vmem:[%s1 + $0x1c4] sm:$0xf]
      %v308 = vld [vmem:[%s1 + $0x1c8] sm:$0xf]
      %v309 = vld [vmem:[%s1 + $0x1cc] sm:$0xf]
      %v310 = vld [vmem:[%s1 + $0x1d0] sm:$0xf]
      %v311 = vld [vmem:[%s1 + $0x1d4] sm:$0xf]
      %v312 = vld [vmem:[%s1 + $0x1d8] sm:$0xf]
      %v313 = vld [vmem:[%s1 + $0x1dc] sm:$0xf]
      %v314 = vld [vmem:[%s1 + $0x1e0] sm:$0xf]
      %v315 = vld [vmem:[%s1 + $0x1e4] sm:$0xf]
      %v316 = vld [vmem:[%s1 + $0x1e8] sm:$0xf]
      %v317 = vld [vmem:[%s1 + $0x1ec] sm:$0xf]
      %v318 = vld [vmem:[%s1 + $0x1f0] sm:$0xf]
      %v319 = vld [vmem:[%s1 + $0x1f4] sm:$0xf]
      %v320 = vld [vmem:[%s1 + $0x1f8] sm:$0xf]
      %v321 = vld [vmem:[%s1 + $0x1fc] sm:$0xf]
      %v322 = vld [vmem:[%s2] sm:$0x1]
      %v324 = vlaneseq
      %v325 = vshrl.u32 %v324, 7
      %v326 = vsub.s32 0, %v325
      %v327 = vrot.slane %v322, %v326
      %v345 = vunpack.c.l.b16 %v178
      %v346 = vunpack.c.h.b16 %v178
      %v347 = vunpack.c.l.b16 %v179
      %v348 = vunpack.c.h.b16 %v179
      %v349 = vunpack.c.l.b16 %v180
      %v350 = vunpack.c.h.b16 %v180
      %v351 = vunpack.c.l.b16 %v181
      %v352 = vunpack.c.h.b16 %v181
      %v353 = vunpack.c.l.b16 %v182
      %v354 = vunpack.c.h.b16 %v182
      %v355 = vunpack.c.l.b16 %v183
      %v356 = vunpack.c.h.b16 %v183
      %v357 = vunpack.c.l.b16 %v184
      %v358 = vunpack.c.h.b16 %v184
      %v359 = vunpack.c.l.b16 %v185
      %v360 = vunpack.c.h.b16 %v185
      %v361 = vunpack.c.l.b16 %v186
      %v362 = vunpack.c.h.b16 %v186
      %v363 = vunpack.c.l.b16 %v187
      %v364 = vunpack.c.h.b16 %v187
      %v365 = vunpack.c.l.b16 %v188
      %v366 = vunpack.c.h.b16 %v188
      %v367 = vunpack.c.l.b16 %v189
      %v368 = vunpack.c.h.b16 %v189
      %v369 = vunpack.c.l.b16 %v190
      %v370 = vunpack.c.h.b16 %v190
      %v371 = vunpack.c.l.b16 %v191
      %v372 = vunpack.c.h.b16 %v191
      %v373 = vunpack.c.l.b16 %v192
      %v374 = vunpack.c.h.b16 %v192
      %v375 = vunpack.c.l.b16 %v193
      %v376 = vunpack.c.h.b16 %v193
      %v377 = vpack.c.b16 %v353, %v345
      %v378 = vpack.c.b16 %v354, %v346
      %v379 = vpack.c.b16 %v355, %v347
      %v380 = vpack.c.b16 %v356, %v348
      %v381 = vpack.c.b16 %v357, %v349
      %v382 = vpack.c.b16 %v358, %v350
      %v383 = vpack.c.b16 %v359, %v351
      %v384 = vpack.c.b16 %v360, %v352
      %v385 = vpack.c.b16 %v369, %v361
      %v386 = vpack.c.b16 %v370, %v362
      %v387 = vpack.c.b16 %v371, %v363
      %v388 = vpack.c.b16 %v372, %v364
      %v389 = vpack.c.b16 %v373, %v365
      %v390 = vpack.c.b16 %v374, %v366
      %v391 = vpack.c.b16 %v375, %v367
      %v392 = vpack.c.b16 %v376, %v368
      %v537 = vunpack.c.l.b16 %v194
      %v538 = vunpack.c.l.b16 %v195
      %v539 = vunpack.c.l.b16 %v196
      %v540 = vunpack.c.l.b16 %v197
      %v541 = vunpack.c.l.b16 %v198
      %v542 = vunpack.c.l.b16 %v199
      %v543 = vunpack.c.l.b16 %v200
      %v544 = vunpack.c.l.b16 %v201
      %v545 = vunpack.c.l.b16 %v202
      %v546 = vunpack.c.l.b16 %v203
      %v547 = vunpack.c.l.b16 %v204
      %v548 = vunpack.c.l.b16 %v205
      %v549 = vunpack.c.l.b16 %v206
      %v550 = vunpack.c.l.b16 %v207
      %v551 = vunpack.c.l.b16 %v208
      %v552 = vunpack.c.l.b16 %v209
      %v553 = vunpack.c.l.b16 %v210
      %v554 = vunpack.c.l.b16 %v211
      %v555 = vunpack.c.l.b16 %v212
      %v556 = vunpack.c.l.b16 %v213
      %v557 = vunpack.c.l.b16 %v214
      %v558 = vunpack.c.l.b16 %v215
      %v559 = vunpack.c.l.b16 %v216
      %v560 = vunpack.c.l.b16 %v217
      %v561 = vunpack.c.l.b16 %v218
      %v562 = vunpack.c.l.b16 %v219
      %v563 = vunpack.c.l.b16 %v220
      %v564 = vunpack.c.l.b16 %v221
      %v565 = vunpack.c.l.b16 %v222
      %v566 = vunpack.c.l.b16 %v223
      %v567 = vunpack.c.l.b16 %v224
      %v568 = vunpack.c.l.b16 %v225
      %v569 = vunpack.c.l.b16 %v226
      %v570 = vunpack.c.l.b16 %v227
      %v571 = vunpack.c.l.b16 %v228
      %v572 = vunpack.c.l.b16 %v229
      %v573 = vunpack.c.l.b16 %v230
      %v574 = vunpack.c.l.b16 %v231
      %v575 = vunpack.c.l.b16 %v232
      %v576 = vunpack.c.l.b16 %v233
      %v577 = vunpack.c.l.b16 %v234
      %v578 = vunpack.c.l.b16 %v235
      %v579 = vunpack.c.l.b16 %v236
      %v580 = vunpack.c.l.b16 %v237
      %v581 = vunpack.c.l.b16 %v238
      %v582 = vunpack.c.l.b16 %v239
      %v583 = vunpack.c.l.b16 %v240
      %v584 = vunpack.c.l.b16 %v241
      %v585 = vunpack.c.l.b16 %v242
      %v586 = vunpack.c.l.b16 %v243
      %v587 = vunpack.c.l.b16 %v244
      %v588 = vunpack.c.l.b16 %v245
      %v589 = vunpack.c.l.b16 %v246
      %v590 = vunpack.c.l.b16 %v247
      %v591 = vunpack.c.l.b16 %v248
      %v592 = vunpack.c.l.b16 %v249
      %v593 = vunpack.c.l.b16 %v250
      %v594 = vunpack.c.l.b16 %v251
      %v595 = vunpack.c.l.b16 %v252
      %v596 = vunpack.c.l.b16 %v253
      %v597 = vunpack.c.l.b16 %v254
      %v598 = vunpack.c.l.b16 %v255
      %v599 = vunpack.c.l.b16 %v256
      %v600 = vunpack.c.l.b16 %v257
      %v601 = vunpack.c.l.b16 %v258
      %v602 = vunpack.c.l.b16 %v259
      %v603 = vunpack.c.l.b16 %v260
      %v604 = vunpack.c.l.b16 %v261
      %v605 = vunpack.c.l.b16 %v262
      %v606 = vunpack.c.l.b16 %v263
      %v607 = vunpack.c.l.b16 %v264
      %v608 = vunpack.c.l.b16 %v265
      %v609 = vunpack.c.l.b16 %v266
      %v610 = vunpack.c.l.b16 %v267
      %v611 = vunpack.c.l.b16 %v268
      %v612 = vunpack.c.l.b16 %v269
      %v613 = vunpack.c.l.b16 %v270
      %v614 = vunpack.c.l.b16 %v271
      %v615 = vunpack.c.l.b16 %v272
      %v616 = vunpack.c.l.b16 %v273
      %v617 = vunpack.c.l.b16 %v274
      %v618 = vunpack.c.l.b16 %v275
      %v619 = vunpack.c.l.b16 %v276
      %v620 = vunpack.c.l.b16 %v277
      %v621 = vunpack.c.l.b16 %v278
      %v622 = vunpack.c.l.b16 %v279
      %v623 = vunpack.c.l.b16 %v280
      %v624 = vunpack.c.l.b16 %v281
      %v625 = vunpack.c.l.b16 %v282
      %v626 = vunpack.c.l.b16 %v283
      %v627 = vunpack.c.l.b16 %v284
      %v628 = vunpack.c.l.b16 %v285
      %v629 = vunpack.c.l.b16 %v286
      %v630 = vunpack.c.l.b16 %v287
      %v631 = vunpack.c.l.b16 %v288
      %v632 = vunpack.c.l.b16 %v289
      %v633 = vunpack.c.l.b16 %v290
      %v634 = vunpack.c.l.b16 %v291
      %v635 = vunpack.c.l.b16 %v292
      %v636 = vunpack.c.l.b16 %v293
      %v637 = vunpack.c.l.b16 %v294
      %v638 = vunpack.c.l.b16 %v295
      %v639 = vunpack.c.l.b16 %v296
      %v640 = vunpack.c.l.b16 %v297
      %v641 = vunpack.c.l.b16 %v298
      %v642 = vunpack.c.l.b16 %v299
      %v643 = vunpack.c.l.b16 %v300
      %v644 = vunpack.c.l.b16 %v301
      %v645 = vunpack.c.l.b16 %v302
      %v646 = vunpack.c.l.b16 %v303
      %v647 = vunpack.c.l.b16 %v304
      %v648 = vunpack.c.l.b16 %v305
      %v649 = vunpack.c.l.b16 %v306
      %v650 = vunpack.c.l.b16 %v307
      %v651 = vunpack.c.l.b16 %v308
      %v652 = vunpack.c.l.b16 %v309
      %v653 = vunpack.c.l.b16 %v310
      %v654 = vunpack.c.l.b16 %v311
      %v655 = vunpack.c.l.b16 %v312
      %v656 = vunpack.c.l.b16 %v313
      %v657 = vunpack.c.l.b16 %v314
      %v658 = vunpack.c.l.b16 %v315
      %v659 = vunpack.c.l.b16 %v316
      %v660 = vunpack.c.l.b16 %v317
      %v661 = vunpack.c.l.b16 %v318
      %v662 = vunpack.c.l.b16 %v319
      %v663 = vunpack.c.l.b16 %v320
      %v664 = vunpack.c.l.b16 %v321
      %v665 = vpack.c.b16 %v538, %v537
      %v666 = vpack.c.b16 %v540, %v539
      %v667 = vpack.c.b16 %v542, %v541
      %v668 = vpack.c.b16 %v544, %v543
      %v669 = vpack.c.b16 %v546, %v545
      %v670 = vpack.c.b16 %v548, %v547
      %v671 = vpack.c.b16 %v550, %v549
      %v672 = vpack.c.b16 %v552, %v551
      %v673 = vpack.c.b16 %v554, %v553
      %v674 = vpack.c.b16 %v556, %v555
      %v675 = vpack.c.b16 %v558, %v557
      %v676 = vpack.c.b16 %v560, %v559
      %v677 = vpack.c.b16 %v562, %v561
      %v678 = vpack.c.b16 %v564, %v563
      %v679 = vpack.c.b16 %v566, %v565
      %v680 = vpack.c.b16 %v568, %v567
      %v681 = vpack.c.b16 %v570, %v569
      %v682 = vpack.c.b16 %v572, %v571
      %v683 = vpack.c.b16 %v574, %v573
      %v684 = vpack.c.b16 %v576, %v575
      %v685 = vpack.c.b16 %v578, %v577
      %v686 = vpack.c.b16 %v580, %v579
      %v687 = vpack.c.b16 %v582, %v581
      %v688 = vpack.c.b16 %v584, %v583
      %v689 = vpack.c.b16 %v586, %v585
      %v690 = vpack.c.b16 %v588, %v587
      %v691 = vpack.c.b16 %v590, %v589
      %v692 = vpack.c.b16 %v592, %v591
      %v693 = vpack.c.b16 %v594, %v593
      %v694 = vpack.c.b16 %v596, %v595
      %v695 = vpack.c.b16 %v598, %v597
      %v696 = vpack.c.b16 %v600, %v599
      %v697 = vpack.c.b16 %v602, %v601
      %v698 = vpack.c.b16 %v604, %v603
      %v699 = vpack.c.b16 %v606, %v605
      %v700 = vpack.c.b16 %v608, %v607
      %v701 = vpack.c.b16 %v610, %v609
      %v702 = vpack.c.b16 %v612, %v611
      %v703 = vpack.c.b16 %v614, %v613
      %v704 = vpack.c.b16 %v616, %v615
      %v705 = vpack.c.b16 %v618, %v617
      %v706 = vpack.c.b16 %v620, %v619
      %v707 = vpack.c.b16 %v622, %v621
      %v708 = vpack.c.b16 %v624, %v623
      %v709 = vpack.c.b16 %v626, %v625
      %v710 = vpack.c.b16 %v628, %v627
      %v711 = vpack.c.b16 %v630, %v629
      %v712 = vpack.c.b16 %v632, %v631
      %v713 = vpack.c.b16 %v634, %v633
      %v714 = vpack.c.b16 %v636, %v635
      %v715 = vpack.c.b16 %v638, %v637
      %v716 = vpack.c.b16 %v640, %v639
      %v717 = vpack.c.b16 %v642, %v641
      %v718 = vpack.c.b16 %v644, %v643
      %v719 = vpack.c.b16 %v646, %v645
      %v720 = vpack.c.b16 %v648, %v647
      %v721 = vpack.c.b16 %v650, %v649
      %v722 = vpack.c.b16 %v652, %v651
      %v723 = vpack.c.b16 %v654, %v653
      %v724 = vpack.c.b16 %v656, %v655
      %v725 = vpack.c.b16 %v658, %v657
      %v726 = vpack.c.b16 %v660, %v659
      %v727 = vpack.c.b16 %v662, %v661
      %v728 = vpack.c.b16 %v664, %v663
      %793 = vmatprep.subr.bf16.mxu0 0
      %794 = vmatpush1.bf16.msra.mxu0 %v665
      %795 = vmatprep.subr.bf16.mxu0 0
      %796 = vmatpush1.bf16.msra.mxu0 %v666
      %797 = vmatprep.subr.bf16.mxu0 0
      %798 = vmatpush1.bf16.msra.mxu0 %v667
      %799 = vmatprep.subr.bf16.mxu0 0
      %800 = vmatpush1.bf16.msra.mxu0 %v668
      %801 = vmatprep.subr.bf16.mxu0 0
      %802 = vmatpush1.bf16.msra.mxu0 %v669
      %803 = vmatprep.subr.bf16.mxu0 0
      %804 = vmatpush1.bf16.msra.mxu0 %v670
      %805 = vmatprep.subr.bf16.mxu0 0
      %806 = vmatpush1.bf16.msra.mxu0 %v671
      %807 = vmatprep.subr.bf16.mxu0 0
      %808 = vmatpush1.bf16.msra.mxu0 %v672
      %809 = vmatprep.subr.bf16.mxu0 0
      %810 = vmatpush1.bf16.msra.mxu0 %v673
      %811 = vmatprep.subr.bf16.mxu0 0
      %812 = vmatpush1.bf16.msra.mxu0 %v674
      %813 = vmatprep.subr.bf16.mxu0 0
      %814 = vmatpush1.bf16.msra.mxu0 %v675
      %815 = vmatprep.subr.bf16.mxu0 0
      %816 = vmatpush1.bf16.msra.mxu0 %v676
      %817 = vmatprep.subr.bf16.mxu0 0
      %818 = vmatpush1.bf16.msra.mxu0 %v677
      %819 = vmatprep.subr.bf16.mxu0 0
      %820 = vmatpush1.bf16.msra.mxu0 %v678
      %821 = vmatprep.subr.bf16.mxu0 0
      %822 = vmatpush1.bf16.msra.mxu0 %v679
      %823 = vmatprep.subr.bf16.mxu0 0
      %824 = vmatpush1.bf16.msra.mxu0 %v680
      %825 = vmatprep.mubr.bf16.mxu0 %v378
      %826 = vmatmul.mubr.bf16.gmra.mrb[0].mxu0 %v377
      %v827 = vpop.f32.mrb[0].mxu0
      %v828 = vadd.f32 %v327, %v827
      %v829 = vpop.f32.mrb[0].mxu0
      %v830 = vpop.f32.mrb[0].mxu0
      %v831 = vadd.f32 %v327, %v830
      %v832 = vpop.f32.mrb[0].mxu0
      %833 = vmatprep.mubr.bf16.mxu0 %v386
      %834 = vmatmul.mubr.bf16.gmra.mrb[0].mxu0 %v385
      %v835 = vpop.f32.mrb[0].mxu0
      %v836 = vadd.f32 %v327, %v835
      %v837 = vpop.f32.mrb[0].mxu0
      %v838 = vpop.f32.mrb[0].mxu0
      %v839 = vadd.f32 %v327, %v838
      %v840 = vpop.f32.mrb[0].mxu0
      %841 = vdwg.mxu0
      %842 = vmatprep.subr.bf16.mxu0 0
      %843 = vmatpush1.bf16.msra.mxu0 %v681
      %844 = vmatprep.subr.bf16.mxu0 0
      %845 = vmatpush1.bf16.msra.mxu0 %v682
      %846 = vmatprep.subr.bf16.mxu0 0
      %847 = vmatpush1.bf16.msra.mxu0 %v683
      %848 = vmatprep.subr.bf16.mxu0 0
      %849 = vmatpush1.bf16.msra.mxu0 %v684
      %850 = vmatprep.subr.bf16.mxu0 0
      %851 = vmatpush1.bf16.msra.mxu0 %v685
      %852 = vmatprep.subr.bf16.mxu0 0
      %853 = vmatpush1.bf16.msra.mxu0 %v686
      %854 = vmatprep.subr.bf16.mxu0 0
      %855 = vmatpush1.bf16.msra.mxu0 %v687
      %856 = vmatprep.subr.bf16.mxu0 0
      %857 = vmatpush1.bf16.msra.mxu0 %v688
      %858 = vmatprep.subr.bf16.mxu0 0
      %859 = vmatpush1.bf16.msra.mxu0 %v689
      %860 = vmatprep.subr.bf16.mxu0 0
      %861 = vmatpush1.bf16.msra.mxu0 %v690
      %862 = vmatprep.subr.bf16.mxu0 0
      %863 = vmatpush1.bf16.msra.mxu0 %v691
      %864 = vmatprep.subr.bf16.mxu0 0
      %865 = vmatpush1.bf16.msra.mxu0 %v692
      %866 = vmatprep.subr.bf16.mxu0 0
      %867 = vmatpush1.bf16.msra.mxu0 %v693
      %868 = vmatprep.subr.bf16.mxu0 0
      %869 = vmatpush1.bf16.msra.mxu0 %v694
      %870 = vmatprep.subr.bf16.mxu0 0
      %871 = vmatpush1.bf16.msra.mxu0 %v695
      %872 = vmatprep.subr.bf16.mxu0 0
      %873 = vmatpush1.bf16.msra.mxu0 %v696
      %874 = vmatprep.mubr.bf16.mxu0 %v380
      %875 = vmatmul.mubr.bf16.gmra.mrb[0].mxu0 %v379
      %v876 = vpop.f32.mrb[0].mxu0
      %v877 = vadd.f32 %v828, %v876
      %v878 = vpop.f32.mrb[0].mxu0
      %v879 = vpop.f32.mrb[0].mxu0
      %v880 = vadd.f32 %v831, %v879
      %v881 = vpop.f32.mrb[0].mxu0
      %882 = vmatprep.mubr.bf16.mxu0 %v388
      %883 = vmatmul.mubr.bf16.gmra.mrb[0].mxu0 %v387
      %v884 = vpop.f32.mrb[0].mxu0
      %v885 = vadd.f32 %v836, %v884
      %v886 = vpop.f32.mrb[0].mxu0
      %v887 = vpop.f32.mrb[0].mxu0
      %v888 = vadd.f32 %v839, %v887
      %v889 = vpop.f32.mrb[0].mxu0
      %890 = vdwg.mxu0
      %891 = vmatprep.subr.bf16.mxu0 0
      %892 = vmatpush1.bf16.msra.mxu0 %v697
      %893 = vmatprep.subr.bf16.mxu0 0
      %894 = vmatpush1.bf16.msra.mxu0 %v698
      %895 = vmatprep.subr.bf16.mxu0 0
      %896 = vmatpush1.bf16.msra.mxu0 %v699
      %897 = vmatprep.subr.bf16.mxu0 0
      %898 = vmatpush1.bf16.msra.mxu0 %v700
      %899 = vmatprep.subr.bf16.mxu0 0
      %900 = vmatpush1.bf16.msra.mxu0 %v701
      %901 = vmatprep.subr.bf16.mxu0 0
      %902 = vmatpush1.bf16.msra.mxu0 %v702
      %903 = vmatprep.subr.bf16.mxu0 0
      %904 = vmatpush1.bf16.msra.mxu0 %v703
      %905 = vmatprep.subr.bf16.mxu0 0
      %906 = vmatpush1.bf16.msra.mxu0 %v704
      %907 = vmatprep.subr.bf16.mxu0 0
      %908 = vmatpush1.bf16.msra.mxu0 %v705
      %909 = vmatprep.subr.bf16.mxu0 0
      %910 = vmatpush1.bf16.msra.mxu0 %v706
      %911 = vmatprep.subr.bf16.mxu0 0
      %912 = vmatpush1.bf16.msra.mxu0 %v707
      %913 = vmatprep.subr.bf16.mxu0 0
      %914 = vmatpush1.bf16.msra.mxu0 %v708
      %915 = vmatprep.subr.bf16.mxu0 0
      %916 = vmatpush1.bf16.msra.mxu0 %v709
      %917 = vmatprep.subr.bf16.mxu0 0
      %918 = vmatpush1.bf16.msra.mxu0 %v710
      %919 = vmatprep.subr.bf16.mxu0 0
      %920 = vmatpush1.bf16.msra.mxu0 %v711
      %921 = vmatprep.subr.bf16.mxu0 0
      %922 = vmatpush1.bf16.msra.mxu0 %v712
      %923 = vmatprep.mubr.bf16.mxu0 %v382
      %924 = vmatmul.mubr.bf16.gmra.mrb[0].mxu0 %v381
      %v925 = vpop.f32.mrb[0].mxu0
      %v926 = vadd.f32 %v877, %v925
      %v927 = vpop.f32.mrb[0].mxu0
      %v928 = vpop.f32.mrb[0].mxu0
      %v929 = vadd.f32 %v880, %v928
      %v930 = vpop.f32.mrb[0].mxu0
      %931 = vmatprep.mubr.bf16.mxu0 %v390
      %932 = vmatmul.mubr.bf16.gmra.mrb[0].mxu0 %v389
      %v933 = vpop.f32.mrb[0].mxu0
      %v934 = vadd.f32 %v885, %v933
      %v935 = vpop.f32.mrb[0].mxu0
      %v936 = vpop.f32.mrb[0].mxu0
      %v937 = vadd.f32 %v888, %v936
      %v938 = vpop.f32.mrb[0].mxu0
      %939 = vdwg.mxu0
      %940 = vmatprep.subr.bf16.mxu0 0
      %941 = vmatpush1.bf16.msra.mxu0 %v713
      %942 = vmatprep.subr.bf16.mxu0 0
      %943 = vmatpush1.bf16.msra.mxu0 %v714
      %944 = vmatprep.subr.bf16.mxu0 0
      %945 = vmatpush1.bf16.msra.mxu0 %v715
      %946 = vmatprep.subr.bf16.mxu0 0
      %947 = vmatpush1.bf16.msra.mxu0 %v716
      %948 = vmatprep.subr.bf16.mxu0 0
      %949 = vmatpush1.bf16.msra.mxu0 %v717
      %950 = vmatprep.subr.bf16.mxu0 0
      %951 = vmatpush1.bf16.msra.mxu0 %v718
      %952 = vmatprep.subr.bf16.mxu0 0
      %953 = vmatpush1.bf16.msra.mxu0 %v719
      %954 = vmatprep.subr.bf16.mxu0 0
      %955 = vmatpush1.bf16.msra.mxu0 %v720
      %956 = vmatprep.subr.bf16.mxu0 0
      %957 = vmatpush1.bf16.msra.mxu0 %v721
      %958 = vmatprep.subr.bf16.mxu0 0
      %959 = vmatpush1.bf16.msra.mxu0 %v722
      %960 = vmatprep.subr.bf16.mxu0 0
      %961 = vmatpush1.bf16.msra.mxu0 %v723
      %962 = vmatprep.subr.bf16.mxu0 0
      %963 = vmatpush1.bf16.msra.mxu0 %v724
      %964 = vmatprep.subr.bf16.mxu0 0
      %965 = vmatpush1.bf16.msra.mxu0 %v725
      %966 = vmatprep.subr.bf16.mxu0 0
      %967 = vmatpush1.bf16.msra.mxu0 %v726
      %968 = vmatprep.subr.bf16.mxu0 0
      %969 = vmatpush1.bf16.msra.mxu0 %v727
      %970 = vmatprep.subr.bf16.mxu0 0
      %971 = vmatpush1.bf16.msra.mxu0 %v728
      %972 = vmatprep.mubr.bf16.mxu0 %v384
      %973 = vmatmul.mubr.bf16.gmra.mrb[0].mxu0 %v383
      %v974 = vpop.f32.mrb[0].mxu0
      %v975 = vadd.f32 %v926, %v974
      %v976 = vpop.f32.mrb[0].mxu0
      %v977 = vpop.f32.mrb[0].mxu0
      %v978 = vadd.f32 %v929, %v977
      %v979 = vpop.f32.mrb[0].mxu0
      %980 = vmatprep.mubr.bf16.mxu0 %v392
      %981 = vmatmul.mubr.bf16.gmra.mrb[0].mxu0 %v391
      %v982 = vpop.f32.mrb[0].mxu0
      %v983 = vadd.f32 %v934, %v982
      %v984 = vpop.f32.mrb[0].mxu0
      %v985 = vpop.f32.mrb[0].mxu0
      %v986 = vadd.f32 %v937, %v985
      %v987 = vpop.f32.mrb[0].mxu0
      %988 = vdwg.mxu0
      %v989 = vmax.f32 %v975, 0.0
      %v990 = vmax.f32 %v978, 0.0
      %v991 = vmax.f32 %v983, 0.0
      %v992 = vmax.f32 %v986, 0.0
      %v993 = vpack.c.bf16 %v990, %v989
      %v994 = vpack.c.bf16 %v992, %v991
      %v997 = vunpack.c.l.b16 %v993
      %v998 = vunpack.c.h.b16 %v993
      %v999 = vunpack.c.l.b16 %v994
      %v1000 = vunpack.c.h.b16 %v994
      %v1001 = vpack.c.b16 %v997, %v997
      %v1002 = vpack.c.b16 %v998, %v998
      %v1003 = vpack.c.b16 %v999, %v999
      %v1004 = vpack.c.b16 %v1000, %v1000
      %1009 = vst [vmem:[%s175] sm:$0xf] %v1001
      %1010 = vst [vmem:[%s175 + $0x4] sm:$0xf] %v1002
      %1011 = vst [vmem:[%s175 + $0x8] sm:$0xf] %v1003
      %1012 = vst [vmem:[%s175 + $0xc] sm:$0xf] %v1004
      %s1013 = smul.u32 4, %s14
      %p1014 = scmp.lt.s32.totalorder %s1013, 7
      %s1015 = scalar_select %p1014, %s1013, 7
      %s1016 = smul.addr %s1015, 4
      %s1017 = scalar_lea.vmem %s3, %s1016
      // Predicated region
      $region33: #{actor_forward.4} parent=31 // pred_check
        %p1018 = pneg %p100
      $region34: #{actor_forward.4} parent=31 // pred_check_branch
        %1020 = sbr.rel (%p1018) target = $region36
      $region35: #{actor_forward.4} parent=31 // pred_region
        %s1021 = smul.u32 4, %s14
      $region36: #{actor_forward.4} parent=31 // pred_fallthru
        _
    $region32: #{actor_forward.4} parent=5 // pred_fallthru
      _
    %p1022 = scmp.le.s32.totalorder 2, %s9
    // Predicated region
    $region37: #{actor_forward.4} parent=5 // pred_check
      %p1023 = pneg %p1022
    $region38: #{actor_forward.4} parent=5 // pred_check_branch
      %1025 = sbr.rel (%p1023) target = $region40
    $region39: #{actor_forward.4} parent=5 // pred_region
      %s1026 = ssub.s32 %s9, 2
      // Predicated region
      $region41: #{actor_forward.4} parent=39 // pred_check
        %p1027 = pneg %p106
      $region42: #{actor_forward.4} parent=39 // pred_check_branch
        %1029 = sbr.rel (%p1027) target = $region44
      $region43: #{actor_forward.4} parent=39 // pred_region
        %s1030 = smul.u32 4, %s15
        %p1031 = scmp.lt.s32.totalorder %s1030, 7
        %s1032 = scalar_select %p1031, %s1030, 7
        %s1033 = smul.addr %s1032, 4
        %s1034 = scalar_lea.vmem %s3, %s1033
      $region44: #{actor_forward.4} parent=39 // pred_fallthru
        _
    $region40: #{actor_forward.4} parent=5 // pred_fallthru
      _
  $region6: #{actor_forward.4} parent=0 // loop_footer
    %s13 = sadd.s32 1, %s9
  $region7: #{actor_forward.4} parent=0 // loop_footer_branch
    %8 = sbr.rel target = $region3
  $region8: #{actor_forward.4} parent=0 // loop_exit
    _

// kernel: actor_forward.5
$region0: #{actor_forward.5}
  #allocation0 [shape = 'u32[]', space=smem, size = 0x4, offset = 0x4, fixed_abs, tag = 'smem constant byte address 0x4 - core index']
  #allocation1 [shape = 'u32[144,128]{1,0:T(1,128)}', space=vmem, size = 0x12000, scoped, tag = 'internal scratch']
  %s0 = inlined_call_operand.vmem [shape: bf16[8,5,5,128], index: 0, kind: input, shape index: {}]
  %s1 = inlined_call_operand.vmem [shape: bf16[512,128], index: 1, kind: input, shape index: {}]
  %s2 = inlined_call_operand.vmem [shape: f32[1,128], index: 2, kind: input, shape index: {}]
  %s3 = inlined_call_operand.vmem [shape: bf16[4,128,768], index: 3, kind: input, shape index: {}]
  %s4 = inlined_call_operand.vmem [shape: f32[1,768], index: 4, kind: input, shape index: {}]
  %s5 = inlined_call_operand.vmem [shape: bf16[768,32], index: 5, kind: input, shape index: {}]
  %s6 = inlined_call_operand.vmem [shape: f32[1,32], index: 6, kind: input, shape index: {}]
  %s7 = inlined_call_operand.vmem [shape: bf16[32,128], index: 7, kind: input, shape index: {}]
  %s8 = inlined_call_operand.vmem [shape: f32[1,128], index: 8, kind: input, shape index: {}]
  %s9 = inlined_call_operand.vmem [shape: f32[8,128], index: 9, kind: output, shape index: {}]
  %s10 = sld [smem:[#allocation0]]
  $region46: #{actor_forward.5} parent=0
    _
  %s12 = ssub.s32 1, %s10
  %s13 = scalar_select 0, %s12, %s10
  // Predicated region
  $region2: #{actor_forward.5} parent=0 // pred_check
    _
  $region3: #{actor_forward.5} parent=0 // pred_check_branch
    %15 = sbr.rel (0) target = $region5
  $region4: #{actor_forward.5} parent=0 // pred_region
    _
  $region5: #{actor_forward.5} parent=0 // pred_fallthru
    _
  // Predicated region
  $region6: #{actor_forward.5} parent=0 // pred_check
    _
  $region7: #{actor_forward.5} parent=0 // pred_check_branch
    %17 = sbr.rel (0) target = $region9
  $region8: #{actor_forward.5} parent=0 // pred_region
    _
  $region9: #{actor_forward.5} parent=0 // pred_fallthru
    _
  // Predicated region
  $region10: #{actor_forward.5} parent=0 // pred_check
    _
  $region11: #{actor_forward.5} parent=0 // pred_check_branch
    %19 = sbr.rel (0) target = $region13
  $region12: #{actor_forward.5} parent=0 // pred_region
    _
  $region13: #{actor_forward.5} parent=0 // pred_fallthru
    _
  // Predicated region
  $region14: #{actor_forward.5} parent=0 // pred_check
    _
  $region15: #{actor_forward.5} parent=0 // pred_check_branch
    %21 = sbr.rel (0) target = $region17
  $region16: #{actor_forward.5} parent=0 // pred_region
    _
  $region17: #{actor_forward.5} parent=0 // pred_fallthru
    _
  // Predicated region
  $region18: #{actor_forward.5} parent=0 // pred_check
    _
  $region19: #{actor_forward.5} parent=0 // pred_check_branch
    %23 = sbr.rel (0) target = $region21
  $region20: #{actor_forward.5} parent=0 // pred_region
    _
  $region21: #{actor_forward.5} parent=0 // pred_fallthru
    _
  // Predicated region
  $region22: #{actor_forward.5} parent=0 // pred_check
    _
  $region23: #{actor_forward.5} parent=0 // pred_check_branch
    %25 = sbr.rel (0) target = $region25
  $region24: #{actor_forward.5} parent=0 // pred_region
    _
  $region25: #{actor_forward.5} parent=0 // pred_fallthru
    _
  // Predicated region
  $region26: #{actor_forward.5} parent=0 // pred_check
    _
  $region27: #{actor_forward.5} parent=0 // pred_check_branch
    %27 = sbr.rel (0) target = $region29
  $region28: #{actor_forward.5} parent=0 // pred_region
    _
  $region29: #{actor_forward.5} parent=0 // pred_fallthru
    _
  // Predicated region
  $region30: #{actor_forward.5} parent=0 // pred_check
    _
  $region31: #{actor_forward.5} parent=0 // pred_check_branch
    %29 = sbr.rel (0) target = $region33
  $region32: #{actor_forward.5} parent=0 // pred_region
    _
  $region33: #{actor_forward.5} parent=0 // pred_fallthru
    _
  // Predicated region
  $region34: #{actor_forward.5} parent=0 // pred_check
    _
  $region35: #{actor_forward.5} parent=0 // pred_check_branch
    %31 = sbr.rel (0) target = $region37
  $region36: #{actor_forward.5} parent=0 // pred_region
    _
  $region37: #{actor_forward.5} parent=0 // pred_fallthru
    _
  %v33 = vld [vmem:[%s0] sm:$0x7]
  %v34 = vld [vmem:[%s0 + $0x4] sm:$0x7]
  %v35 = vld [vmem:[%s0 + $0x8] sm:$0x7]
  %v36 = vld [vmem:[%s0 + $0xc] sm:$0x7]
  %v37 = vld [vmem:[%s0 + $0x10] sm:$0x7]
  %v38 = vld [vmem:[%s0 + $0x14] sm:$0x7]
  %v39 = vld [vmem:[%s0 + $0x18] sm:$0x7]
  %v40 = vld [vmem:[%s0 + $0x1c] sm:$0x7]
  %v41 = vld [vmem:[%s0 + $0x20] sm:$0x7]
  %v42 = vld [vmem:[%s0 + $0x24] sm:$0x7]
  %v43 = vld [vmem:[%s0 + $0x28] sm:$0x7]
  %v44 = vld [vmem:[%s0 + $0x2c] sm:$0x7]
  %v45 = vld [vmem:[%s0 + $0x30] sm:$0x7]
  %v46 = vld [vmem:[%s0 + $0x34] sm:$0x7]
  %v47 = vld [vmem:[%s0 + $0x38] sm:$0x7]
  %v48 = vld [vmem:[%s0 + $0x3c] sm:$0x7]
  %v49 = vld [vmem:[%s0 + $0x40] sm:$0x7]
  %v50 = vld [vmem:[%s0 + $0x44] sm:$0x7]
  %v51 = vld [vmem:[%s0 + $0x48] sm:$0x7]
  %v52 = vld [vmem:[%s0 + $0x4c] sm:$0x7]
  %v53 = vld [vmem:[%s0 + $0x50] sm:$0x7]
  %v54 = vld [vmem:[%s0 + $0x54] sm:$0x7]
  %v55 = vld [vmem:[%s0 + $0x58] sm:$0x7]
  %v56 = vld [vmem:[%s0 + $0x5c] sm:$0x7]
  %v57 = vld [vmem:[%s0 + $0x60] sm:$0x7]
  %v58 = vld [vmem:[%s0 + $0x64] sm:$0x7]
  %v59 = vld [vmem:[%s0 + $0x68] sm:$0x7]
  %v60 = vld [vmem:[%s0 + $0x6c] sm:$0x7]
  %v61 = vld [vmem:[%s0 + $0x70] sm:$0x7]
  %v62 = vld [vmem:[%s0 + $0x74] sm:$0x7]
  %v63 = vld [vmem:[%s0 + $0x78] sm:$0x7]
  %v64 = vld [vmem:[%s0 + $0x7c] sm:$0x7]
  %v65 = vld [vmem:[%s0 + $0x80] sm:$0x7]
  %v66 = vld [vmem:[%s0 + $0x84] sm:$0x7]
  %v67 = vld [vmem:[%s0 + $0x88] sm:$0x7]
  %v68 = vld [vmem:[%s0 + $0x8c] sm:$0x7]
  %v69 = vld [vmem:[%s0 + $0x90] sm:$0x7]
  %v70 = vld [vmem:[%s0 + $0x94] sm:$0x7]
  %v71 = vld [vmem:[%s0 + $0x98] sm:$0x7]
  %v72 = vld [vmem:[%s0 + $0x9c] sm:$0x7]
  %v74 = vshrl.u32 %v33, 16
  %v76 = vrot.slane %v74, 4
  %v77 = vshll.u32 %v33, 16
  %v79 = vrot.slane %v77, 5
  %v80 = vor.u32 %v76, %v79
  %v81 = vrot.slane %v80, 4
  %v83 = vshrl.u32 %v34, 16
  %v85 = vrot.slane %v83, 4
  %v86 = vshll.u32 %v34, 16
  %v88 = vrot.slane %v86, 5
  %v89 = vor.u32 %v85, %v88
  %v90 = vrot.slane %v89, 4
  %v92 = vshrl.u32 %v35, 16
  %v94 = vrot.slane %v92, 4
  %v95 = vshll.u32 %v35, 16
  %v97 = vrot.slane %v95, 5
  %v98 = vor.u32 %v94, %v97
  %v99 = vrot.slane %v98, 4
  %v101 = vshrl.u32 %v36, 16
  %v103 = vrot.slane %v101, 4
  %v104 = vshll.u32 %v36, 16
  %v106 = vrot.slane %v104, 5
  %v107 = vor.u32 %v103, %v106
  %v108 = vrot.slane %v107, 4
  %v110 = vshrl.u32 %v38, 16
  %v112 = vrot.slane %v110, 4
  %v113 = vshll.u32 %v38, 16
  %v115 = vrot.slane %v113, 5
  %v116 = vor.u32 %v112, %v115
  %v117 = vrot.slane %v116, 4
  %v119 = vshrl.u32 %v39, 16
  %v121 = vrot.slane %v119, 4
  %v122 = vshll.u32 %v39, 16
  %v124 = vrot.slane %v122, 5
  %v125 = vor.u32 %v121, %v124
  %v126 = vrot.slane %v125, 4
  %v128 = vshrl.u32 %v40, 16
  %v130 = vrot.slane %v128, 4
  %v131 = vshll.u32 %v40, 16
  %v133 = vrot.slane %v131, 5
  %v134 = vor.u32 %v130, %v133
  %v135 = vrot.slane %v134, 4
  %v137 = vshrl.u32 %v41, 16
  %v139 = vrot.slane %v137, 4
  %v140 = vshll.u32 %v41, 16
  %v142 = vrot.slane %v140, 5
  %v143 = vor.u32 %v139, %v142
  %v144 = vrot.slane %v143, 4
  %v146 = vshrl.u32 %v43, 16
  %v148 = vrot.slane %v146, 4
  %v149 = vshll.u32 %v43, 16
  %v151 = vrot.slane %v149, 5
  %v152 = vor.u32 %v148, %v151
  %v153 = vrot.slane %v152, 4
  %v155 = vshrl.u32 %v44, 16
  %v157 = vrot.slane %v155, 4
  %v158 = vshll.u32 %v44, 16
  %v160 = vrot.slane %v158, 5
  %v161 = vor.u32 %v157, %v160
  %v162 = vrot.slane %v161, 4
  %v164 = vshrl.u32 %v45, 16
  %v166 = vrot.slane %v164, 4
  %v167 = vshll.u32 %v45, 16
  %v169 = vrot.slane %v167, 5
  %v170 = vor.u32 %v166, %v169
  %v171 = vrot.slane %v170, 4
  %v173 = vshrl.u32 %v46, 16
  %v175 = vrot.slane %v173, 4
  %v176 = vshll.u32 %v46, 16
  %v178 = vrot.slane %v176, 5
  %v179 = vor.u32 %v175, %v178
  %v180 = vrot.slane %v179, 4
  %v182 = vshrl.u32 %v48, 16
  %v184 = vrot.slane %v182, 4
  %v185 = vshll.u32 %v48, 16
  %v187 = vrot.slane %v185, 5
  %v188 = vor.u32 %v184, %v187
  %v189 = vrot.slane %v188, 4
  %v191 = vshrl.u32 %v49, 16
  %v193 = vrot.slane %v191, 4
  %v194 = vshll.u32 %v49, 16
  %v196 = vrot.slane %v194, 5
  %v197 = vor.u32 %v193, %v196
  %v198 = vrot.slane %v197, 4
  %v200 = vshrl.u32 %v50, 16
  %v202 = vrot.slane %v200, 4
  %v203 = vshll.u32 %v50, 16
  %v205 = vrot.slane %v203, 5
  %v206 = vor.u32 %v202, %v205
  %v207 = vrot.slane %v206, 4
  %v209 = vshrl.u32 %v51, 16
  %v211 = vrot.slane %v209, 4
  %v212 = vshll.u32 %v51, 16
  %v214 = vrot.slane %v212, 5
  %v215 = vor.u32 %v211, %v214
  %v216 = vrot.slane %v215, 4
  %v218 = vshrl.u32 %v53, 16
  %v220 = vrot.slane %v218, 4
  %v221 = vshll.u32 %v53, 16
  %v223 = vrot.slane %v221, 5
  %v224 = vor.u32 %v220, %v223
  %v225 = vrot.slane %v224, 4
  %v227 = vshrl.u32 %v54, 16
  %v229 = vrot.slane %v227, 4
  %v230 = vshll.u32 %v54, 16
  %v232 = vrot.slane %v230, 5
  %v233 = vor.u32 %v229, %v232
  %v234 = vrot.slane %v233, 4
  %v236 = vshrl.u32 %v55, 16
  %v238 = vrot.slane %v236, 4
  %v239 = vshll.u32 %v55, 16
  %v241 = vrot.slane %v239, 5
  %v242 = vor.u32 %v238, %v241
  %v243 = vrot.slane %v242, 4
  %v245 = vshrl.u32 %v56, 16
  %v247 = vrot.slane %v245, 4
  %v248 = vshll.u32 %v56, 16
  %v250 = vrot.slane %v248, 5
  %v251 = vor.u32 %v247, %v250
  %v252 = vrot.slane %v251, 4
  %v254 = vshrl.u32 %v58, 16
  %v256 = vrot.slane %v254, 4
  %v257 = vshll.u32 %v58, 16
  %v259 = vrot.slane %v257, 5
  %v260 = vor.u32 %v256, %v259
  %v261 = vrot.slane %v260, 4
  %v263 = vshrl.u32 %v59, 16
  %v265 = vrot.slane %v263, 4
  %v266 = vshll.u32 %v59, 16
  %v268 = vrot.slane %v266, 5
  %v269 = vor.u32 %v265, %v268
  %v270 = vrot.slane %v269, 4
  %v272 = vshrl.u32 %v60, 16
  %v274 = vrot.slane %v272, 4
  %v275 = vshll.u32 %v60, 16
  %v277 = vrot.slane %v275, 5
  %v278 = vor.u32 %v274, %v277
  %v279 = vrot.slane %v278, 4
  %v281 = vshrl.u32 %v61, 16
  %v283 = vrot.slane %v281, 4
  %v284 = vshll.u32 %v61, 16
  %v286 = vrot.slane %v284, 5
  %v287 = vor.u32 %v283, %v286
  %v288 = vrot.slane %v287, 4
  %v290 = vshrl.u32 %v63, 16
  %v292 = vrot.slane %v290, 4
  %v293 = vshll.u32 %v63, 16
  %v295 = vrot.slane %v293, 5
  %v296 = vor.u32 %v292, %v295
  %v297 = vrot.slane %v296, 4
  %v299 = vshrl.u32 %v64, 16
  %v301 = vrot.slane %v299, 4
  %v302 = vshll.u32 %v64, 16
  %v304 = vrot.slane %v302, 5
  %v305 = vor.u32 %v301, %v304
  %v306 = vrot.slane %v305, 4
  %v308 = vshrl.u32 %v65, 16
  %v310 = vrot.slane %v308, 4
  %v311 = vshll.u32 %v65, 16
  %v313 = vrot.slane %v311, 5
  %v314 = vor.u32 %v310, %v313
  %v315 = vrot.slane %v314, 4
  %v317 = vshrl.u32 %v66, 16
  %v319 = vrot.slane %v317, 4
  %v320 = vshll.u32 %v66, 16
  %v322 = vrot.slane %v320, 5
  %v323 = vor.u32 %v319, %v322
  %v324 = vrot.slane %v323, 4
  %v326 = vshrl.u32 %v68, 16
  %v328 = vrot.slane %v326, 4
  %v329 = vshll.u32 %v68, 16
  %v331 = vrot.slane %v329, 5
  %v332 = vor.u32 %v328, %v331
  %v333 = vrot.slane %v332, 4
  %v335 = vshrl.u32 %v69, 16
  %v337 = vrot.slane %v335, 4
  %v338 = vshll.u32 %v69, 16
  %v340 = vrot.slane %v338, 5
  %v341 = vor.u32 %v337, %v340
  %v342 = vrot.slane %v341, 4
  %v344 = vshrl.u32 %v70, 16
  %v346 = vrot.slane %v344, 4
  %v347 = vshll.u32 %v70, 16
  %v349 = vrot.slane %v347, 5
  %v350 = vor.u32 %v346, %v349
  %v351 = vrot.slane %v350, 4
  %v353 = vshrl.u32 %v71, 16
  %v355 = vrot.slane %v353, 4
  %v356 = vshll.u32 %v71, 16
  %v358 = vrot.slane %v356, 5
  %v359 = vor.u32 %v355, %v358
  %v360 = vrot.slane %v359, 4
  %v393 = vmax.bf16 %v33, %v81
  %v394 = vmax.bf16 %v34, %v90
  %v395 = vmax.bf16 %v35, %v99
  %v396 = vmax.bf16 %v36, %v108
  %v397 = vmax.bf16 %v38, %v117
  %v398 = vmax.bf16 %v39, %v126
  %v399 = vmax.bf16 %v40, %v135
  %v400 = vmax.bf16 %v41, %v144
  %v401 = vmax.bf16 %v43, %v153
  %v402 = vmax.bf16 %v44, %v162
  %v403 = vmax.bf16 %v45, %v171
  %v404 = vmax.bf16 %v46, %v180
  %v405 = vmax.bf16 %v48, %v189
  %v406 = vmax.bf16 %v49, %v198
  %v407 = vmax.bf16 %v50, %v207
  %v408 = vmax.bf16 %v51, %v216
  %v409 = vmax.bf16 %v53, %v225
  %v410 = vmax.bf16 %v54, %v234
  %v411 = vmax.bf16 %v55, %v243
  %v412 = vmax.bf16 %v56, %v252
  %v413 = vmax.bf16 %v58, %v261
  %v414 = vmax.bf16 %v59, %v270
  %v415 = vmax.bf16 %v60, %v279
  %v416 = vmax.bf16 %v61, %v288
  %v417 = vmax.bf16 %v63, %v297
  %v418 = vmax.bf16 %v64, %v306
  %v419 = vmax.bf16 %v65, %v315
  %v420 = vmax.bf16 %v66, %v324
  %v421 = vmax.bf16 %v68, %v333
  %v422 = vmax.bf16 %v69, %v342
  %v423 = vmax.bf16 %v70, %v351
  %v424 = vmax.bf16 %v71, %v360
  %v426 = vshrl.u32 %v37, 16
  %v428 = vrot.slane %v426, 4
  %v429 = vshll.u32 %v37, 16
  %v431 = vrot.slane %v429, 5
  %v432 = vor.u32 %v428, %v431
  %v433 = vrot.slane %v432, 4
  %v435 = vshrl.u32 %v42, 16
  %v437 = vrot.slane %v435, 4
  %v438 = vshll.u32 %v42, 16
  %v440 = vrot.slane %v438, 5
  %v441 = vor.u32 %v437, %v440
  %v442 = vrot.slane %v441, 4
  %v444 = vshrl.u32 %v47, 16
  %v446 = vrot.slane %v444, 4
  %v447 = vshll.u32 %v47, 16
  %v449 = vrot.slane %v447, 5
  %v450 = vor.u32 %v446, %v449
  %v451 = vrot.slane %v450, 4
  %v453 = vshrl.u32 %v52, 16
  %v455 = vrot.slane %v453, 4
  %v456 = vshll.u32 %v52, 16
  %v458 = vrot.slane %v456, 5
  %v459 = vor.u32 %v455, %v458
  %v460 = vrot.slane %v459, 4
  %v462 = vshrl.u32 %v57, 16
  %v464 = vrot.slane %v462, 4
  %v465 = vshll.u32 %v57, 16
  %v467 = vrot.slane %v465, 5
  %v468 = vor.u32 %v464, %v467
  %v469 = vrot.slane %v468, 4
  %v471 = vshrl.u32 %v62, 16
  %v473 = vrot.slane %v471, 4
  %v474 = vshll.u32 %v62, 16
  %v476 = vrot.slane %v474, 5
  %v477 = vor.u32 %v473, %v476
  %v478 = vrot.slane %v477, 4
  %v480 = vshrl.u32 %v67, 16
  %v482 = vrot.slane %v480, 4
  %v483 = vshll.u32 %v67, 16
  %v485 = vrot.slane %v483, 5
  %v486 = vor.u32 %v482, %v485
  %v487 = vrot.slane %v486, 4
  %v489 = vshrl.u32 %v72, 16
  %v491 = vrot.slane %v489, 4
  %v492 = vshll.u32 %v72, 16
  %v494 = vrot.slane %v492, 5
  %v495 = vor.u32 %v491, %v494
  %v496 = vrot.slane %v495, 4
  %v505 = vmax.bf16 %v37, %v433
  %v506 = vmax.bf16 %v42, %v442
  %v507 = vmax.bf16 %v47, %v451
  %v508 = vmax.bf16 %v52, %v460
  %v509 = vmax.bf16 %v57, %v469
  %v510 = vmax.bf16 %v62, %v478
  %v511 = vmax.bf16 %v67, %v487
  %v512 = vmax.bf16 %v72, %v496
  %v513 = vmax.bf16 %v393, %v394
  %v514 = vmax.bf16 %v394, %v395
  %v515 = vmax.bf16 %v395, %v396
  %v516 = vmax.bf16 %v396, %v505
  %v517 = vmax.bf16 %v397, %v398
  %v518 = vmax.bf16 %v398, %v399
  %v519 = vmax.bf16 %v399, %v400
  %v520 = vmax.bf16 %v400, %v506
  %v521 = vmax.bf16 %v401, %v402
  %v522 = vmax.bf16 %v402, %v403
  %v523 = vmax.bf16 %v403, %v404
  %v524 = vmax.bf16 %v404, %v507
  %v525 = vmax.bf16 %v405, %v406
  %v526 = vmax.bf16 %v406, %v407
  %v527 = vmax.bf16 %v407, %v408
  %v528 = vmax.bf16 %v408, %v508
  %v529 = vmax.bf16 %v409, %v410
  %v530 = vmax.bf16 %v410, %v411
  %v531 = vmax.bf16 %v411, %v412
  %v532 = vmax.bf16 %v412, %v509
  %v533 = vmax.bf16 %v413, %v414
  %v534 = vmax.bf16 %v414, %v415
  %v535 = vmax.bf16 %v415, %v416
  %v536 = vmax.bf16 %v416, %v510
  %v537 = vmax.bf16 %v417, %v418
  %v538 = vmax.bf16 %v418, %v419
  %v539 = vmax.bf16 %v419, %v420
  %v540 = vmax.bf16 %v420, %v511
  %v541 = vmax.bf16 %v421, %v422
  %v542 = vmax.bf16 %v422, %v423
  %v543 = vmax.bf16 %v423, %v424
  %v544 = vmax.bf16 %v424, %v512
  %v553 = vunpack.c.l.b16 %v513
  %v554 = vunpack.c.l.b16 %v517
  %v555 = vunpack.c.l.b16 %v521
  %v556 = vunpack.c.l.b16 %v525
  %v557 = vunpack.c.l.b16 %v529
  %v558 = vunpack.c.l.b16 %v533
  %v559 = vunpack.c.l.b16 %v537
  %v560 = vunpack.c.l.b16 %v541
  %v561 = vpack.c.b16 %v553, %v553
  %v562 = vpack.c.b16 %v554, %v554
  %v563 = vpack.c.b16 %v555, %v555
  %v564 = vpack.c.b16 %v556, %v556
  %v565 = vpack.c.b16 %v557, %v557
  %v566 = vpack.c.b16 %v558, %v558
  %v567 = vpack.c.b16 %v559, %v559
  %v568 = vpack.c.b16 %v560, %v560
  %v569 = vunpack.c.l.b16 %v561
  %v570 = vunpack.c.l.b16 %v562
  %v571 = vunpack.c.l.b16 %v563
  %v572 = vunpack.c.l.b16 %v564
  %v573 = vunpack.c.l.b16 %v565
  %v574 = vunpack.c.l.b16 %v566
  %v575 = vunpack.c.l.b16 %v567
  %v576 = vunpack.c.l.b16 %v568
  %v577 = vrot.slane %v570, 7
  %vm578 = vcmask 1041409
  %v579 = vsel %vm578, %v577, %v569
  %v580 = vrot.slane %v571, 6
  %vm581 = vcmask 1042434
  %v582 = vsel %vm581, %v580, %v579
  %v583 = vrot.slane %v572, 5
  %vm584 = vcmask 1043459
  %v585 = vsel %vm584, %v583, %v582
  %v586 = vrot.slane %v573, 4
  %vm587 = vcmask 1044484
  %v588 = vsel %vm587, %v586, %v585
  %v589 = vrot.slane %v574, 3
  %vm590 = vcmask 1045509
  %v591 = vsel %vm590, %v589, %v588
  %v592 = vrot.slane %v575, 2
  %vm593 = vcmask 1046534
  %v594 = vsel %vm593, %v592, %v591
  %v595 = vrot.slane %v576, 1
  %vm596 = vcmask 1047559
  %v597 = vsel %vm596, %v595, %v594
  %v598 = vpack.c.b16 %v597, %v597
  %v600 = vrot.slane %v569, 1
  %v601 = vsel %vm578, %v570, %v600
  %v602 = vrot.slane %v571, 7
  %v603 = vsel %vm581, %v602, %v601
  %v604 = vrot.slane %v572, 6
  %v605 = vsel %vm584, %v604, %v603
  %v606 = vrot.slane %v573, 5
  %v607 = vsel %vm587, %v606, %v605
  %v608 = vrot.slane %v574, 4
  %v609 = vsel %vm590, %v608, %v607
  %v610 = vrot.slane %v575, 3
  %v611 = vsel %vm593, %v610, %v609
  %v612 = vrot.slane %v576, 2
  %v613 = vsel %vm596, %v612, %v611
  %v614 = vpack.c.b16 %v613, %v613
  %v624 = vunpack.c.l.b16 %v514
  %v625 = vunpack.c.l.b16 %v518
  %v626 = vunpack.c.l.b16 %v522
  %v627 = vunpack.c.l.b16 %v526
  %v628 = vunpack.c.l.b16 %v530
  %v629 = vunpack.c.l.b16 %v534
  %v630 = vunpack.c.l.b16 %v538
  %v631 = vunpack.c.l.b16 %v542
  %v632 = vpack.c.b16 %v624, %v624
  %v633 = vpack.c.b16 %v625, %v625
  %v634 = vpack.c.b16 %v626, %v626
  %v635 = vpack.c.b16 %v627, %v627
  %v636 = vpack.c.b16 %v628, %v628
  %v637 = vpack.c.b16 %v629, %v629
  %v638 = vpack.c.b16 %v630, %v630
  %v639 = vpack.c.b16 %v631, %v631
  %v640 = vunpack.c.l.b16 %v632
  %v641 = vunpack.c.l.b16 %v633
  %v642 = vunpack.c.l.b16 %v634
  %v643 = vunpack.c.l.b16 %v635
  %v644 = vunpack.c.l.b16 %v636
  %v645 = vunpack.c.l.b16 %v637
  %v646 = vunpack.c.l.b16 %v638
  %v647 = vunpack.c.l.b16 %v639
  %v648 = vrot.slane %v641, 7
  %v649 = vsel %vm578, %v648, %v640
  %v650 = vrot.slane %v642, 6
  %v651 = vsel %vm581, %v650, %v649
  %v652 = vrot.slane %v643, 5
  %v653 = vsel %vm584, %v652, %v651
  %v654 = vrot.slane %v644, 4
  %v655 = vsel %vm587, %v654, %v653
  %v656 = vrot.slane %v645, 3
  %v657 = vsel %vm590, %v656, %v655
  %v658 = vrot.slane %v646, 2
  %v659 = vsel %vm593, %v658, %v657
  %v660 = vrot.slane %v647, 1
  %v661 = vsel %vm596, %v660, %v659
  %v662 = vpack.c.b16 %v661, %v661
  %v664 = vrot.slane %v640, 1
  %v665 = vsel %vm578, %v641, %v664
  %v666 = vrot.slane %v642, 7
  %v667 = vsel %vm581, %v666, %v665
  %v668 = vrot.slane %v643, 6
  %v669 = vsel %vm584, %v668, %v667
  %v670 = vrot.slane %v644, 5
  %v671 = vsel %vm587, %v670, %v669
  %v672 = vrot.slane %v645, 4
  %v673 = vsel %vm590, %v672, %v671
  %v674 = vrot.slane %v646, 3
  %v675 = vsel %vm593, %v674, %v673
  %v676 = vrot.slane %v647, 2
  %v677 = vsel %vm596, %v676, %v675
  %v678 = vpack.c.b16 %v677, %v677
  %v680 = vld [vmem:[%s1] sm:$0xf]
  %v681 = vld [vmem:[%s1 + $0x4] sm:$0xf]
  %v682 = vld [vmem:[%s1 + $0x8] sm:$0xf]
  %v683 = vld [vmem:[%s1 + $0xc] sm:$0xf]
  %v684 = vld [vmem:[%s1 + $0x10] sm:$0xf]
  %v685 = vld [vmem:[%s1 + $0x14] sm:$0xf]
  %v686 = vld [vmem:[%s1 + $0x18] sm:$0xf]
  %v687 = vld [vmem:[%s1 + $0x1c] sm:$0xf]
  %v688 = vld [vmem:[%s1 + $0x20] sm:$0xf]
  %v689 = vld [vmem:[%s1 + $0x24] sm:$0xf]
  %v690 = vld [vmem:[%s1 + $0x28] sm:$0xf]
  %v691 = vld [vmem:[%s1 + $0x2c] sm:$0xf]
  %v692 = vld [vmem:[%s1 + $0x30] sm:$0xf]
  %v693 = vld [vmem:[%s1 + $0x34] sm:$0xf]
  %v694 = vld [vmem:[%s1 + $0x38] sm:$0xf]
  %v695 = vld [vmem:[%s1 + $0x3c] sm:$0xf]
  %v696 = vld [vmem:[%s1 + $0x40] sm:$0xf]
  %v697 = vld [vmem:[%s1 + $0x44] sm:$0xf]
  %v698 = vld [vmem:[%s1 + $0x48] sm:$0xf]
  %v699 = vld [vmem:[%s1 + $0x4c] sm:$0xf]
  %v700 = vld [vmem:[%s1 + $0x50] sm:$0xf]
  %v701 = vld [vmem:[%s1 + $0x54] sm:$0xf]
  %v702 = vld [vmem:[%s1 + $0x58] sm:$0xf]
  %v703 = vld [vmem:[%s1 + $0x5c] sm:$0xf]
  %v704 = vld [vmem:[%s1 + $0x60] sm:$0xf]
  %v705 = vld [vmem:[%s1 + $0x64] sm:$0xf]
  %v706 = vld [vmem:[%s1 + $0x68] sm:$0xf]
  %v707 = vld [vmem:[%s1 + $0x6c] sm:$0xf]
  %v708 = vld [vmem:[%s1 + $0x70] sm:$0xf]
  %v709 = vld [vmem:[%s1 + $0x74] sm:$0xf]
  %v710 = vld [vmem:[%s1 + $0x78] sm:$0xf]
  %v711 = vld [vmem:[%s1 + $0x7c] sm:$0xf]
  %v712 = vld [vmem:[%s1 + $0x80] sm:$0xf]
  %v713 = vld [vmem:[%s1 + $0x84] sm:$0xf]
  %v714 = vld [vmem:[%s1 + $0x88] sm:$0xf]
  %v715 = vld [vmem:[%s1 + $0x8c] sm:$0xf]
  %v716 = vld [vmem:[%s1 + $0x90] sm:$0xf]
  %v717 = vld [vmem:[%s1 + $0x94] sm:$0xf]
  %v718 = vld [vmem:[%s1 + $0x98] sm:$0xf]
  %v719 = vld [vmem:[%s1 + $0x9c] sm:$0xf]
  %v720 = vld [vmem:[%s1 + $0xa0] sm:$0xf]
  %v721 = vld [vmem:[%s1 + $0xa4] sm:$0xf]
  %v722 = vld [vmem:[%s1 + $0xa8] sm:$0xf]
  %v723 = vld [vmem:[%s1 + $0xac] sm:$0xf]
  %v724 = vld [vmem:[%s1 + $0xb0] sm:$0xf]
  %v725 = vld [vmem:[%s1 + $0xb4] sm:$0xf]
  %v726 = vld [vmem:[%s1 + $0xb8] sm:$0xf]
  %v727 = vld [vmem:[%s1 + $0xbc] sm:$0xf]
  %v728 = vld [vmem:[%s1 + $0xc0] sm:$0xf]
  %v729 = vld [vmem:[%s1 + $0xc4] sm:$0xf]
  %v730 = vld [vmem:[%s1 + $0xc8] sm:$0xf]
  %v731 = vld [vmem:[%s1 + $0xcc] sm:$0xf]
  %v732 = vld [vmem:[%s1 + $0xd0] sm:$0xf]
  %v733 = vld [vmem:[%s1 + $0xd4] sm:$0xf]
  %v734 = vld [vmem:[%s1 + $0xd8] sm:$0xf]
  %v735 = vld [vmem:[%s1 + $0xdc] sm:$0xf]
  %v736 = vld [vmem:[%s1 + $0xe0] sm:$0xf]
  %v737 = vld [vmem:[%s1 + $0xe4] sm:$0xf]
  %v738 = vld [vmem:[%s1 + $0xe8] sm:$0xf]
  %v739 = vld [vmem:[%s1 + $0xec] sm:$0xf]
  %v740 = vld [vmem:[%s1 + $0xf0] sm:$0xf]
  %v741 = vld [vmem:[%s1 + $0xf4] sm:$0xf]
  %v742 = vld [vmem:[%s1 + $0xf8] sm:$0xf]
  %v743 = vld [vmem:[%s1 + $0xfc] sm:$0xf]
  %v744 = vld [vmem:[%s2] sm:$0x1]
  %v746 = vlaneseq
  %v747 = vshrl.u32 %v746, 7
  %v748 = vsub.s32 0, %v747
  %v749 = vrot.slane %v744, %v748
  %v815 = vunpack.c.l.b16 %v680
  %v816 = vunpack.c.l.b16 %v681
  %v817 = vunpack.c.l.b16 %v682
  %v818 = vunpack.c.l.b16 %v683
  %v819 = vunpack.c.l.b16 %v684
  %v820 = vunpack.c.l.b16 %v685
  %v821 = vunpack.c.l.b16 %v686
  %v822 = vunpack.c.l.b16 %v687
  %v823 = vunpack.c.l.b16 %v688
  %v824 = vunpack.c.l.b16 %v689
  %v825 = vunpack.c.l.b16 %v690
  %v826 = vunpack.c.l.b16 %v691
  %v827 = vunpack.c.l.b16 %v692
  %v828 = vunpack.c.l.b16 %v693
  %v829 = vunpack.c.l.b16 %v694
  %v830 = vunpack.c.l.b16 %v695
  %v831 = vunpack.c.l.b16 %v696
  %v832 = vunpack.c.l.b16 %v697
  %v833 = vunpack.c.l.b16 %v698
  %v834 = vunpack.c.l.b16 %v699
  %v835 = vunpack.c.l.b16 %v700
  %v836 = vunpack.c.l.b16 %v701
  %v837 = vunpack.c.l.b16 %v702
  %v838 = vunpack.c.l.b16 %v703
  %v839 = vunpack.c.l.b16 %v704
  %v840 = vunpack.c.l.b16 %v705
  %v841 = vunpack.c.l.b16 %v706
  %v842 = vunpack.c.l.b16 %v707
  %v843 = vunpack.c.l.b16 %v708
  %v844 = vunpack.c.l.b16 %v709
  %v845 = vunpack.c.l.b16 %v710
  %v846 = vunpack.c.l.b16 %v711
  %v847 = vunpack.c.l.b16 %v712
  %v848 = vunpack.c.l.b16 %v713
  %v849 = vunpack.c.l.b16 %v714
  %v850 = vunpack.c.l.b16 %v715
  %v851 = vunpack.c.l.b16 %v716
  %v852 = vunpack.c.l.b16 %v717
  %v853 = vunpack.c.l.b16 %v718
  %v854 = vunpack.c.l.b16 %v719
  %v855 = vunpack.c.l.b16 %v720
  %v856 = vunpack.c.l.b16 %v721
  %v857 = vunpack.c.l.b16 %v722
  %v858 = vunpack.c.l.b16 %v723
  %v859 = vunpack.c.l.b16 %v724
  %v860 = vunpack.c.l.b16 %v725
  %v861 = vunpack.c.l.b16 %v726
  %v862 = vunpack.c.l.b16 %v727
  %v863 = vunpack.c.l.b16 %v728
  %v864 = vunpack.c.l.b16 %v729
  %v865 = vunpack.c.l.b16 %v730
  %v866 = vunpack.c.l.b16 %v731
  %v867 = vunpack.c.l.b16 %v732
  %v868 = vunpack.c.l.b16 %v733
  %v869 = vunpack.c.l.b16 %v734
  %v870 = vunpack.c.l.b16 %v735
  %v871 = vunpack.c.l.b16 %v736
  %v872 = vunpack.c.l.b16 %v737
  %v873 = vunpack.c.l.b16 %v738
  %v874 = vunpack.c.l.b16 %v739
  %v875 = vunpack.c.l.b16 %v740
  %v876 = vunpack.c.l.b16 %v741
  %v877 = vunpack.c.l.b16 %v742
  %v878 = vunpack.c.l.b16 %v743
  %v879 = vpack.c.b16 %v816, %v815
  %v880 = vpack.c.b16 %v818, %v817
  %v881 = vpack.c.b16 %v820, %v819
  %v882 = vpack.c.b16 %v822, %v821
  %v883 = vpack.c.b16 %v824, %v823
  %v884 = vpack.c.b16 %v826, %v825
  %v885 = vpack.c.b16 %v828, %v827
  %v886 = vpack.c.b16 %v830, %v829
  %v887 = vpack.c.b16 %v832, %v831
  %v888 = vpack.c.b16 %v834, %v833
  %v889 = vpack.c.b16 %v836, %v835
  %v890 = vpack.c.b16 %v838, %v837
  %v891 = vpack.c.b16 %v840, %v839
  %v892 = vpack.c.b16 %v842, %v841
  %v893 = vpack.c.b16 %v844, %v843
  %v894 = vpack.c.b16 %v846, %v845
  %v895 = vpack.c.b16 %v848, %v847
  %v896 = vpack.c.b16 %v850, %v849
  %v897 = vpack.c.b16 %v852, %v851
  %v898 = vpack.c.b16 %v854, %v853
  %v899 = vpack.c.b16 %v856, %v855
  %v900 = vpack.c.b16 %v858, %v857
  %v901 = vpack.c.b16 %v860, %v859
  %v902 = vpack.c.b16 %v862, %v861
  %v903 = vpack.c.b16 %v864, %v863
  %v904 = vpack.c.b16 %v866, %v865
  %v905 = vpack.c.b16 %v868, %v867
  %v906 = vpack.c.b16 %v870, %v869
  %v907 = vpack.c.b16 %v872, %v871
  %v908 = vpack.c.b16 %v874, %v873
  %v909 = vpack.c.b16 %v876, %v875
  %v910 = vpack.c.b16 %v878, %v877
  %943 = vmatprep.subr.bf16.mxu0 0
  %944 = vmatpush1.bf16.msra.mxu0 %v879
  %945 = vmatprep.subr.bf16.mxu0 0
  %946 = vmatpush1.bf16.msra.mxu0 %v880
  %947 = vmatprep.subr.bf16.mxu0 0
  %948 = vmatpush1.bf16.msra.mxu0 %v881
  %949 = vmatprep.subr.bf16.mxu0 0
  %950 = vmatpush1.bf16.msra.mxu0 %v882
  %951 = vmatprep.subr.bf16.mxu0 0
  %952 = vmatpush1.bf16.msra.mxu0 %v883
  %953 = vmatprep.subr.bf16.mxu0 0
  %954 = vmatpush1.bf16.msra.mxu0 %v884
  %955 = vmatprep.subr.bf16.mxu0 0
  %956 = vmatpush1.bf16.msra.mxu0 %v885
  %957 = vmatprep.subr.bf16.mxu0 0
  %958 = vmatpush1.bf16.msra.mxu0 %v886
  %959 = vmatprep.subr.bf16.mxu0 0
  %960 = vmatpush1.bf16.msra.mxu0 %v887
  %961 = vmatprep.subr.bf16.mxu0 0
  %962 = vmatpush1.bf16.msra.mxu0 %v888
  %963 = vmatprep.subr.bf16.mxu0 0
  %964 = vmatpush1.bf16.msra.mxu0 %v889
  %965 = vmatprep.subr.bf16.mxu0 0
  %966 = vmatpush1.bf16.msra.mxu0 %v890
  %967 = vmatprep.subr.bf16.mxu0 0
  %968 = vmatpush1.bf16.msra.mxu0 %v891
  %969 = vmatprep.subr.bf16.mxu0 0
  %970 = vmatpush1.bf16.msra.mxu0 %v892
  %971 = vmatprep.subr.bf16.mxu0 0
  %972 = vmatpush1.bf16.msra.mxu0 %v893
  %973 = vmatprep.subr.bf16.mxu0 0
  %974 = vmatpush1.bf16.msra.mxu0 %v894
  %975 = vmatprep.mubr.bf16.mxu0 %v614
  %976 = vmatmul.mubr.bf16.gmra.mrb[0].mxu0 %v598
  %v977 = vpop.f32.mrb[0].mxu0
  %v978 = vadd.f32 %v749, %v977
  %v979 = vpop.f32.mrb[0].mxu0
  %v980 = vpop.f32.mrb[0].mxu0
  %v981 = vpop.f32.mrb[0].mxu0
  %982 = vdwg.mxu0
  %983 = vmatprep.subr.bf16.mxu0 0
  %984 = vmatpush1.bf16.msra.mxu0 %v895
  %985 = vmatprep.subr.bf16.mxu0 0
  %986 = vmatpush1.bf16.msra.mxu0 %v896
  %987 = vmatprep.subr.bf16.mxu0 0
  %988 = vmatpush1.bf16.msra.mxu0 %v897
  %989 = vmatprep.subr.bf16.mxu0 0
  %990 = vmatpush1.bf16.msra.mxu0 %v898
  %991 = vmatprep.subr.bf16.mxu0 0
  %992 = vmatpush1.bf16.msra.mxu0 %v899
  %993 = vmatprep.subr.bf16.mxu0 0
  %994 = vmatpush1.bf16.msra.mxu0 %v900
  %995 = vmatprep.subr.bf16.mxu0 0
  %996 = vmatpush1.bf16.msra.mxu0 %v901
  %997 = vmatprep.subr.bf16.mxu0 0
  %998 = vmatpush1.bf16.msra.mxu0 %v902
  %999 = vmatprep.subr.bf16.mxu0 0
  %1000 = vmatpush1.bf16.msra.mxu0 %v903
  %1001 = vmatprep.subr.bf16.mxu0 0
  %1002 = vmatpush1.bf16.msra.mxu0 %v904
  %1003 = vmatprep.subr.bf16.mxu0 0
  %1004 = vmatpush1.bf16.msra.mxu0 %v905
  %1005 = vmatprep.subr.bf16.mxu0 0
  %1006 = vmatpush1.bf16.msra.mxu0 %v906
  %1007 = vmatprep.subr.bf16.mxu0 0
  %1008 = vmatpush1.bf16.msra.mxu0 %v907
  %1009 = vmatprep.subr.bf16.mxu0 0
  %1010 = vmatpush1.bf16.msra.mxu0 %v908
  %1011 = vmatprep.subr.bf16.mxu0 0
  %1012 = vmatpush1.bf16.msra.mxu0 %v909
  %1013 = vmatprep.subr.bf16.mxu0 0
  %1014 = vmatpush1.bf16.msra.mxu0 %v910
  %1015 = vmatprep.mubr.bf16.mxu0 %v678
  %1016 = vmatmul.mubr.bf16.gmra.mrb[0].mxu0 %v662
  %v1017 = vpop.f32.mrb[0].mxu0
  %v1018 = vadd.f32 %v978, %v1017
  %v1019 = vpop.f32.mrb[0].mxu0
  %v1020 = vpop.f32.mrb[0].mxu0
  %v1021 = vpop.f32.mrb[0].mxu0
  %1022 = vdwg.mxu0
  %v1023 = vmax.f32 %v1018, 0.0
  %v1024 = vpack.c.bf16 %v1023, %v1023
  %v1025 = vld [vmem:[%s3] sm:$0xff]
  %v1026 = vld [vmem:[%s3 + $0x8] sm:$0xff]
  %v1027 = vld [vmem:[%s3 + $0x10] sm:$0xff]
  %v1028 = vld [vmem:[%s3 + $0x18] sm:$0xff]
  %v1029 = vld [vmem:[%s3 + $0x20] sm:$0xff]
  %v1030 = vld [vmem:[%s3 + $0x28] sm:$0xff]
  %v1031 = vld [vmem:[%s3 + $0x30] sm:$0xff]
  %v1032 = vld [vmem:[%s3 + $0x38] sm:$0xff]
  %v1033 = vld [vmem:[%s3 + $0x40] sm:$0xff]
  %v1034 = vld [vmem:[%s3 + $0x48] sm:$0xff]
  %v1035 = vld [vmem:[%s3 + $0x50] sm:$0xff]
  %v1036 = vld [vmem:[%s3 + $0x58] sm:$0xff]
  %v1037 = vld [vmem:[%s3 + $0x60] sm:$0xff]
  %v1038 = vld [vmem:[%s3 + $0x68] sm:$0xff]
  %v1039 = vld [vmem:[%s3 + $0x70] sm:$0xff]
  %v1040 = vld [vmem:[%s3 + $0x78] sm:$0xff]
  %v1041 = vld [vmem:[%s3 + $0x80] sm:$0xff]
  %v1042 = vld [vmem:[%s3 + $0x88] sm:$0xff]
  %v1043 = vld [vmem:[%s3 + $0x90] sm:$0xff]
  %v1044 = vld [vmem:[%s3 + $0x98] sm:$0xff]
  %v1045 = vld [vmem:[%s3 + $0xa0] sm:$0xff]
  %v1046 = vld [vmem:[%s3 + $0xa8] sm:$0xff]
  %v1047 = vld [vmem:[%s3 + $0xb0] sm:$0xff]
  %v1048 = vld [vmem:[%s3 + $0xb8] sm:$0xff]
  %v1049 = vld [vmem:[%s3 + $0xc0] sm:$0xff]
  %v1050 = vld [vmem:[%s3 + $0xc8] sm:$0xff]
  %v1051 = vld [vmem:[%s3 + $0xd0] sm:$0xff]
  %v1052 = vld [vmem:[%s3 + $0xd8] sm:$0xff]
  %v1053 = vld [vmem:[%s3 + $0xe0] sm:$0xff]
  %v1054 = vld [vmem:[%s3 + $0xe8] sm:$0xff]
  %v1055 = vld [vmem:[%s3 + $0xf0] sm:$0xff]
  %v1056 = vld [vmem:[%s3 + $0xf8] sm:$0xff]
  %v1057 = vld [vmem:[%s3 + $0x100] sm:$0xff]
  %v1058 = vld [vmem:[%s3 + $0x108] sm:$0xff]
  %v1059 = vld [vmem:[%s3 + $0x110] sm:$0xff]
  %v1060 = vld [vmem:[%s3 + $0x118] sm:$0xff]
  %v1061 = vld [vmem:[%s3 + $0x120] sm:$0xff]
  %v1062 = vld [vmem:[%s3 + $0x128] sm:$0xff]
  %v1063 = vld [vmem:[%s3 + $0x130] sm:$0xff]
  %v1064 = vld [vmem:[%s3 + $0x138] sm:$0xff]
  %v1065 = vld [vmem:[%s3 + $0x140] sm:$0xff]
  %v1066 = vld [vmem:[%s3 + $0x148] sm:$0xff]
  %v1067 = vld [vmem:[%s3 + $0x150] sm:$0xff]
  %v1068 = vld [vmem:[%s3 + $0x158] sm:$0xff]
  %v1069 = vld [vmem:[%s3 + $0x160] sm:$0xff]
  %v1070 = vld [vmem:[%s3 + $0x168] sm:$0xff]
  %v1071 = vld [vmem:[%s3 + $0x170] sm:$0xff]
  %v1072 = vld [vmem:[%s3 + $0x178] sm:$0xff]
  %v1073 = vsel %vm584, %v577, %v569
  %v1074 = vsel %vm587, %v580, %v1073
  %v1075 = vsel %vm590, %v583, %v1074
  %v1076 = vsel %vm593, %v586, %v1075
  %v1077 = vsel %vm596, %v589, %v1076
  %v1078 = vsel %vm578, %v595, %v592
  %v1079 = vpack.c.b16 %v1078, %v1077
  %v1080 = vsel %vm584, %v570, %v600
  %v1081 = vsel %vm587, %v602, %v1080
  %v1082 = vsel %vm590, %v604, %v1081
  %v1083 = vsel %vm593, %v606, %v1082
  %v1084 = vsel %vm596, %v608, %v1083
  %v1085 = vsel %vm578, %v612, %v610
  %v1086 = vpack.c.b16 %v1085, %v1084
  %v1087 = vsel %vm584, %v648, %v640
  %v1088 = vsel %vm587, %v650, %v1087
  %v1089 = vsel %vm590, %v652, %v1088
  %v1090 = vsel %vm593, %v654, %v1089
  %v1091 = vsel %vm596, %v656, %v1090
  %v1092 = vsel %vm578, %v660, %v658
  %v1093 = vpack.c.b16 %v1092, %v1091
  %v1094 = vsel %vm584, %v641, %v664
  %v1095 = vsel %vm587, %v666, %v1094
  %v1096 = vsel %vm590, %v668, %v1095
  %v1097 = vsel %vm593, %v670, %v1096
  %v1098 = vsel %vm596, %v672, %v1097
  %v1099 = vsel %vm578, %v676, %v674
  %v1100 = vpack.c.b16 %v1099, %v1098
  %v1101 = vrot.slane %v1079, 1
  %v1102 = vrot.slane %v1086, 1
  %v1103 = vrot.slane %v1093, 1
  %v1104 = vrot.slane %v1100, 1
  %1109 = vmatprep.subr.bf16.mxu0 0
  %1110 = vmatpush1.bf16.msra.mxu0 %v879
  %1111 = vmatprep.subr.bf16.mxu0 0
  %1112 = vmatpush1.bf16.msra.mxu0 %v880
  %1113 = vmatprep.subr.bf16.mxu0 0
  %1114 = vmatpush1.bf16.msra.mxu0 %v881
  %1115 = vmatprep.subr.bf16.mxu0 0
  %1116 = vmatpush1.bf16.msra.mxu0 %v882
  %1117 = vmatprep.subr.bf16.mxu0 0
  %1118 = vmatpush1.bf16.msra.mxu0 %v883
  %1119 = vmatprep.subr.bf16.mxu0 0
  %1120 = vmatpush1.bf16.msra.mxu0 %v884
  %1121 = vmatprep.subr.bf16.mxu0 0
  %1122 = vmatpush1.bf16.msra.mxu0 %v885
  %1123 = vmatprep.subr.bf16.mxu0 0
  %1124 = vmatpush1.bf16.msra.mxu0 %v886
  %1125 = vmatprep.subr.bf16.mxu0 0
  %1126 = vmatpush1.bf16.msra.mxu0 %v887
  %1127 = vmatprep.subr.bf16.mxu0 0
  %1128 = vmatpush1.bf16.msra.mxu0 %v888
  %1129 = vmatprep.subr.bf16.mxu0 0
  %1130 = vmatpush1.bf16.msra.mxu0 %v889
  %1131 = vmatprep.subr.bf16.mxu0 0
  %1132 = vmatpush1.bf16.msra.mxu0 %v890
  %1133 = vmatprep.subr.bf16.mxu0 0
  %1134 = vmatpush1.bf16.msra.mxu0 %v891
  %1135 = vmatprep.subr.bf16.mxu0 0
  %1136 = vmatpush1.bf16.msra.mxu0 %v892
  %1137 = vmatprep.subr.bf16.mxu0 0
  %1138 = vmatpush1.bf16.msra.mxu0 %v893
  %1139 = vmatprep.subr.bf16.mxu0 0
  %1140 = vmatpush1.bf16.msra.mxu0 %v894
  %1141 = vmatprep.mubr.bf16.mxu0 %v1102
  %1142 = vmatmul.mubr.bf16.gmra.mrb[0].mxu0 %v1101
  %v1143 = vpop.f32.mrb[0].mxu0
  %v1144 = vadd.f32 %v749, %v1143
  %v1145 = vpop.f32.mrb[0].mxu0
  %v1146 = vpop.f32.mrb[0].mxu0
  %v1147 = vpop.f32.mrb[0].mxu0
  %1148 = vdwg.mxu0
  %1149 = vmatprep.subr.bf16.mxu0 0
  %1150 = vmatpush1.bf16.msra.mxu0 %v895
  %1151 = vmatprep.subr.bf16.mxu0 0
  %1152 = vmatpush1.bf16.msra.mxu0 %v896
  %1153 = vmatprep.subr.bf16.mxu0 0
  %1154 = vmatpush1.bf16.msra.mxu0 %v897
  %1155 = vmatprep.subr.bf16.mxu0 0
  %1156 = vmatpush1.bf16.msra.mxu0 %v898
  %1157 = vmatprep.subr.bf16.mxu0 0
  %1158 = vmatpush1.bf16.msra.mxu0 %v899
  %1159 = vmatprep.subr.bf16.mxu0 0
  %1160 = vmatpush1.bf16.msra.mxu0 %v900
  %1161 = vmatprep.subr.bf16.mxu0 0
  %1162 = vmatpush1.bf16.msra.mxu0 %v901
  %1163 = vmatprep.subr.bf16.mxu0 0
  %1164 = vmatpush1.bf16.msra.mxu0 %v902
  %1165 = vmatprep.subr.bf16.mxu0 0
  %1166 = vmatpush1.bf16.msra.mxu0 %v903
  %1167 = vmatprep.subr.bf16.mxu0 0
  %1168 = vmatpush1.bf16.msra.mxu0 %v904
  %1169 = vmatprep.subr.bf16.mxu0 0
  %1170 = vmatpush1.bf16.msra.mxu0 %v905
  %1171 = vmatprep.subr.bf16.mxu0 0
  %1172 = vmatpush1.bf16.msra.mxu0 %v906
  %1173 = vmatprep.subr.bf16.mxu0 0
  %1174 = vmatpush1.bf16.msra.mxu0 %v907
  %1175 = vmatprep.subr.bf16.mxu0 0
  %1176 = vmatpush1.bf16.msra.mxu0 %v908
  %1177 = vmatprep.subr.bf16.mxu0 0
  %1178 = vmatpush1.bf16.msra.mxu0 %v909
  %1179 = vmatprep.subr.bf16.mxu0 0
  %1180 = vmatpush1.bf16.msra.mxu0 %v910
  %1181 = vmatprep.mubr.bf16.mxu0 %v1104
  %1182 = vmatmul.mubr.bf16.gmra.mrb[0].mxu0 %v1103
  %v1183 = vpop.f32.mrb[0].mxu0
  %v1184 = vadd.f32 %v1144, %v1183
  %v1185 = vpop.f32.mrb[0].mxu0
  %v1186 = vpop.f32.mrb[0].mxu0
  %v1187 = vpop.f32.mrb[0].mxu0
  %1188 = vdwg.mxu0
  %v1189 = vmax.f32 %v1184, 0.0
  %v1190 = vpack.c.bf16 %v1189, %v1189
  %s1191 = scalar_lea.vmem %s3, 384
  %v1192 = vld [vmem:[%s1191] sm:$0xff]
  %v1193 = vld [vmem:[%s1191 + $0x8] sm:$0xff]
  %v1194 = vld [vmem:[%s1191 + $0x10] sm:$0xff]
  %v1195 = vld [vmem:[%s1191 + $0x18] sm:$0xff]
  %v1196 = vld [vmem:[%s1191 + $0x20] sm:$0xff]
  %v1197 = vld [vmem:[%s1191 + $0x28] sm:$0xff]
  %v1198 = vld [vmem:[%s1191 + $0x30] sm:$0xff]
  %v1199 = vld [vmem:[%s1191 + $0x38] sm:$0xff]
  %v1200 = vld [vmem:[%s1191 + $0x40] sm:$0xff]
  %v1201 = vld [vmem:[%s1191 + $0x48] sm:$0xff]
  %v1202 = vld [vmem:[%s1191 + $0x50] sm:$0xff]
  %v1203 = vld [vmem:[%s1191 + $0x58] sm:$0xff]
  %v1204 = vld [vmem:[%s1191 + $0x60] sm:$0xff]
  %v1205 = vld [vmem:[%s1191 + $0x68] sm:$0xff]
  %v1206 = vld [vmem:[%s1191 + $0x70] sm:$0xff]
  %v1207 = vld [vmem:[%s1191 + $0x78] sm:$0xff]
  %v1208 = vld [vmem:[%s1191 + $0x80] sm:$0xff]
  %v1209 = vld [vmem:[%s1191 + $0x88] sm:$0xff]
  %v1210 = vld [vmem:[%s1191 + $0x90] sm:$0xff]
  %v1211 = vld [vmem:[%s1191 + $0x98] sm:$0xff]
  %v1212 = vld [vmem:[%s1191 + $0xa0] sm:$0xff]
  %v1213 = vld [vmem:[%s1191 + $0xa8] sm:$0xff]
  %v1214 = vld [vmem:[%s1191 + $0xb0] sm:$0xff]
  %v1215 = vld [vmem:[%s1191 + $0xb8] sm:$0xff]
  %v1216 = vld [vmem:[%s1191 + $0xc0] sm:$0xff]
  %v1217 = vld [vmem:[%s1191 + $0xc8] sm:$0xff]
  %v1218 = vld [vmem:[%s1191 + $0xd0] sm:$0xff]
  %v1219 = vld [vmem:[%s1191 + $0xd8] sm:$0xff]
  %v1220 = vld [vmem:[%s1191 + $0xe0] sm:$0xff]
  %v1221 = vld [vmem:[%s1191 + $0xe8] sm:$0xff]
  %v1222 = vld [vmem:[%s1191 + $0xf0] sm:$0xff]
  %v1223 = vld [vmem:[%s1191 + $0xf8] sm:$0xff]
  %v1224 = vld [vmem:[%s1191 + $0x100] sm:$0xff]
  %v1225 = vld [vmem:[%s1191 + $0x108] sm:$0xff]
  %v1226 = vld [vmem:[%s1191 + $0x110] sm:$0xff]
  %v1227 = vld [vmem:[%s1191 + $0x118] sm:$0xff]
  %v1228 = vld [vmem:[%s1191 + $0x120] sm:$0xff]
  %v1229 = vld [vmem:[%s1191 + $0x128] sm:$0xff]
  %v1230 = vld [vmem:[%s1191 + $0x130] sm:$0xff]
  %v1231 = vld [vmem:[%s1191 + $0x138] sm:$0xff]
  %v1232 = vld [vmem:[%s1191 + $0x140] sm:$0xff]
  %v1233 = vld [vmem:[%s1191 + $0x148] sm:$0xff]
  %v1234 = vld [vmem:[%s1191 + $0x150] sm:$0xff]
  %v1235 = vld [vmem:[%s1191 + $0x158] sm:$0xff]
  %v1236 = vld [vmem:[%s1191 + $0x160] sm:$0xff]
  %v1237 = vld [vmem:[%s1191 + $0x168] sm:$0xff]
  %v1238 = vld [vmem:[%s1191 + $0x170] sm:$0xff]
  %v1239 = vld [vmem:[%s1191 + $0x178] sm:$0xff]
  %v1288 = vunpack.c.l.b16 %v1192
  %v1289 = vunpack.c.h.b16 %v1192
  %v1290 = vunpack.c.l.b16 %v1193
  %v1291 = vunpack.c.h.b16 %v1193
  %v1292 = vunpack.c.l.b16 %v1194
  %v1293 = vunpack.c.h.b16 %v1194
  %v1294 = vunpack.c.l.b16 %v1195
  %v1295 = vunpack.c.h.b16 %v1195
  %v1296 = vunpack.c.l.b16 %v1196
  %v1297 = vunpack.c.h.b16 %v1196
  %v1298 = vunpack.c.l.b16 %v1197
  %v1299 = vunpack.c.h.b16 %v1197
  %v1300 = vunpack.c.l.b16 %v1198
  %v1301 = vunpack.c.h.b16 %v1198
  %v1302 = vunpack.c.l.b16 %v1199
  %v1303 = vunpack.c.h.b16 %v1199
  %v1304 = vunpack.c.l.b16 %v1200
  %v1305 = vunpack.c.h.b16 %v1200
  %v1306 = vunpack.c.l.b16 %v1201
  %v1307 = vunpack.c.h.b16 %v1201
  %v1308 = vunpack.c.l.b16 %v1202
  %v1309 = vunpack.c.h.b16 %v1202
  %v1310 = vunpack.c.l.b16 %v1203
  %v1311 = vunpack.c.h.b16 %v1203
  %v1312 = vunpack.c.l.b16 %v1204
  %v1313 = vunpack.c.h.b16 %v1204
  %v1314 = vunpack.c.l.b16 %v1205
  %v1315 = vunpack.c.h.b16 %v1205
  %v1316 = vunpack.c.l.b16 %v1206
  %v1317 = vunpack.c.h.b16 %v1206
  %v1318 = vunpack.c.l.b16 %v1207
  %v1319 = vunpack.c.h.b16 %v1207
  %v1320 = vunpack.c.l.b16 %v1208
  %v1321 = vunpack.c.h.b16 %v1208
  %v1322 = vunpack.c.l.b16 %v1209
  %v1323 = vunpack.c.h.b16 %v1209
  %v1324 = vunpack.c.l.b16 %v1210
  %v1325 = vunpack.c.h.b16 %v1210
  %v1326 = vunpack.c.l.b16 %v1211
  %v1327 = vunpack.c.h.b16 %v1211
  %v1328 = vunpack.c.l.b16 %v1212
  %v1329 = vunpack.c.h.b16 %v1212
  %v1330 = vunpack.c.l.b16 %v1213
  %v1331 = vunpack.c.h.b16 %v1213
  %v1332 = vunpack.c.l.b16 %v1214
  %v1333 = vunpack.c.h.b16 %v1214
  %v1334 = vunpack.c.l.b16 %v1215
  %v1335 = vunpack.c.h.b16 %v1215
  %v1336 = vunpack.c.l.b16 %v1216
  %v1337 = vunpack.c.h.b16 %v1216
  %v1338 = vunpack.c.l.b16 %v1217
  %v1339 = vunpack.c.h.b16 %v1217
  %v1340 = vunpack.c.l.b16 %v1218
  %v1341 = vunpack.c.h.b16 %v1218
  %v1342 = vunpack.c.l.b16 %v1219
  %v1343 = vunpack.c.h.b16 %v1219
  %v1344 = vunpack.c.l.b16 %v1220
  %v1345 = vunpack.c.h.b16 %v1220
  %v1346 = vunpack.c.l.b16 %v1221
  %v1347 = vunpack.c.h.b16 %v1221
  %v1348 = vunpack.c.l.b16 %v1222
  %v1349 = vunpack.c.h.b16 %v1222
  %v1350 = vunpack.c.l.b16 %v1223
  %v1351 = vunpack.c.h.b16 %v1223
  %v1352 = vunpack.c.l.b16 %v1224
  %v1353 = vunpack.c.h.b16 %v1224
  %v1354 = vunpack.c.l.b16 %v1225
  %v1355 = vunpack.c.h.b16 %v1225
  %v1356 = vunpack.c.l.b16 %v1226
  %v1357 = vunpack.c.h.b16 %v1226
  %v1358 = vunpack.c.l.b16 %v1227
  %v1359 = vunpack.c.h.b16 %v1227
  %v1360 = vunpack.c.l.b16 %v1228
  %v1361 = vunpack.c.h.b16 %v1228
  %v1362 = vunpack.c.l.b16 %v1229
  %v1363 = vunpack.c.h.b16 %v1229
  %v1364 = vunpack.c.l.b16 %v1230
  %v1365 = vunpack.c.h.b16 %v1230
  %v1366 = vunpack.c.l.b16 %v1231
  %v1367 = vunpack.c.h.b16 %v1231
  %v1368 = vunpack.c.l.b16 %v1232
  %v1369 = vunpack.c.h.b16 %v1232
  %v1370 = vunpack.c.l.b16 %v1233
  %v1371 = vunpack.c.h.b16 %v1233
  %v1372 = vunpack.c.l.b16 %v1234
  %v1373 = vunpack.c.h.b16 %v1234
  %v1374 = vunpack.c.l.b16 %v1235
  %v1375 = vunpack.c.h.b16 %v1235
  %v1376 = vunpack.c.l.b16 %v1236
  %v1377 = vunpack.c.h.b16 %v1236
  %v1378 = vunpack.c.l.b16 %v1237
  %v1379 = vunpack.c.h.b16 %v1237
  %v1380 = vunpack.c.l.b16 %v1238
  %v1381 = vunpack.c.h.b16 %v1238
  %v1382 = vunpack.c.l.b16 %v1239
  %v1383 = vunpack.c.h.b16 %v1239
  %v1384 = vpack.c.b16 %v1294, %v1288
  %v1385 = vpack.c.b16 %v1295, %v1289
  %v1386 = vpack.c.b16 %v1296, %v1290
  %v1387 = vpack.c.b16 %v1297, %v1291
  %v1388 = vpack.c.b16 %v1298, %v1292
  %v1389 = vpack.c.b16 %v1299, %v1293
  %v1390 = vpack.c.b16 %v1306, %v1300
  %v1391 = vpack.c.b16 %v1307, %v1301
  %v1392 = vpack.c.b16 %v1308, %v1302
  %v1393 = vpack.c.b16 %v1309, %v1303
  %v1394 = vpack.c.b16 %v1310, %v1304
  %v1395 = vpack.c.b16 %v1311, %v1305
  %v1396 = vpack.c.b16 %v1318, %v1312
  %v1397 = vpack.c.b16 %v1319, %v1313
  %v1398 = vpack.c.b16 %v1320, %v1314
  %v1399 = vpack.c.b16 %v1321, %v1315
  %v1400 = vpack.c.b16 %v1322, %v1316
  %v1401 = vpack.c.b16 %v1323, %v1317
  %v1402 = vpack.c.b16 %v1330, %v1324
  %v1403 = vpack.c.b16 %v1331, %v1325
  %v1404 = vpack.c.b16 %v1332, %v1326
  %v1405 = vpack.c.b16 %v1333, %v1327
  %v1406 = vpack.c.b16 %v1334, %v1328
  %v1407 = vpack.c.b16 %v1335, %v1329
  %v1408 = vpack.c.b16 %v1342, %v1336
  %v1409 = vpack.c.b16 %v1343, %v1337
  %v1410 = vpack.c.b16 %v1344, %v1338
  %v1411 = vpack.c.b16 %v1345, %v1339
  %v1412 = vpack.c.b16 %v1346, %v1340
  %v1413 = vpack.c.b16 %v1347, %v1341
  %v1414 = vpack.c.b16 %v1354, %v1348
  %v1415 = vpack.c.b16 %v1355, %v1349
  %v1416 = vpack.c.b16 %v1356, %v1350
  %v1417 = vpack.c.b16 %v1357, %v1351
  %v1418 = vpack.c.b16 %v1358, %v1352
  %v1419 = vpack.c.b16 %v1359, %v1353
  %v1420 = vpack.c.b16 %v1366, %v1360
  %v1421 = vpack.c.b16 %v1367, %v1361
  %v1422 = vpack.c.b16 %v1368, %v1362
  %v1423 = vpack.c.b16 %v1369, %v1363
  %v1424 = vpack.c.b16 %v1370, %v1364
  %v1425 = vpack.c.b16 %v1371, %v1365
  %v1426 = vpack.c.b16 %v1378, %v1372
  %v1427 = vpack.c.b16 %v1379, %v1373
  %v1428 = vpack.c.b16 %v1380, %v1374
  %v1429 = vpack.c.b16 %v1381, %v1375
  %v1430 = vpack.c.b16 %v1382, %v1376
  %v1431 = vpack.c.b16 %v1383, %v1377
  %1480 = vmatprep.subr.bf16.mxu0 %v1385
  %1481 = vmatpush1.bf16.msra.mxu0 %v1384
  %1482 = vmatprep.subr.bf16.mxu0 %v1391
  %1483 = vmatpush1.bf16.msra.mxu0 %v1390
  %1484 = vmatprep.subr.bf16.mxu0 %v1397
  %1485 = vmatpush1.bf16.msra.mxu0 %v1396
  %1486 = vmatprep.subr.bf16.mxu0 %v1403
  %1487 = vmatpush1.bf16.msra.mxu0 %v1402
  %1488 = vmatprep.subr.bf16.mxu0 %v1409
  %1489 = vmatpush1.bf16.msra.mxu0 %v1408
  %1490 = vmatprep.subr.bf16.mxu0 %v1415
  %1491 = vmatpush1.bf16.msra.mxu0 %v1414
  %1492 = vmatprep.subr.bf16.mxu0 %v1421
  %1493 = vmatpush1.bf16.msra.mxu0 %v1420
  %1494 = vmatprep.subr.bf16.mxu0 %v1427
  %1495 = vmatpush1.bf16.msra.mxu0 %v1426
  %1496 = vmatprep.subr.bf16.mxu0 0
  %1497 = vmatpush1.bf16.msra.mxu0 0
  %1498 = vmatprep.subr.bf16.mxu0 0
  %1499 = vmatpush1.bf16.msra.mxu0 0
  %1500 = vmatprep.subr.bf16.mxu0 0
  %1501 = vmatpush1.bf16.msra.mxu0 0
  %1502 = vmatprep.subr.bf16.mxu0 0
  %1503 = vmatpush1.bf16.msra.mxu0 0
  %1504 = vmatprep.subr.bf16.mxu0 0
  %1505 = vmatpush1.bf16.msra.mxu0 0
  %1506 = vmatprep.subr.bf16.mxu0 0
  %1507 = vmatpush1.bf16.msra.mxu0 0
  %1508 = vmatprep.subr.bf16.mxu0 0
  %1509 = vmatpush1.bf16.msra.mxu0 0
  %1510 = vmatprep.subr.bf16.mxu0 0
  %1511 = vmatpush1.bf16.msra.mxu0 0
  %1512 = vmatprep.mubr.bf16.mxu0 0
  %1513 = vmatmul.mubr.bf16.gmra.mrb[0].mxu0 %v1190
  %v1514 = vpop.f32.mrb[0].mxu0
  %v1515 = vadd.f32 0.0, %v1514
  %v1516 = vpop.f32.mrb[0].mxu0
  %v1517 = vadd.f32 0.0, %v1516
  %v1518 = vpop.f32.mrb[0].mxu0
  %v1519 = vpop.f32.mrb[0].mxu0
  %1520 = vdwg.mxu0
  %1521 = vmatprep.subr.bf16.mxu0 %v1387
  %1522 = vmatpush1.bf16.msra.mxu0 %v1386
  %1523 = vmatprep.subr.bf16.mxu0 %v1393
  %1524 = vmatpush1.bf16.msra.mxu0 %v1392
  %1525 = vmatprep.subr.bf16.mxu0 %v1399
  %1526 = vmatpush1.bf16.msra.mxu0 %v1398
  %1527 = vmatprep.subr.bf16.mxu0 %v1405
  %1528 = vmatpush1.bf16.msra.mxu0 %v1404
  %1529 = vmatprep.subr.bf16.mxu0 %v1411
  %1530 = vmatpush1.bf16.msra.mxu0 %v1410
  %1531 = vmatprep.subr.bf16.mxu0 %v1417
  %1532 = vmatpush1.bf16.msra.mxu0 %v1416
  %1533 = vmatprep.subr.bf16.mxu0 %v1423
  %1534 = vmatpush1.bf16.msra.mxu0 %v1422
  %1535 = vmatprep.subr.bf16.mxu0 %v1429
  %1536 = vmatpush1.bf16.msra.mxu0 %v1428
  %1537 = vmatprep.subr.bf16.mxu0 0
  %1538 = vmatpush1.bf16.msra.mxu0 0
  %1539 = vmatprep.subr.bf16.mxu0 0
  %1540 = vmatpush1.bf16.msra.mxu0 0
  %1541 = vmatprep.subr.bf16.mxu0 0
  %1542 = vmatpush1.bf16.msra.mxu0 0
  %1543 = vmatprep.subr.bf16.mxu0 0
  %1544 = vmatpush1.bf16.msra.mxu0 0
  %1545 = vmatprep.subr.bf16.mxu0 0
  %1546 = vmatpush1.bf16.msra.mxu0 0
  %1547 = vmatprep.subr.bf16.mxu0 0
  %1548 = vmatpush1.bf16.msra.mxu0 0
  %1549 = vmatprep.subr.bf16.mxu0 0
  %1550 = vmatpush1.bf16.msra.mxu0 0
  %1551 = vmatprep.subr.bf16.mxu0 0
  %1552 = vmatpush1.bf16.msra.mxu0 0
  %1553 = vmatprep.mubr.bf16.mxu0 0
  %1554 = vmatmul.mubr.bf16.gmra.mrb[0].mxu0 %v1190
  %v1555 = vpop.f32.mrb[0].mxu0
  %v1556 = vadd.f32 0.0, %v1555
  %v1557 = vpop.f32.mrb[0].mxu0
  %v1558 = vadd.f32 0.0, %v1557
  %v1559 = vpop.f32.mrb[0].mxu0
  %v1560 = vpop.f32.mrb[0].mxu0
  %1561 = vdwg.mxu0
  %1562 = vmatprep.subr.bf16.mxu0 %v1389
  %1563 = vmatpush1.bf16.msra.mxu0 %v1388
  %1564 = vmatprep.subr.bf16.mxu0 %v1395
  %1565 = vmatpush1.bf16.msra.mxu0 %v1394
  %1566 = vmatprep.subr.bf16.mxu0 %v1401
  %1567 = vmatpush1.bf16.msra.mxu0 %v1400
  %1568 = vmatprep.subr.bf16.mxu0 %v1407
  %1569 = vmatpush1.bf16.msra.mxu0 %v1406
  %1570 = vmatprep.subr.bf16.mxu0 %v1413
  %1571 = vmatpush1.bf16.msra.mxu0 %v1412
  %1572 = vmatprep.subr.bf16.mxu0 %v1419
  %1573 = vmatpush1.bf16.msra.mxu0 %v1418
  %1574 = vmatprep.subr.bf16.mxu0 %v1425
  %1575 = vmatpush1.bf16.msra.mxu0 %v1424
  %1576 = vmatprep.subr.bf16.mxu0 %v1431
  %1577 = vmatpush1.bf16.msra.mxu0 %v1430
  %1578 = vmatprep.subr.bf16.mxu0 0
  %1579 = vmatpush1.bf16.msra.mxu0 0
  %1580 = vmatprep.subr.bf16.mxu0 0
  %1581 = vmatpush1.bf16.msra.mxu0 0
  %1582 = vmatprep.subr.bf16.mxu0 0
  %1583 = vmatpush1.bf16.msra.mxu0 0
  %1584 = vmatprep.subr.bf16.mxu0 0
  %1585 = vmatpush1.bf16.msra.mxu0 0
  %1586 = vmatprep.subr.bf16.mxu0 0
  %1587 = vmatpush1.bf16.msra.mxu0 0
  %1588 = vmatprep.subr.bf16.mxu0 0
  %1589 = vmatpush1.bf16.msra.mxu0 0
  %1590 = vmatprep.subr.bf16.mxu0 0
  %1591 = vmatpush1.bf16.msra.mxu0 0
  %1592 = vmatprep.subr.bf16.mxu0 0
  %1593 = vmatpush1.bf16.msra.mxu0 0
  %1594 = vmatprep.mubr.bf16.mxu0 0
  %1595 = vmatmul.mubr.bf16.gmra.mrb[0].mxu0 %v1190
  %v1596 = vpop.f32.mrb[0].mxu0
  %v1597 = vadd.f32 0.0, %v1596
  %v1598 = vpop.f32.mrb[0].mxu0
  %v1599 = vadd.f32 0.0, %v1598
  %v1600 = vpop.f32.mrb[0].mxu0
  %v1601 = vpop.f32.mrb[0].mxu0
  %1602 = vdwg.mxu0
  %v1651 = vunpack.c.l.b16 %v1025
  %v1652 = vunpack.c.h.b16 %v1025
  %v1653 = vunpack.c.l.b16 %v1026
  %v1654 = vunpack.c.h.b16 %v1026
  %v1655 = vunpack.c.l.b16 %v1027
  %v1656 = vunpack.c.h.b16 %v1027
  %v1657 = vunpack.c.l.b16 %v1028
  %v1658 = vunpack.c.h.b16 %v1028
  %v1659 = vunpack.c.l.b16 %v1029
  %v1660 = vunpack.c.h.b16 %v1029
  %v1661 = vunpack.c.l.b16 %v1030
  %v1662 = vunpack.c.h.b16 %v1030
  %v1663 = vunpack.c.l.b16 %v1031
  %v1664 = vunpack.c.h.b16 %v1031
  %v1665 = vunpack.c.l.b16 %v1032
  %v1666 = vunpack.c.h.b16 %v1032
  %v1667 = vunpack.c.l.b16 %v1033
  %v1668 = vunpack.c.h.b16 %v1033
  %v1669 = vunpack.c.l.b16 %v1034
  %v1670 = vunpack.c.h.b16 %v1034
  %v1671 = vunpack.c.l.b16 %v1035
  %v1672 = vunpack.c.h.b16 %v1035
  %v1673 = vunpack.c.l.b16 %v1036
  %v1674 = vunpack.c.h.b16 %v1036
  %v1675 = vunpack.c.l.b16 %v1037
  %v1676 = vunpack.c.h.b16 %v1037
  %v1677 = vunpack.c.l.b16 %v1038
  %v1678 = vunpack.c.h.b16 %v1038
  %v1679 = vunpack.c.l.b16 %v1039
  %v1680 = vunpack.c.h.b16 %v1039
  %v1681 = vunpack.c.l.b16 %v1040
  %v1682 = vunpack.c.h.b16 %v1040
  %v1683 = vunpack.c.l.b16 %v1041
  %v1684 = vunpack.c.h.b16 %v1041
  %v1685 = vunpack.c.l.b16 %v1042
  %v1686 = vunpack.c.h.b16 %v1042
  %v1687 = vunpack.c.l.b16 %v1043
  %v1688 = vunpack.c.h.b16 %v1043
  %v1689 = vunpack.c.l.b16 %v1044
  %v1690 = vunpack.c.h.b16 %v1044
  %v1691 = vunpack.c.l.b16 %v1045
  %v1692 = vunpack.c.h.b16 %v1045
  %v1693 = vunpack.c.l.b16 %v1046
  %v1694 = vunpack.c.h.b16 %v1046
  %v1695 = vunpack.c.l.b16 %v1047
  %v1696 = vunpack.c.h.b16 %v1047
  %v1697 = vunpack.c.l.b16 %v1048
  %v1698 = vunpack.c.h.b16 %v1048
  %v1699 = vunpack.c.l.b16 %v1049
  %v1700 = vunpack.c.h.b16 %v1049
  %v1701 = vunpack.c.l.b16 %v1050
  %v1702 = vunpack.c.h.b16 %v1050
  %v1703 = vunpack.c.l.b16 %v1051
  %v1704 = vunpack.c.h.b16 %v1051
  %v1705 = vunpack.c.l.b16 %v1052
  %v1706 = vunpack.c.h.b16 %v1052
  %v1707 = vunpack.c.l.b16 %v1053
  %v1708 = vunpack.c.h.b16 %v1053
  %v1709 = vunpack.c.l.b16 %v1054
  %v1710 = vunpack.c.h.b16 %v1054
  %v1711 = vunpack.c.l.b16 %v1055
  %v1712 = vunpack.c.h.b16 %v1055
  %v1713 = vunpack.c.l.b16 %v1056
  %v1714 = vunpack.c.h.b16 %v1056
  %v1715 = vunpack.c.l.b16 %v1057
  %v1716 = vunpack.c.h.b16 %v1057
  %v1717 = vunpack.c.l.b16 %v1058
  %v1718 = vunpack.c.h.b16 %v1058
  %v1719 = vunpack.c.l.b16 %v1059
  %v1720 = vunpack.c.h.b16 %v1059
  %v1721 = vunpack.c.l.b16 %v1060
  %v1722 = vunpack.c.h.b16 %v1060
  %v1723 = vunpack.c.l.b16 %v1061
  %v1724 = vunpack.c.h.b16 %v1061
  %v1725 = vunpack.c.l.b16 %v1062
  %v1726 = vunpack.c.h.b16 %v1062
  %v1727 = vunpack.c.l.b16 %v1063
  %v1728 = vunpack.c.h.b16 %v1063
  %v1729 = vunpack.c.l.b16 %v1064
  %v1730 = vunpack.c.h.b16 %v1064
  %v1731 = vunpack.c.l.b16 %v1065
  %v1732 = vunpack.c.h.b16 %v1065
  %v1733 = vunpack.c.l.b16 %v1066
  %v1734 = vunpack.c.h.b16 %v1066
  %v1735 = vunpack.c.l.b16 %v1067
  %v1736 = vunpack.c.h.b16 %v1067
  %v1737 = vunpack.c.l.b16 %v1068
  %v1738 = vunpack.c.h.b16 %v1068
  %v1739 = vunpack.c.l.b16 %v1069
  %v1740 = vunpack.c.h.b16 %v1069
  %v1741 = vunpack.c.l.b16 %v1070
  %v1742 = vunpack.c.h.b16 %v1070
  %v1743 = vunpack.c.l.b16 %v1071
  %v1744 = vunpack.c.h.b16 %v1071
  %v1745 = vunpack.c.l.b16 %v1072
  %v1746 = vunpack.c.h.b16 %v1072
  %v1747 = vpack.c.b16 %v1657, %v1651
  %v1748 = vpack.c.b16 %v1658, %v1652
  %v1749 = vpack.c.b16 %v1659, %v1653
  %v1750 = vpack.c.b16 %v1660, %v1654
  %v1751 = vpack.c.b16 %v1661, %v1655
  %v1752 = vpack.c.b16 %v1662, %v1656
  %v1753 = vpack.c.b16 %v1669, %v1663
  %v1754 = vpack.c.b16 %v1670, %v1664
  %v1755 = vpack.c.b16 %v1671, %v1665
  %v1756 = vpack.c.b16 %v1672, %v1666
  %v1757 = vpack.c.b16 %v1673, %v1667
  %v1758 = vpack.c.b16 %v1674, %v1668
  %v1759 = vpack.c.b16 %v1681, %v1675
  %v1760 = vpack.c.b16 %v1682, %v1676
  %v1761 = vpack.c.b16 %v1683, %v1677
  %v1762 = vpack.c.b16 %v1684, %v1678
  %v1763 = vpack.c.b16 %v1685, %v1679
  %v1764 = vpack.c.b16 %v1686, %v1680
  %v1765 = vpack.c.b16 %v1693, %v1687
  %v1766 = vpack.c.b16 %v1694, %v1688
  %v1767 = vpack.c.b16 %v1695, %v1689
  %v1768 = vpack.c.b16 %v1696, %v1690
  %v1769 = vpack.c.b16 %v1697, %v1691
  %v1770 = vpack.c.b16 %v1698, %v1692
  %v1771 = vpack.c.b16 %v1705, %v1699
  %v1772 = vpack.c.b16 %v1706, %v1700
  %v1773 = vpack.c.b16 %v1707, %v1701
  %v1774 = vpack.c.b16 %v1708, %v1702
  %v1775 = vpack.c.b16 %v1709, %v1703
  %v1776 = vpack.c.b16 %v1710, %v1704
  %v1777 = vpack.c.b16 %v1717, %v1711
  %v1778 = vpack.c.b16 %v1718, %v1712
  %v1779 = vpack.c.b16 %v1719, %v1713
  %v1780 = vpack.c.b16 %v1720, %v1714
  %v1781 = vpack.c.b16 %v1721, %v1715
  %v1782 = vpack.c.b16 %v1722, %v1716
  %v1783 = vpack.c.b16 %v1729, %v1723
  %v1784 = vpack.c.b16 %v1730, %v1724
  %v1785 = vpack.c.b16 %v1731, %v1725
  %v1786 = vpack.c.b16 %v1732, %v1726
  %v1787 = vpack.c.b16 %v1733, %v1727
  %v1788 = vpack.c.b16 %v1734, %v1728
  %v1789 = vpack.c.b16 %v1741, %v1735
  %v1790 = vpack.c.b16 %v1742, %v1736
  %v1791 = vpack.c.b16 %v1743, %v1737
  %v1792 = vpack.c.b16 %v1744, %v1738
  %v1793 = vpack.c.b16 %v1745, %v1739
  %v1794 = vpack.c.b16 %v1746, %v1740
  %1843 = vmatprep.subr.bf16.mxu0 %v1748
  %1844 = vmatpush1.bf16.msra.mxu0 %v1747
  %1845 = vmatprep.subr.bf16.mxu0 %v1754
  %1846 = vmatpush1.bf16.msra.mxu0 %v1753
  %1847 = vmatprep.subr.bf16.mxu0 %v1760
  %1848 = vmatpush1.bf16.msra.mxu0 %v1759
  %1849 = vmatprep.subr.bf16.mxu0 %v1766
  %1850 = vmatpush1.bf16.msra.mxu0 %v1765
  %1851 = vmatprep.subr.bf16.mxu0 %v1772
  %1852 = vmatpush1.bf16.msra.mxu0 %v1771
  %1853 = vmatprep.subr.bf16.mxu0 %v1778
  %1854 = vmatpush1.bf16.msra.mxu0 %v1777
  %1855 = vmatprep.subr.bf16.mxu0 %v1784
  %1856 = vmatpush1.bf16.msra.mxu0 %v1783
  %1857 = vmatprep.subr.bf16.mxu0 %v1790
  %1858 = vmatpush1.bf16.msra.mxu0 %v1789
  %1859 = vmatprep.subr.bf16.mxu0 0
  %1860 = vmatpush1.bf16.msra.mxu0 0
  %1861 = vmatprep.subr.bf16.mxu0 0
  %1862 = vmatpush1.bf16.msra.mxu0 0
  %1863 = vmatprep.subr.bf16.mxu0 0
  %1864 = vmatpush1.bf16.msra.mxu0 0
  %1865 = vmatprep.subr.bf16.mxu0 0
  %1866 = vmatpush1.bf16.msra.mxu0 0
  %1867 = vmatprep.subr.bf16.mxu0 0
  %1868 = vmatpush1.bf16.msra.mxu0 0
  %1869 = vmatprep.subr.bf16.mxu0 0
  %1870 = vmatpush1.bf16.msra.mxu0 0
  %1871 = vmatprep.subr.bf16.mxu0 0
  %1872 = vmatpush1.bf16.msra.mxu0 0
  %1873 = vmatprep.subr.bf16.mxu0 0
  %1874 = vmatpush1.bf16.msra.mxu0 0
  %1875 = vmatprep.mubr.bf16.mxu0 0
  %1876 = vmatmul.mubr.bf16.gmra.mrb[0].mxu0 %v1024
  %v1877 = vpop.f32.mrb[0].mxu0
  %v1878 = vadd.f32 %v1515, %v1877
  %v1879 = vpop.f32.mrb[0].mxu0
  %v1880 = vadd.f32 %v1517, %v1879
  %v1881 = vpop.f32.mrb[0].mxu0
  %v1882 = vpop.f32.mrb[0].mxu0
  %1883 = vdwg.mxu0
  %1884 = vmatprep.subr.bf16.mxu0 %v1750
  %1885 = vmatpush1.bf16.msra.mxu0 %v1749
  %1886 = vmatprep.subr.bf16.mxu0 %v1756
  %1887 = vmatpush1.bf16.msra.mxu0 %v1755
  %1888 = vmatprep.subr.bf16.mxu0 %v1762
  %1889 = vmatpush1.bf16.msra.mxu0 %v1761
  %1890 = vmatprep.subr.bf16.mxu0 %v1768
  %1891 = vmatpush1.bf16.msra.mxu0 %v1767
  %1892 = vmatprep.subr.bf16.mxu0 %v1774
  %1893 = vmatpush1.bf16.msra.mxu0 %v1773
  %1894 = vmatprep.subr.bf16.mxu0 %v1780
  %1895 = vmatpush1.bf16.msra.mxu0 %v1779
  %1896 = vmatprep.subr.bf16.mxu0 %v1786
  %1897 = vmatpush1.bf16.msra.mxu0 %v1785
  %1898 = vmatprep.subr.bf16.mxu0 %v1792
  %1899 = vmatpush1.bf16.msra.mxu0 %v1791
  %1900 = vmatprep.subr.bf16.mxu0 0
  %1901 = vmatpush1.bf16.msra.mxu0 0
  %1902 = vmatprep.subr.bf16.mxu0 0
  %1903 = vmatpush1.bf16.msra.mxu0 0
  %1904 = vmatprep.subr.bf16.mxu0 0
  %1905 = vmatpush1.bf16.msra.mxu0 0
  %1906 = vmatprep.subr.bf16.mxu0 0
  %1907 = vmatpush1.bf16.msra.mxu0 0
  %1908 = vmatprep.subr.bf16.mxu0 0
  %1909 = vmatpush1.bf16.msra.mxu0 0
  %1910 = vmatprep.subr.bf16.mxu0 0
  %1911 = vmatpush1.bf16.msra.mxu0 0
  %1912 = vmatprep.subr.bf16.mxu0 0
  %1913 = vmatpush1.bf16.msra.mxu0 0
  %1914 = vmatprep.subr.bf16.mxu0 0
  %1915 = vmatpush1.bf16.msra.mxu0 0
  %1916 = vmatprep.mubr.bf16.mxu0 0
  %1917 = vmatmul.mubr.bf16.gmra.mrb[0].mxu0 %v1024
  %v1918 = vpop.f32.mrb[0].mxu0
  %v1919 = vadd.f32 %v1556, %v1918
  %v1920 = vpop.f32.mrb[0].mxu0
  %v1921 = vadd.f32 %v1558, %v1920
  %v1922 = vpop.f32.mrb[0].mxu0
  %v1923 = vpop.f32.mrb[0].mxu0
  %1924 = vdwg.mxu0
  %1925 = vmatprep.subr.bf16.mxu0 %v1752
  %1926 = vmatpush1.bf16.msra.mxu0 %v1751
  %1927 = vmatprep.subr.bf16.mxu0 %v1758
  %1928 = vmatpush1.bf16.msra.mxu0 %v1757
  %1929 = vmatprep.subr.bf16.mxu0 %v1764
  %1930 = vmatpush1.bf16.msra.mxu0 %v1763
  %1931 = vmatprep.subr.bf16.mxu0 %v1770
  %1932 = vmatpush1.bf16.msra.mxu0 %v1769
  %1933 = vmatprep.subr.bf16.mxu0 %v1776
  %1934 = vmatpush1.bf16.msra.mxu0 %v1775
  %1935 = vmatprep.subr.bf16.mxu0 %v1782
  %1936 = vmatpush1.bf16.msra.mxu0 %v1781
  %1937 = vmatprep.subr.bf16.mxu0 %v1788
  %1938 = vmatpush1.bf16.msra.mxu0 %v1787
  %1939 = vmatprep.subr.bf16.mxu0 %v1794
  %1940 = vmatpush1.bf16.msra.mxu0 %v1793
  %1941 = vmatprep.subr.bf16.mxu0 0
  %1942 = vmatpush1.bf16.msra.mxu0 0
  %1943 = vmatprep.subr.bf16.mxu0 0
  %1944 = vmatpush1.bf16.msra.mxu0 0
  %1945 = vmatprep.subr.bf16.mxu0 0
  %1946 = vmatpush1.bf16.msra.mxu0 0
  %1947 = vmatprep.subr.bf16.mxu0 0
  %1948 = vmatpush1.bf16.msra.mxu0 0
  %1949 = vmatprep.subr.bf16.mxu0 0
  %1950 = vmatpush1.bf16.msra.mxu0 0
  %1951 = vmatprep.subr.bf16.mxu0 0
  %1952 = vmatpush1.bf16.msra.mxu0 0
  %1953 = vmatprep.subr.bf16.mxu0 0
  %1954 = vmatpush1.bf16.msra.mxu0 0
  %1955 = vmatprep.subr.bf16.mxu0 0
  %1956 = vmatpush1.bf16.msra.mxu0 0
  %1957 = vmatprep.mubr.bf16.mxu0 0
  %1958 = vmatmul.mubr.bf16.gmra.mrb[0].mxu0 %v1024
  %v1959 = vpop.f32.mrb[0].mxu0
  %v1960 = vadd.f32 %v1597, %v1959
  %v1961 = vpop.f32.mrb[0].mxu0
  %v1962 = vadd.f32 %v1599, %v1961
  %v1963 = vpop.f32.mrb[0].mxu0
  %v1964 = vpop.f32.mrb[0].mxu0
  %1965 = vdwg.mxu0
  %v1974 = vunpack.c.l.b16 %v515
  %v1975 = vunpack.c.l.b16 %v519
  %v1976 = vunpack.c.l.b16 %v523
  %v1977 = vunpack.c.l.b16 %v527
  %v1978 = vunpack.c.l.b16 %v531
  %v1979 = vunpack.c.l.b16 %v535
  %v1980 = vunpack.c.l.b16 %v539
  %v1981 = vunpack.c.l.b16 %v543
  %v1982 = vpack.c.b16 %v1974, %v1974
  %v1983 = vpack.c.b16 %v1975, %v1975
  %v1984 = vpack.c.b16 %v1976, %v1976
  %v1985 = vpack.c.b16 %v1977, %v1977
  %v1986 = vpack.c.b16 %v1978, %v1978
  %v1987 = vpack.c.b16 %v1979, %v1979
  %v1988 = vpack.c.b16 %v1980, %v1980
  %v1989 = vpack.c.b16 %v1981, %v1981
  %v1990 = vunpack.c.l.b16 %v1982
  %v1991 = vunpack.c.l.b16 %v1983
  %v1992 = vunpack.c.l.b16 %v1984
  %v1993 = vunpack.c.l.b16 %v1985
  %v1994 = vunpack.c.l.b16 %v1986
  %v1995 = vunpack.c.l.b16 %v1987
  %v1996 = vunpack.c.l.b16 %v1988
  %v1997 = vunpack.c.l.b16 %v1989
  %v1998 = vrot.slane %v1991, 7
  %v1999 = vsel %vm578, %v1998, %v1990
  %v2000 = vrot.slane %v1992, 6
  %v2001 = vsel %vm581, %v2000, %v1999
  %v2002 = vrot.slane %v1993, 5
  %v2003 = vsel %vm584, %v2002, %v2001
  %v2004 = vrot.slane %v1994, 4
  %v2005 = vsel %vm587, %v2004, %v2003
  %v2006 = vrot.slane %v1995, 3
  %v2007 = vsel %vm590, %v2006, %v2005
  %v2008 = vrot.slane %v1996, 2
  %v2009 = vsel %vm593, %v2008, %v2007
  %v2010 = vrot.slane %v1997, 1
  %v2011 = vsel %vm596, %v2010, %v2009
  %v2012 = vpack.c.b16 %v2011, %v2011
  %v2014 = vrot.slane %v1990, 1
  %v2015 = vsel %vm578, %v1991, %v2014
  %v2016 = vrot.slane %v1992, 7
  %v2017 = vsel %vm581, %v2016, %v2015
  %v2018 = vrot.slane %v1993, 6
  %v2019 = vsel %vm584, %v2018, %v2017
  %v2020 = vrot.slane %v1994, 5
  %v2021 = vsel %vm587, %v2020, %v2019
  %v2022 = vrot.slane %v1995, 4
  %v2023 = vsel %vm590, %v2022, %v2021
  %v2024 = vrot.slane %v1996, 3
  %v2025 = vsel %vm593, %v2024, %v2023
  %v2026 = vrot.slane %v1997, 2
  %v2027 = vsel %vm596, %v2026, %v2025
  %v2028 = vpack.c.b16 %v2027, %v2027
  %v2038 = vunpack.c.l.b16 %v516
  %v2039 = vunpack.c.l.b16 %v520
  %v2040 = vunpack.c.l.b16 %v524
  %v2041 = vunpack.c.l.b16 %v528
  %v2042 = vunpack.c.l.b16 %v532
  %v2043 = vunpack.c.l.b16 %v536
  %v2044 = vunpack.c.l.b16 %v540
  %v2045 = vunpack.c.l.b16 %v544
  %v2046 = vpack.c.b16 %v2038, %v2038
  %v2047 = vpack.c.b16 %v2039, %v2039
  %v2048 = vpack.c.b16 %v2040, %v2040
  %v2049 = vpack.c.b16 %v2041, %v2041
  %v2050 = vpack.c.b16 %v2042, %v2042
  %v2051 = vpack.c.b16 %v2043, %v2043
  %v2052 = vpack.c.b16 %v2044, %v2044
  %v2053 = vpack.c.b16 %v2045, %v2045
  %v2054 = vunpack.c.l.b16 %v2046
  %v2055 = vunpack.c.l.b16 %v2047
  %v2056 = vunpack.c.l.b16 %v2048
  %v2057 = vunpack.c.l.b16 %v2049
  %v2058 = vunpack.c.l.b16 %v2050
  %v2059 = vunpack.c.l.b16 %v2051
  %v2060 = vunpack.c.l.b16 %v2052
  %v2061 = vunpack.c.l.b16 %v2053
  %v2062 = vrot.slane %v2055, 7
  %v2063 = vsel %vm578, %v2062, %v2054
  %v2064 = vrot.slane %v2056, 6
  %v2065 = vsel %vm581, %v2064, %v2063
  %v2066 = vrot.slane %v2057, 5
  %v2067 = vsel %vm584, %v2066, %v2065
  %v2068 = vrot.slane %v2058, 4
  %v2069 = vsel %vm587, %v2068, %v2067
  %v2070 = vrot.slane %v2059, 3
  %v2071 = vsel %vm590, %v2070, %v2069
  %v2072 = vrot.slane %v2060, 2
  %v2073 = vsel %vm593, %v2072, %v2071
  %v2074 = vrot.slane %v2061, 1
  %v2075 = vsel %vm596, %v2074, %v2073
  %v2076 = vpack.c.b16 %v2075, %v2075
  %v2078 = vrot.slane %v2054, 1
  %v2079 = vsel %vm578, %v2055, %v2078
  %v2080 = vrot.slane %v2056, 7
  %v2081 = vsel %vm581, %v2080, %v2079
  %v2082 = vrot.slane %v2057, 6
  %v2083 = vsel %vm584, %v2082, %v2081
  %v2084 = vrot.slane %v2058, 5
  %v2085 = vsel %vm587, %v2084, %v2083
  %v2086 = vrot.slane %v2059, 4
  %v2087 = vsel %vm590, %v2086, %v2085
  %v2088 = vrot.slane %v2060, 3
  %v2089 = vsel %vm593, %v2088, %v2087
  %v2090 = vrot.slane %v2061, 2
  %v2091 = vsel %vm596, %v2090, %v2089
  %v2092 = vpack.c.b16 %v2091, %v2091
  %2094 = vmatprep.subr.bf16.mxu0 0
  %2095 = vmatpush1.bf16.msra.mxu0 %v879
  %2096 = vmatprep.subr.bf16.mxu0 0
  %2097 = vmatpush1.bf16.msra.mxu0 %v880
  %2098 = vmatprep.subr.bf16.mxu0 0
  %2099 = vmatpush1.bf16.msra.mxu0 %v881
  %2100 = vmatprep.subr.bf16.mxu0 0
  %2101 = vmatpush1.bf16.msra.mxu0 %v882
  %2102 = vmatprep.subr.bf16.mxu0 0
  %2103 = vmatpush1.bf16.msra.mxu0 %v883
  %2104 = vmatprep.subr.bf16.mxu0 0
  %2105 = vmatpush1.bf16.msra.mxu0 %v884
  %2106 = vmatprep.subr.bf16.mxu0 0
  %2107 = vmatpush1.bf16.msra.mxu0 %v885
  %2108 = vmatprep.subr.bf16.mxu0 0
  %2109 = vmatpush1.bf16.msra.mxu0 %v886
  %2110 = vmatprep.subr.bf16.mxu0 0
  %2111 = vmatpush1.bf16.msra.mxu0 %v887
  %2112 = vmatprep.subr.bf16.mxu0 0
  %2113 = vmatpush1.bf16.msra.mxu0 %v888
  %2114 = vmatprep.subr.bf16.mxu0 0
  %2115 = vmatpush1.bf16.msra.mxu0 %v889
  %2116 = vmatprep.subr.bf16.mxu0 0
  %2117 = vmatpush1.bf16.msra.mxu0 %v890
  %2118 = vmatprep.subr.bf16.mxu0 0
  %2119 = vmatpush1.bf16.msra.mxu0 %v891
  %2120 = vmatprep.subr.bf16.mxu0 0
  %2121 = vmatpush1.bf16.msra.mxu0 %v892
  %2122 = vmatprep.subr.bf16.mxu0 0
  %2123 = vmatpush1.bf16.msra.mxu0 %v893
  %2124 = vmatprep.subr.bf16.mxu0 0
  %2125 = vmatpush1.bf16.msra.mxu0 %v894
  %2126 = vmatprep.mubr.bf16.mxu0 %v2028
  %2127 = vmatmul.mubr.bf16.gmra.mrb[0].mxu0 %v2012
  %v2128 = vpop.f32.mrb[0].mxu0
  %v2129 = vadd.f32 %v749, %v2128
  %v2130 = vpop.f32.mrb[0].mxu0
  %v2131 = vpop.f32.mrb[0].mxu0
  %v2132 = vpop.f32.mrb[0].mxu0
  %2133 = vdwg.mxu0
  %2134 = vmatprep.subr.bf16.mxu0 0
  %2135 = vmatpush1.bf16.msra.mxu0 %v895
  %2136 = vmatprep.subr.bf16.mxu0 0
  %2137 = vmatpush1.bf16.msra.mxu0 %v896
  %2138 = vmatprep.subr.bf16.mxu0 0
  %2139 = vmatpush1.bf16.msra.mxu0 %v897
  %2140 = vmatprep.subr.bf16.mxu0 0
  %2141 = vmatpush1.bf16.msra.mxu0 %v898
  %2142 = vmatprep.subr.bf16.mxu0 0
  %2143 = vmatpush1.bf16.msra.mxu0 %v899
  %2144 = vmatprep.subr.bf16.mxu0 0
  %2145 = vmatpush1.bf16.msra.mxu0 %v900
  %2146 = vmatprep.subr.bf16.mxu0 0
  %2147 = vmatpush1.bf16.msra.mxu0 %v901
  %2148 = vmatprep.subr.bf16.mxu0 0
  %2149 = vmatpush1.bf16.msra.mxu0 %v902
  %2150 = vmatprep.subr.bf16.mxu0 0
  %2151 = vmatpush1.bf16.msra.mxu0 %v903
  %2152 = vmatprep.subr.bf16.mxu0 0
  %2153 = vmatpush1.bf16.msra.mxu0 %v904
  %2154 = vmatprep.subr.bf16.mxu0 0
  %2155 = vmatpush1.bf16.msra.mxu0 %v905
  %2156 = vmatprep.subr.bf16.mxu0 0
  %2157 = vmatpush1.bf16.msra.mxu0 %v906
  %2158 = vmatprep.subr.bf16.mxu0 0
  %2159 = vmatpush1.bf16.msra.mxu0 %v907
  %2160 = vmatprep.subr.bf16.mxu0 0
  %2161 = vmatpush1.bf16.msra.mxu0 %v908
  %2162 = vmatprep.subr.bf16.mxu0 0
  %2163 = vmatpush1.bf16.msra.mxu0 %v909
  %2164 = vmatprep.subr.bf16.mxu0 0
  %2165 = vmatpush1.bf16.msra.mxu0 %v910
  %2166 = vmatprep.mubr.bf16.mxu0 %v2092
  %2167 = vmatmul.mubr.bf16.gmra.mrb[0].mxu0 %v2076
  %v2168 = vpop.f32.mrb[0].mxu0
  %v2169 = vadd.f32 %v2129, %v2168
  %v2170 = vpop.f32.mrb[0].mxu0
  %v2171 = vpop.f32.mrb[0].mxu0
  %v2172 = vpop.f32.mrb[0].mxu0
  %2173 = vdwg.mxu0
  %v2174 = vmax.f32 %v2169, 0.0
  %v2175 = vpack.c.bf16 %v2174, %v2174
  %s2176 = scalar_lea.vmem %s3, 768
  %v2177 = vld [vmem:[%s2176] sm:$0xff]
  %v2178 = vld [vmem:[%s2176 + $0x8] sm:$0xff]
  %v2179 = vld [vmem:[%s2176 + $0x10] sm:$0xff]
  %v2180 = vld [vmem:[%s2176 + $0x18] sm:$0xff]
  %v2181 = vld [vmem:[%s2176 + $0x20] sm:$0xff]
  %v2182 = vld [vmem:[%s2176 + $0x28] sm:$0xff]
  %v2183 = vld [vmem:[%s2176 + $0x30] sm:$0xff]
  %v2184 = vld [vmem:[%s2176 + $0x38] sm:$0xff]
  %v2185 = vld [vmem:[%s2176 + $0x40] sm:$0xff]
  %v2186 = vld [vmem:[%s2176 + $0x48] sm:$0xff]
  %v2187 = vld [vmem:[%s2176 + $0x50] sm:$0xff]
  %v2188 = vld [vmem:[%s2176 + $0x58] sm:$0xff]
  %v2189 = vld [vmem:[%s2176 + $0x60] sm:$0xff]
  %v2190 = vld [vmem:[%s2176 + $0x68] sm:$0xff]
  %v2191 = vld [vmem:[%s2176 + $0x70] sm:$0xff]
  %v2192 = vld [vmem:[%s2176 + $0x78] sm:$0xff]
  %v2193 = vld [vmem:[%s2176 + $0x80] sm:$0xff]
  %v2194 = vld [vmem:[%s2176 + $0x88] sm:$0xff]
  %v2195 = vld [vmem:[%s2176 + $0x90] sm:$0xff]
  %v2196 = vld [vmem:[%s2176 + $0x98] sm:$0xff]
  %v2197 = vld [vmem:[%s2176 + $0xa0] sm:$0xff]
  %v2198 = vld [vmem:[%s2176 + $0xa8] sm:$0xff]
  %v2199 = vld [vmem:[%s2176 + $0xb0] sm:$0xff]
  %v2200 = vld [vmem:[%s2176 + $0xb8] sm:$0xff]
  %v2201 = vld [vmem:[%s2176 + $0xc0] sm:$0xff]
  %v2202 = vld [vmem:[%s2176 + $0xc8] sm:$0xff]
  %v2203 = vld [vmem:[%s2176 + $0xd0] sm:$0xff]
  %v2204 = vld [vmem:[%s2176 + $0xd8] sm:$0xff]
  %v2205 = vld [vmem:[%s2176 + $0xe0] sm:$0xff]
  %v2206 = vld [vmem:[%s2176 + $0xe8] sm:$0xff]
  %v2207 = vld [vmem:[%s2176 + $0xf0] sm:$0xff]
  %v2208 = vld [vmem:[%s2176 + $0xf8] sm:$0xff]
  %v2209 = vld [vmem:[%s2176 + $0x100] sm:$0xff]
  %v2210 = vld [vmem:[%s2176 + $0x108] sm:$0xff]
  %v2211 = vld [vmem:[%s2176 + $0x110] sm:$0xff]
  %v2212 = vld [vmem:[%s2176 + $0x118] sm:$0xff]
  %v2213 = vld [vmem:[%s2176 + $0x120] sm:$0xff]
  %v2214 = vld [vmem:[%s2176 + $0x128] sm:$0xff]
  %v2215 = vld [vmem:[%s2176 + $0x130] sm:$0xff]
  %v2216 = vld [vmem:[%s2176 + $0x138] sm:$0xff]
  %v2217 = vld [vmem:[%s2176 + $0x140] sm:$0xff]
  %v2218 = vld [vmem:[%s2176 + $0x148] sm:$0xff]
  %v2219 = vld [vmem:[%s2176 + $0x150] sm:$0xff]
  %v2220 = vld [vmem:[%s2176 + $0x158] sm:$0xff]
  %v2221 = vld [vmem:[%s2176 + $0x160] sm:$0xff]
  %v2222 = vld [vmem:[%s2176 + $0x168] sm:$0xff]
  %v2223 = vld [vmem:[%s2176 + $0x170] sm:$0xff]
  %v2224 = vld [vmem:[%s2176 + $0x178] sm:$0xff]
  %v2273 = vunpack.c.l.b16 %v2177
  %v2274 = vunpack.c.h.b16 %v2177
  %v2275 = vunpack.c.l.b16 %v2178
  %v2276 = vunpack.c.h.b16 %v2178
  %v2277 = vunpack.c.l.b16 %v2179
  %v2278 = vunpack.c.h.b16 %v2179
  %v2279 = vunpack.c.l.b16 %v2180
  %v2280 = vunpack.c.h.b16 %v2180
  %v2281 = vunpack.c.l.b16 %v2181
  %v2282 = vunpack.c.h.b16 %v2181
  %v2283 = vunpack.c.l.b16 %v2182
  %v2284 = vunpack.c.h.b16 %v2182
  %v2285 = vunpack.c.l.b16 %v2183
  %v2286 = vunpack.c.h.b16 %v2183
  %v2287 = vunpack.c.l.b16 %v2184
  %v2288 = vunpack.c.h.b16 %v2184
  %v2289 = vunpack.c.l.b16 %v2185
  %v2290 = vunpack.c.h.b16 %v2185
  %v2291 = vunpack.c.l.b16 %v2186
  %v2292 = vunpack.c.h.b16 %v2186
  %v2293 = vunpack.c.l.b16 %v2187
  %v2294 = vunpack.c.h.b16 %v2187
  %v2295 = vunpack.c.l.b16 %v2188
  %v2296 = vunpack.c.h.b16 %v2188
  %v2297 = vunpack.c.l.b16 %v2189
  %v2298 = vunpack.c.h.b16 %v2189
  %v2299 = vunpack.c.l.b16 %v2190
  %v2300 = vunpack.c.h.b16 %v2190
  %v2301 = vunpack.c.l.b16 %v2191
  %v2302 = vunpack.c.h.b16 %v2191
  %v2303 = vunpack.c.l.b16 %v2192
  %v2304 = vunpack.c.h.b16 %v2192
  %v2305 = vunpack.c.l.b16 %v2193
  %v2306 = vunpack.c.h.b16 %v2193
  %v2307 = vunpack.c.l.b16 %v2194
  %v2308 = vunpack.c.h.b16 %v2194
  %v2309 = vunpack.c.l.b16 %v2195
  %v2310 = vunpack.c.h.b16 %v2195
  %v2311 = vunpack.c.l.b16 %v2196
  %v2312 = vunpack.c.h.b16 %v2196
  %v2313 = vunpack.c.l.b16 %v2197
  %v2314 = vunpack.c.h.b16 %v2197
  %v2315 = vunpack.c.l.b16 %v2198
  %v2316 = vunpack.c.h.b16 %v2198
  %v2317 = vunpack.c.l.b16 %v2199
  %v2318 = vunpack.c.h.b16 %v2199
  %v2319 = vunpack.c.l.b16 %v2200
  %v2320 = vunpack.c.h.b16 %v2200
  %v2321 = vunpack.c.l.b16 %v2201
  %v2322 = vunpack.c.h.b16 %v2201
  %v2323 = vunpack.c.l.b16 %v2202
  %v2324 = vunpack.c.h.b16 %v2202
  %v2325 = vunpack.c.l.b16 %v2203
  %v2326 = vunpack.c.h.b16 %v2203
  %v2327 = vunpack.c.l.b16 %v2204
  %v2328 = vunpack.c.h.b16 %v2204
  %v2329 = vunpack.c.l.b16 %v2205
  %v2330 = vunpack.c.h.b16 %v2205
  %v2331 = vunpack.c.l.b16 %v2206
  %v2332 = vunpack.c.h.b16 %v2206
  %v2333 = vunpack.c.l.b16 %v2207
  %v2334 = vunpack.c.h.b16 %v2207
  %v2335 = vunpack.c.l.b16 %v2208
  %v2336 = vunpack.c.h.b16 %v2208
  %v2337 = vunpack.c.l.b16 %v2209
  %v2338 = vunpack.c.h.b16 %v2209
  %v2339 = vunpack.c.l.b16 %v2210
  %v2340 = vunpack.c.h.b16 %v2210
  %v2341 = vunpack.c.l.b16 %v2211
  %v2342 = vunpack.c.h.b16 %v2211
  %v2343 = vunpack.c.l.b16 %v2212
  %v2344 = vunpack.c.h.b16 %v2212
  %v2345 = vunpack.c.l.b16 %v2213
  %v2346 = vunpack.c.h.b16 %v2213
  %v2347 = vunpack.c.l.b16 %v2214
  %v2348 = vunpack.c.h.b16 %v2214
  %v2349 = vunpack.c.l.b16 %v2215
  %v2350 = vunpack.c.h.b16 %v2215
  %v2351 = vunpack.c.l.b16 %v2216
  %v2352 = vunpack.c.h.b16 %v2216
  %v2353 = vunpack.c.l.b16 %v2217
  %v2354 = vunpack.c.h.b16 %v2217
  %v2355 = vunpack.c.l.b16 %v2218
  %v2356 = vunpack.c.h.b16 %v2218
  %v2357 = vunpack.c.l.b16 %v2219
  %v2358 = vunpack.c.h.b16 %v2219
  %v2359 = vunpack.c.l.b16 %v2220
  %v2360 = vunpack.c.h.b16 %v2220
  %v2361 = vunpack.c.l.b16 %v2221
  %v2362 = vunpack.c.h.b16 %v2221
  %v2363 = vunpack.c.l.b16 %v2222
  %v2364 = vunpack.c.h.b16 %v2222
  %v2365 = vunpack.c.l.b16 %v2223
  %v2366 = vunpack.c.h.b16 %v2223
  %v2367 = vunpack.c.l.b16 %v2224
  %v2368 = vunpack.c.h.b16 %v2224
  %v2369 = vpack.c.b16 %v2279, %v2273
  %v2370 = vpack.c.b16 %v2280, %v2274
  %v2371 = vpack.c.b16 %v2281, %v2275
  %v2372 = vpack.c.b16 %v2282, %v2276
  %v2373 = vpack.c.b16 %v2283, %v2277
  %v2374 = vpack.c.b16 %v2284, %v2278
  %v2375 = vpack.c.b16 %v2291, %v2285
  %v2376 = vpack.c.b16 %v2292, %v2286
  %v2377 = vpack.c.b16 %v2293, %v2287
  %v2378 = vpack.c.b16 %v2294, %v2288
  %v2379 = vpack.c.b16 %v2295, %v2289
  %v2380 = vpack.c.b16 %v2296, %v2290
  %v2381 = vpack.c.b16 %v2303, %v2297
  %v2382 = vpack.c.b16 %v2304, %v2298
  %v2383 = vpack.c.b16 %v2305, %v2299
  %v2384 = vpack.c.b16 %v2306, %v2300
  %v2385 = vpack.c.b16 %v2307, %v2301
  %v2386 = vpack.c.b16 %v2308, %v2302
  %v2387 = vpack.c.b16 %v2315, %v2309
  %v2388 = vpack.c.b16 %v2316, %v2310
  %v2389 = vpack.c.b16 %v2317, %v2311
  %v2390 = vpack.c.b16 %v2318, %v2312
  %v2391 = vpack.c.b16 %v2319, %v2313
  %v2392 = vpack.c.b16 %v2320, %v2314
  %v2393 = vpack.c.b16 %v2327, %v2321
  %v2394 = vpack.c.b16 %v2328, %v2322
  %v2395 = vpack.c.b16 %v2329, %v2323
  %v2396 = vpack.c.b16 %v2330, %v2324
  %v2397 = vpack.c.b16 %v2331, %v2325
  %v2398 = vpack.c.b16 %v2332, %v2326
  %v2399 = vpack.c.b16 %v2339, %v2333
  %v2400 = vpack.c.b16 %v2340, %v2334
  %v2401 = vpack.c.b16 %v2341, %v2335
  %v2402 = vpack.c.b16 %v2342, %v2336
  %v2403 = vpack.c.b16 %v2343, %v2337
  %v2404 = vpack.c.b16 %v2344, %v2338
  %v2405 = vpack.c.b16 %v2351, %v2345
  %v2406 = vpack.c.b16 %v2352, %v2346
  %v2407 = vpack.c.b16 %v2353, %v2347
  %v2408 = vpack.c.b16 %v2354, %v2348
  %v2409 = vpack.c.b16 %v2355, %v2349
  %v2410 = vpack.c.b16 %v2356, %v2350
  %v2411 = vpack.c.b16 %v2363, %v2357
  %v2412 = vpack.c.b16 %v2364, %v2358
  %v2413 = vpack.c.b16 %v2365, %v2359
  %v2414 = vpack.c.b16 %v2366, %v2360
  %v2415 = vpack.c.b16 %v2367, %v2361
  %v2416 = vpack.c.b16 %v2368, %v2362
  %2465 = vmatprep.subr.bf16.mxu0 %v2370
  %2466 = vmatpush1.bf16.msra.mxu0 %v2369
  %2467 = vmatprep.subr.bf16.mxu0 %v2376
  %2468 = vmatpush1.bf16.msra.mxu0 %v2375
  %2469 = vmatprep.subr.bf16.mxu0 %v2382
  %2470 = vmatpush1.bf16.msra.mxu0 %v2381
  %2471 = vmatprep.subr.bf16.mxu0 %v2388
  %2472 = vmatpush1.bf16.msra.mxu0 %v2387
  %2473 = vmatprep.subr.bf16.mxu0 %v2394
  %2474 = vmatpush1.bf16.msra.mxu0 %v2393
  %2475 = vmatprep.subr.bf16.mxu0 %v2400
  %2476 = vmatpush1.bf16.msra.mxu0 %v2399
  %2477 = vmatprep.subr.bf16.mxu0 %v2406
  %2478 = vmatpush1.bf16.msra.mxu0 %v2405
  %2479 = vmatprep.subr.bf16.mxu0 %v2412
  %2480 = vmatpush1.bf16.msra.mxu0 %v2411
  %2481 = vmatprep.subr.bf16.mxu0 0
  %2482 = vmatpush1.bf16.msra.mxu0 0
  %2483 = vmatprep.subr.bf16.mxu0 0
  %2484 = vmatpush1.bf16.msra.mxu0 0
  %2485 = vmatprep.subr.bf16.mxu0 0
  %2486 = vmatpush1.bf16.msra.mxu0 0
  %2487 = vmatprep.subr.bf16.mxu0 0
  %2488 = vmatpush1.bf16.msra.mxu0 0
  %2489 = vmatprep.subr.bf16.mxu0 0
  %2490 = vmatpush1.bf16.msra.mxu0 0
  %2491 = vmatprep.subr.bf16.mxu0 0
  %2492 = vmatpush1.bf16.msra.mxu0 0
  %2493 = vmatprep.subr.bf16.mxu0 0
  %2494 = vmatpush1.bf16.msra.mxu0 0
  %2495 = vmatprep.subr.bf16.mxu0 0
  %2496 = vmatpush1.bf16.msra.mxu0 0
  %2497 = vmatprep.mubr.bf16.mxu0 0
  %2498 = vmatmul.mubr.bf16.gmra.mrb[0].mxu0 %v2175
  %v2499 = vpop.f32.mrb[0].mxu0
  %v2500 = vadd.f32 0.0, %v2499
  %v2501 = vpop.f32.mrb[0].mxu0
  %v2502 = vadd.f32 0.0, %v2501
  %v2503 = vpop.f32.mrb[0].mxu0
  %v2504 = vpop.f32.mrb[0].mxu0
  %2505 = vdwg.mxu0
  %2506 = vmatprep.subr.bf16.mxu0 %v2372
  %2507 = vmatpush1.bf16.msra.mxu0 %v2371
  %2508 = vmatprep.subr.bf16.mxu0 %v2378
  %2509 = vmatpush1.bf16.msra.mxu0 %v2377
  %2510 = vmatprep.subr.bf16.mxu0 %v2384
  %2511 = vmatpush1.bf16.msra.mxu0 %v2383
  %2512 = vmatprep.subr.bf16.mxu0 %v2390
  %2513 = vmatpush1.bf16.msra.mxu0 %v2389
  %2514 = vmatprep.subr.bf16.mxu0 %v2396
  %2515 = vmatpush1.bf16.msra.mxu0 %v2395
  %2516 = vmatprep.subr.bf16.mxu0 %v2402
  %2517 = vmatpush1.bf16.msra.mxu0 %v2401
  %2518 = vmatprep.subr.bf16.mxu0 %v2408
  %2519 = vmatpush1.bf16.msra.mxu0 %v2407
  %2520 = vmatprep.subr.bf16.mxu0 %v2414
  %2521 = vmatpush1.bf16.msra.mxu0 %v2413
  %2522 = vmatprep.subr.bf16.mxu0 0
  %2523 = vmatpush1.bf16.msra.mxu0 0
  %2524 = vmatprep.subr.bf16.mxu0 0
  %2525 = vmatpush1.bf16.msra.mxu0 0
  %2526 = vmatprep.subr.bf16.mxu0 0
  %2527 = vmatpush1.bf16.msra.mxu0 0
  %2528 = vmatprep.subr.bf16.mxu0 0
  %2529 = vmatpush1.bf16.msra.mxu0 0
  %2530 = vmatprep.subr.bf16.mxu0 0
  %2531 = vmatpush1.bf16.msra.mxu0 0
  %2532 = vmatprep.subr.bf16.mxu0 0
  %2533 = vmatpush1.bf16.msra.mxu0 0
  %2534 = vmatprep.subr.bf16.mxu0 0
  %2535 = vmatpush1.bf16.msra.mxu0 0
  %2536 = vmatprep.subr.bf16.mxu0 0
  %2537 = vmatpush1.bf16.msra.mxu0 0
  %2538 = vmatprep.mubr.bf16.mxu0 0
  %2539 = vmatmul.mubr.bf16.gmra.mrb[0].mxu0 %v2175
  %v2540 = vpop.f32.mrb[0].mxu0
  %v2541 = vadd.f32 0.0, %v2540
  %v2542 = vpop.f32.mrb[0].mxu0
  %v2543 = vadd.f32 0.0, %v2542
  %v2544 = vpop.f32.mrb[0].mxu0
  %v2545 = vpop.f32.mrb[0].mxu0
  %2546 = vdwg.mxu0
  %2547 = vmatprep.subr.bf16.mxu0 %v2374
  %2548 = vmatpush1.bf16.msra.mxu0 %v2373
  %2549 = vmatprep.subr.bf16.mxu0 %v2380
  %2550 = vmatpush1.bf16.msra.mxu0 %v2379
  %2551 = vmatprep.subr.bf16.mxu0 %v2386
  %2552 = vmatpush1.bf16.msra.mxu0 %v2385
  %2553 = vmatprep.subr.bf16.mxu0 %v2392
  %2554 = vmatpush1.bf16.msra.mxu0 %v2391
  %2555 = vmatprep.subr.bf16.mxu0 %v2398
  %2556 = vmatpush1.bf16.msra.mxu0 %v2397
  %2557 = vmatprep.subr.bf16.mxu0 %v2404
  %2558 = vmatpush1.bf16.msra.mxu0 %v2403
  %2559 = vmatprep.subr.bf16.mxu0 %v2410
  %2560 = vmatpush1.bf16.msra.mxu0 %v2409
  %2561 = vmatprep.subr.bf16.mxu0 %v2416
  %2562 = vmatpush1.bf16.msra.mxu0 %v2415
  %2563 = vmatprep.subr.bf16.mxu0 0
  %2564 = vmatpush1.bf16.msra.mxu0 0
  %2565 = vmatprep.subr.bf16.mxu0 0
  %2566 = vmatpush1.bf16.msra.mxu0 0
  %2567 = vmatprep.subr.bf16.mxu0 0
  %2568 = vmatpush1.bf16.msra.mxu0 0
  %2569 = vmatprep.subr.bf16.mxu0 0
  %2570 = vmatpush1.bf16.msra.mxu0 0
  %2571 = vmatprep.subr.bf16.mxu0 0
  %2572 = vmatpush1.bf16.msra.mxu0 0
  %2573 = vmatprep.subr.bf16.mxu0 0
  %2574 = vmatpush1.bf16.msra.mxu0 0
  %2575 = vmatprep.subr.bf16.mxu0 0
  %2576 = vmatpush1.bf16.msra.mxu0 0
  %2577 = vmatprep.subr.bf16.mxu0 0
  %2578 = vmatpush1.bf16.msra.mxu0 0
  %2579 = vmatprep.mubr.bf16.mxu0 0
  %2580 = vmatmul.mubr.bf16.gmra.mrb[0].mxu0 %v2175
  %v2581 = vpop.f32.mrb[0].mxu0
  %v2582 = vadd.f32 0.0, %v2581
  %v2583 = vpop.f32.mrb[0].mxu0
  %v2584 = vadd.f32 0.0, %v2583
  %v2585 = vpop.f32.mrb[0].mxu0
  %v2586 = vpop.f32.mrb[0].mxu0
  %2587 = vdwg.mxu0
  %v2588 = vadd.f32 %v1878, %v2500
  %v2589 = vadd.f32 %v1880, %v2502
  %v2590 = vadd.f32 %v1919, %v2541
  %v2591 = vadd.f32 %v1921, %v2543
  %v2592 = vadd.f32 %v1960, %v2582
  %v2593 = vadd.f32 %v1962, %v2584
  %v2594 = vsel %vm584, %v1998, %v1990
  %v2595 = vsel %vm587, %v2000, %v2594
  %v2596 = vsel %vm590, %v2002, %v2595
  %v2597 = vsel %vm593, %v2004, %v2596
  %v2598 = vsel %vm596, %v2006, %v2597
  %v2599 = vsel %vm578, %v2010, %v2008
  %v2600 = vpack.c.b16 %v2599, %v2598
  %v2601 = vsel %vm584, %v1991, %v2014
  %v2602 = vsel %vm587, %v2016, %v2601
  %v2603 = vsel %vm590, %v2018, %v2602
  %v2604 = vsel %vm593, %v2020, %v2603
  %v2605 = vsel %vm596, %v2022, %v2604
  %v2606 = vsel %vm578, %v2026, %v2024
  %v2607 = vpack.c.b16 %v2606, %v2605
  %v2608 = vsel %vm584, %v2062, %v2054
  %v2609 = vsel %vm587, %v2064, %v2608
  %v2610 = vsel %vm590, %v2066, %v2609
  %v2611 = vsel %vm593, %v2068, %v2610
  %v2612 = vsel %vm596, %v2070, %v2611
  %v2613 = vsel %vm578, %v2074, %v2072
  %v2614 = vpack.c.b16 %v2613, %v2612
  %v2615 = vsel %vm584, %v2055, %v2078
  %v2616 = vsel %vm587, %v2080, %v2615
  %v2617 = vsel %vm590, %v2082, %v2616
  %v2618 = vsel %vm593, %v2084, %v2617
  %v2619 = vsel %vm596, %v2086, %v2618
  %v2620 = vsel %vm578, %v2090, %v2088
  %v2621 = vpack.c.b16 %v2620, %v2619
  %v2622 = vrot.slane %v2600, 1
  %v2623 = vrot.slane %v2607, 1
  %v2624 = vrot.slane %v2614, 1
  %v2625 = vrot.slane %v2621, 1
  %2630 = vmatprep.subr.bf16.mxu0 0
  %2631 = vmatpush1.bf16.msra.mxu0 %v879
  %2632 = vmatprep.subr.bf16.mxu0 0
  %2633 = vmatpush1.bf16.msra.mxu0 %v880
  %2634 = vmatprep.subr.bf16.mxu0 0
  %2635 = vmatpush1.bf16.msra.mxu0 %v881
  %2636 = vmatprep.subr.bf16.mxu0 0
  %2637 = vmatpush1.bf16.msra.mxu0 %v882
  %2638 = vmatprep.subr.bf16.mxu0 0
  %2639 = vmatpush1.bf16.msra.mxu0 %v883
  %2640 = vmatprep.subr.bf16.mxu0 0
  %2641 = vmatpush1.bf16.msra.mxu0 %v884
  %2642 = vmatprep.subr.bf16.mxu0 0
  %2643 = vmatpush1.bf16.msra.mxu0 %v885
  %2644 = vmatprep.subr.bf16.mxu0 0
  %2645 = vmatpush1.bf16.msra.mxu0 %v886
  %2646 = vmatprep.subr.bf16.mxu0 0
  %2647 = vmatpush1.bf16.msra.mxu0 %v887
  %2648 = vmatprep.subr.bf16.mxu0 0
  %2649 = vmatpush1.bf16.msra.mxu0 %v888
  %2650 = vmatprep.subr.bf16.mxu0 0
  %2651 = vmatpush1.bf16.msra.mxu0 %v889
  %2652 = vmatprep.subr.bf16.mxu0 0
  %2653 = vmatpush1.bf16.msra.mxu0 %v890
  %2654 = vmatprep.subr.bf16.mxu0 0
  %2655 = vmatpush1.bf16.msra.mxu0 %v891
  %2656 = vmatprep.subr.bf16.mxu0 0
  %2657 = vmatpush1.bf16.msra.mxu0 %v892
  %2658 = vmatprep.subr.bf16.mxu0 0
  %2659 = vmatpush1.bf16.msra.mxu0 %v893
  %2660 = vmatprep.subr.bf16.mxu0 0
  %2661 = vmatpush1.bf16.msra.mxu0 %v894
  %2662 = vmatprep.mubr.bf16.mxu0 %v2623
  %2663 = vmatmul.mubr.bf16.gmra.mrb[0].mxu0 %v2622
  %v2664 = vpop.f32.mrb[0].mxu0
  %v2665 = vadd.f32 %v749, %v2664
  %v2666 = vpop.f32.mrb[0].mxu0
  %v2667 = vpop.f32.mrb[0].mxu0
  %v2668 = vpop.f32.mrb[0].mxu0
  %2669 = vdwg.mxu0
  %2670 = vmatprep.subr.bf16.mxu0 0
  %2671 = vmatpush1.bf16.msra.mxu0 %v895
  %2672 = vmatprep.subr.bf16.mxu0 0
  %2673 = vmatpush1.bf16.msra.mxu0 %v896
  %2674 = vmatprep.subr.bf16.mxu0 0
  %2675 = vmatpush1.bf16.msra.mxu0 %v897
  %2676 = vmatprep.subr.bf16.mxu0 0
  %2677 = vmatpush1.bf16.msra.mxu0 %v898
  %2678 = vmatprep.subr.bf16.mxu0 0
  %2679 = vmatpush1.bf16.msra.mxu0 %v899
  %2680 = vmatprep.subr.bf16.mxu0 0
  %2681 = vmatpush1.bf16.msra.mxu0 %v900
  %2682 = vmatprep.subr.bf16.mxu0 0
  %2683 = vmatpush1.bf16.msra.mxu0 %v901
  %2684 = vmatprep.subr.bf16.mxu0 0
  %2685 = vmatpush1.bf16.msra.mxu0 %v902
  %2686 = vmatprep.subr.bf16.mxu0 0
  %2687 = vmatpush1.bf16.msra.mxu0 %v903
  %2688 = vmatprep.subr.bf16.mxu0 0
  %2689 = vmatpush1.bf16.msra.mxu0 %v904
  %2690 = vmatprep.subr.bf16.mxu0 0
  %2691 = vmatpush1.bf16.msra.mxu0 %v905
  %2692 = vmatprep.subr.bf16.mxu0 0
  %2693 = vmatpush1.bf16.msra.mxu0 %v906
  %2694 = vmatprep.subr.bf16.mxu0 0
  %2695 = vmatpush1.bf16.msra.mxu0 %v907
  %2696 = vmatprep.subr.bf16.mxu0 0
  %2697 = vmatpush1.bf16.msra.mxu0 %v908
  %2698 = vmatprep.subr.bf16.mxu0 0
  %2699 = vmatpush1.bf16.msra.mxu0 %v909
  %2700 = vmatprep.subr.bf16.mxu0 0
  %2701 = vmatpush1.bf16.msra.mxu0 %v910
  %2702 = vmatprep.mubr.bf16.mxu0 %v2625
  %2703 = vmatmul.mubr.bf16.gmra.mrb[0].mxu0 %v2624
  %v2704 = vpop.f32.mrb[0].mxu0
  %v2705 = vadd.f32 %v2665, %v2704
  %v2706 = vpop.f32.mrb[0].mxu0
  %v2707 = vpop.f32.mrb[0].mxu0
  %v2708 = vpop.f32.mrb[0].mxu0
  %2709 = vdwg.mxu0
  %v2710 = vmax.f32 %v2705, 0.0
  %v2711 = vpack.c.bf16 %v2710, %v2710
  %s2712 = scalar_lea.vmem %s3, 1152
  %v2713 = vld [vmem:[%s2712] sm:$0xff]
  %v2714 = vld [vmem:[%s2712 + $0x8] sm:$0xff]
  %v2715 = vld [vmem:[%s2712 + $0x10] sm:$0xff]
  %v2716 = vld [vmem:[%s2712 + $0x18] sm:$0xff]
  %v2717 = vld [vmem:[%s2712 + $0x20] sm:$0xff]
  %v2718 = vld [vmem:[%s2712 + $0x28] sm:$0xff]
  %v2719 = vld [vmem:[%s2712 + $0x30] sm:$0xff]
  %v2720 = vld [vmem:[%s2712 + $0x38] sm:$0xff]
  %v2721 = vld [vmem:[%s2712 + $0x40] sm:$0xff]
  %v2722 = vld [vmem:[%s2712 + $0x48] sm:$0xff]
  %v2723 = vld [vmem:[%s2712 + $0x50] sm:$0xff]
  %v2724 = vld [vmem:[%s2712 + $0x58] sm:$0xff]
  %v2725 = vld [vmem:[%s2712 + $0x60] sm:$0xff]
  %v2726 = vld [vmem:[%s2712 + $0x68] sm:$0xff]
  %v2727 = vld [vmem:[%s2712 + $0x70] sm:$0xff]
  %v2728 = vld [vmem:[%s2712 + $0x78] sm:$0xff]
  %v2729 = vld [vmem:[%s2712 + $0x80] sm:$0xff]
  %v2730 = vld [vmem:[%s2712 + $0x88] sm:$0xff]
  %v2731 = vld [vmem:[%s2712 + $0x90] sm:$0xff]
  %v2732 = vld [vmem:[%s2712 + $0x98] sm:$0xff]
  %v2733 = vld [vmem:[%s2712 + $0xa0] sm:$0xff]
  %v2734 = vld [vmem:[%s2712 + $0xa8] sm:$0xff]
  %v2735 = vld [vmem:[%s2712 + $0xb0] sm:$0xff]
  %v2736 = vld [vmem:[%s2712 + $0xb8] sm:$0xff]
  %v2737 = vld [vmem:[%s2712 + $0xc0] sm:$0xff]
  %v2738 = vld [vmem:[%s2712 + $0xc8] sm:$0xff]
  %v2739 = vld [vmem:[%s2712 + $0xd0] sm:$0xff]
  %v2740 = vld [vmem:[%s2712 + $0xd8] sm:$0xff]
  %v2741 = vld [vmem:[%s2712 + $0xe0] sm:$0xff]
  %v2742 = vld [vmem:[%s2712 + $0xe8] sm:$0xff]
  %v2743 = vld [vmem:[%s2712 + $0xf0] sm:$0xff]
  %v2744 = vld [vmem:[%s2712 + $0xf8] sm:$0xff]
  %v2745 = vld [vmem:[%s2712 + $0x100] sm:$0xff]
  %v2746 = vld [vmem:[%s2712 + $0x108] sm:$0xff]
  %v2747 = vld [vmem:[%s2712 + $0x110] sm:$0xff]
  %v2748 = vld [vmem:[%s2712 + $0x118] sm:$0xff]
  %v2749 = vld [vmem:[%s2712 + $0x120] sm:$0xff]
  %v2750 = vld [vmem:[%s2712 + $0x128] sm:$0xff]
  %v2751 = vld [vmem:[%s2712 + $0x130] sm:$0xff]
  %v2752 = vld [vmem:[%s2712 + $0x138] sm:$0xff]
  %v2753 = vld [vmem:[%s2712 + $0x140] sm:$0xff]
  %v2754 = vld [vmem:[%s2712 + $0x148] sm:$0xff]
  %v2755 = vld [vmem:[%s2712 + $0x150] sm:$0xff]
  %v2756 = vld [vmem:[%s2712 + $0x158] sm:$0xff]
  %v2757 = vld [vmem:[%s2712 + $0x160] sm:$0xff]
  %v2758 = vld [vmem:[%s2712 + $0x168] sm:$0xff]
  %v2759 = vld [vmem:[%s2712 + $0x170] sm:$0xff]
  %v2760 = vld [vmem:[%s2712 + $0x178] sm:$0xff]
  %v2809 = vunpack.c.l.b16 %v2713
  %v2810 = vunpack.c.h.b16 %v2713
  %v2811 = vunpack.c.l.b16 %v2714
  %v2812 = vunpack.c.h.b16 %v2714
  %v2813 = vunpack.c.l.b16 %v2715
  %v2814 = vunpack.c.h.b16 %v2715
  %v2815 = vunpack.c.l.b16 %v2716
  %v2816 = vunpack.c.h.b16 %v2716
  %v2817 = vunpack.c.l.b16 %v2717
  %v2818 = vunpack.c.h.b16 %v2717
  %v2819 = vunpack.c.l.b16 %v2718
  %v2820 = vunpack.c.h.b16 %v2718
  %v2821 = vunpack.c.l.b16 %v2719
  %v2822 = vunpack.c.h.b16 %v2719
  %v2823 = vunpack.c.l.b16 %v2720
  %v2824 = vunpack.c.h.b16 %v2720
  %v2825 = vunpack.c.l.b16 %v2721
  %v2826 = vunpack.c.h.b16 %v2721
  %v2827 = vunpack.c.l.b16 %v2722
  %v2828 = vunpack.c.h.b16 %v2722
  %v2829 = vunpack.c.l.b16 %v2723
  %v2830 = vunpack.c.h.b16 %v2723
  %v2831 = vunpack.c.l.b16 %v2724
  %v2832 = vunpack.c.h.b16 %v2724
  %v2833 = vunpack.c.l.b16 %v2725
  %v2834 = vunpack.c.h.b16 %v2725
  %v2835 = vunpack.c.l.b16 %v2726
  %v2836 = vunpack.c.h.b16 %v2726
  %v2837 = vunpack.c.l.b16 %v2727
  %v2838 = vunpack.c.h.b16 %v2727
  %v2839 = vunpack.c.l.b16 %v2728
  %v2840 = vunpack.c.h.b16 %v2728
  %v2841 = vunpack.c.l.b16 %v2729
  %v2842 = vunpack.c.h.b16 %v2729
  %v2843 = vunpack.c.l.b16 %v2730
  %v2844 = vunpack.c.h.b16 %v2730
  %v2845 = vunpack.c.l.b16 %v2731
  %v2846 = vunpack.c.h.b16 %v2731
  %v2847 = vunpack.c.l.b16 %v2732
  %v2848 = vunpack.c.h.b16 %v2732
  %v2849 = vunpack.c.l.b16 %v2733
  %v2850 = vunpack.c.h.b16 %v2733
  %v2851 = vunpack.c.l.b16 %v2734
  %v2852 = vunpack.c.h.b16 %v2734
  %v2853 = vunpack.c.l.b16 %v2735
  %v2854 = vunpack.c.h.b16 %v2735
  %v2855 = vunpack.c.l.b16 %v2736
  %v2856 = vunpack.c.h.b16 %v2736
  %v2857 = vunpack.c.l.b16 %v2737
  %v2858 = vunpack.c.h.b16 %v2737
  %v2859 = vunpack.c.l.b16 %v2738
  %v2860 = vunpack.c.h.b16 %v2738
  %v2861 = vunpack.c.l.b16 %v2739
  %v2862 = vunpack.c.h.b16 %v2739
  %v2863 = vunpack.c.l.b16 %v2740
  %v2864 = vunpack.c.h.b16 %v2740
  %v2865 = vunpack.c.l.b16 %v2741
  %v2866 = vunpack.c.h.b16 %v2741
  %v2867 = vunpack.c.l.b16 %v2742
  %v2868 = vunpack.c.h.b16 %v2742
  %v2869 = vunpack.c.l.b16 %v2743
  %v2870 = vunpack.c.h.b16 %v2743
  %v2871 = vunpack.c.l.b16 %v2744
  %v2872 = vunpack.c.h.b16 %v2744
  %v2873 = vunpack.c.l.b16 %v2745
  %v2874 = vunpack.c.h.b16 %v2745
  %v2875 = vunpack.c.l.b16 %v2746
  %v2876 = vunpack.c.h.b16 %v2746
  %v2877 = vunpack.c.l.b16 %v2747
  %v2878 = vunpack.c.h.b16 %v2747
  %v2879 = vunpack.c.l.b16 %v2748
  %v2880 = vunpack.c.h.b16 %v2748
  %v2881 = vunpack.c.l.b16 %v2749
  %v2882 = vunpack.c.h.b16 %v2749
  %v2883 = vunpack.c.l.b16 %v2750
  %v2884 = vunpack.c.h.b16 %v2750
  %v2885 = vunpack.c.l.b16 %v2751
  %v2886 = vunpack.c.h.b16 %v2751
  %v2887 = vunpack.c.l.b16 %v2752
  %v2888 = vunpack.c.h.b16 %v2752
  %v2889 = vunpack.c.l.b16 %v2753
  %v2890 = vunpack.c.h.b16 %v2753
  %v2891 = vunpack.c.l.b16 %v2754
  %v2892 = vunpack.c.h.b16 %v2754
  %v2893 = vunpack.c.l.b16 %v2755
  %v2894 = vunpack.c.h.b16 %v2755
  %v2895 = vunpack.c.l.b16 %v2756
  %v2896 = vunpack.c.h.b16 %v2756
  %v2897 = vunpack.c.l.b16 %v2757
  %v2898 = vunpack.c.h.b16 %v2757
  %v2899 = vunpack.c.l.b16 %v2758
  %v2900 = vunpack.c.h.b16 %v2758
  %v2901 = vunpack.c.l.b16 %v2759
  %v2902 = vunpack.c.h.b16 %v2759
  %v2903 = vunpack.c.l.b16 %v2760
  %v2904 = vunpack.c.h.b16 %v2760
  %v2905 = vpack.c.b16 %v2815, %v2809
  %v2906 = vpack.c.b16 %v2816, %v2810
  %v2907 = vpack.c.b16 %v2817, %v2811
  %v2908 = vpack.c.b16 %v2818, %v2812
  %v2909 = vpack.c.b16 %v2819, %v2813
  %v2910 = vpack.c.b16 %v2820, %v2814
  %v2911 = vpack.c.b16 %v2827, %v2821
  %v2912 = vpack.c.b16 %v2828, %v2822
  %v2913 = vpack.c.b16 %v2829, %v2823
  %v2914 = vpack.c.b16 %v2830, %v2824
  %v2915 = vpack.c.b16 %v2831, %v2825
  %v2916 = vpack.c.b16 %v2832, %v2826
  %v2917 = vpack.c.b16 %v2839, %v2833
  %v2918 = vpack.c.b16 %v2840, %v2834
  %v2919 = vpack.c.b16 %v2841, %v2835
  %v2920 = vpack.c.b16 %v2842, %v2836
  %v2921 = vpack.c.b16 %v2843, %v2837
  %v2922 = vpack.c.b16 %v2844, %v2838
  %v2923 = vpack.c.b16 %v2851, %v2845
  %v2924 = vpack.c.b16 %v2852, %v2846
  %v2925 = vpack.c.b16 %v2853, %v2847
  %v2926 = vpack.c.b16 %v2854, %v2848
  %v2927 = vpack.c.b16 %v2855, %v2849
  %v2928 = vpack.c.b16 %v2856, %v2850
  %v2929 = vpack.c.b16 %v2863, %v2857
  %v2930 = vpack.c.b16 %v2864, %v2858
  %v2931 = vpack.c.b16 %v2865, %v2859
  %v2932 = vpack.c.b16 %v2866, %v2860
  %v2933 = vpack.c.b16 %v2867, %v2861
  %v2934 = vpack.c.b16 %v2868, %v2862
  %v2935 = vpack.c.b16 %v2875, %v2869
  %v2936 = vpack.c.b16 %v2876, %v2870
  %v2937 = vpack.c.b16 %v2877, %v2871
  %v2938 = vpack.c.b16 %v2878, %v2872
  %v2939 = vpack.c.b16 %v2879, %v2873
  %v2940 = vpack.c.b16 %v2880, %v2874
  %v2941 = vpack.c.b16 %v2887, %v2881
  %v2942 = vpack.c.b16 %v2888, %v2882
  %v2943 = vpack.c.b16 %v2889, %v2883
  %v2944 = vpack.c.b16 %v2890, %v2884
  %v2945 = vpack.c.b16 %v2891, %v2885
  %v2946 = vpack.c.b16 %v2892, %v2886
  %v2947 = vpack.c.b16 %v2899, %v2893
  %v2948 = vpack.c.b16 %v2900, %v2894
  %v2949 = vpack.c.b16 %v2901, %v2895
  %v2950 = vpack.c.b16 %v2902, %v2896
  %v2951 = vpack.c.b16 %v2903, %v2897
  %v2952 = vpack.c.b16 %v2904, %v2898
  %3001 = vmatprep.subr.bf16.mxu0 %v2906
  %3002 = vmatpush1.bf16.msra.mxu0 %v2905
  %3003 = vmatprep.subr.bf16.mxu0 %v2912
  %3004 = vmatpush1.bf16.msra.mxu0 %v2911
  %3005 = vmatprep.subr.bf16.mxu0 %v2918
  %3006 = vmatpush1.bf16.msra.mxu0 %v2917
  %3007 = vmatprep.subr.bf16.mxu0 %v2924
  %3008 = vmatpush1.bf16.msra.mxu0 %v2923
  %3009 = vmatprep.subr.bf16.mxu0 %v2930
  %3010 = vmatpush1.bf16.msra.mxu0 %v2929
  %3011 = vmatprep.subr.bf16.mxu0 %v2936
  %3012 = vmatpush1.bf16.msra.mxu0 %v2935
  %3013 = vmatprep.subr.bf16.mxu0 %v2942
  %3014 = vmatpush1.bf16.msra.mxu0 %v2941
  %3015 = vmatprep.subr.bf16.mxu0 %v2948
  %3016 = vmatpush1.bf16.msra.mxu0 %v2947
  %3017 = vmatprep.subr.bf16.mxu0 0
  %3018 = vmatpush1.bf16.msra.mxu0 0
  %3019 = vmatprep.subr.bf16.mxu0 0
  %3020 = vmatpush1.bf16.msra.mxu0 0
  %3021 = vmatprep.subr.bf16.mxu0 0
  %3022 = vmatpush1.bf16.msra.mxu0 0
  %3023 = vmatprep.subr.bf16.mxu0 0
  %3024 = vmatpush1.bf16.msra.mxu0 0
  %3025 = vmatprep.subr.bf16.mxu0 0
  %3026 = vmatpush1.bf16.msra.mxu0 0
  %3027 = vmatprep.subr.bf16.mxu0 0
  %3028 = vmatpush1.bf16.msra.mxu0 0
  %3029 = vmatprep.subr.bf16.mxu0 0
  %3030 = vmatpush1.bf16.msra.mxu0 0
  %3031 = vmatprep.subr.bf16.mxu0 0
  %3032 = vmatpush1.bf16.msra.mxu0 0
  %3033 = vmatprep.mubr.bf16.mxu0 0
  %3034 = vmatmul.mubr.bf16.gmra.mrb[0].mxu0 %v2711
  %v3035 = vpop.f32.mrb[0].mxu0
  %v3036 = vadd.f32 0.0, %v3035
  %v3037 = vpop.f32.mrb[0].mxu0
  %v3038 = vadd.f32 0.0, %v3037
  %v3039 = vpop.f32.mrb[0].mxu0
  %v3040 = vpop.f32.mrb[0].mxu0
  %3041 = vdwg.mxu0
  %3042 = vmatprep.subr.bf16.mxu0 %v2908
  %3043 = vmatpush1.bf16.msra.mxu0 %v2907
  %3044 = vmatprep.subr.bf16.mxu0 %v2914
  %3045 = vmatpush1.bf16.msra.mxu0 %v2913
  %3046 = vmatprep.subr.bf16.mxu0 %v2920
  %3047 = vmatpush1.bf16.msra.mxu0 %v2919
  %3048 = vmatprep.subr.bf16.mxu0 %v2926
  %3049 = vmatpush1.bf16.msra.mxu0 %v2925
  %3050 = vmatprep.subr.bf16.mxu0 %v2932
  %3051 = vmatpush1.bf16.msra.mxu0 %v2931
  %3052 = vmatprep.subr.bf16.mxu0 %v2938
  %3053 = vmatpush1.bf16.msra.mxu0 %v2937
  %3054 = vmatprep.subr.bf16.mxu0 %v2944
  %3055 = vmatpush1.bf16.msra.mxu0 %v2943
  %3056 = vmatprep.subr.bf16.mxu0 %v2950
  %3057 = vmatpush1.bf16.msra.mxu0 %v2949
  %3058 = vmatprep.subr.bf16.mxu0 0
  %3059 = vmatpush1.bf16.msra.mxu0 0
  %3060 = vmatprep.subr.bf16.mxu0 0
  %3061 = vmatpush1.bf16.msra.mxu0 0
  %3062 = vmatprep.subr.bf16.mxu0 0
  %3063 = vmatpush1.bf16.msra.mxu0 0
  %3064 = vmatprep.subr.bf16.mxu0 0
  %3065 = vmatpush1.bf16.msra.mxu0 0
  %3066 = vmatprep.subr.bf16.mxu0 0
  %3067 = vmatpush1.bf16.msra.mxu0 0
  %3068 = vmatprep.subr.bf16.mxu0 0
  %3069 = vmatpush1.bf16.msra.mxu0 0
  %3070 = vmatprep.subr.bf16.mxu0 0
  %3071 = vmatpush1.bf16.msra.mxu0 0
  %3072 = vmatprep.subr.bf16.mxu0 0
  %3073 = vmatpush1.bf16.msra.mxu0 0
  %3074 = vmatprep.mubr.bf16.mxu0 0
  %3075 = vmatmul.mubr.bf16.gmra.mrb[0].mxu0 %v2711
  %v3076 = vpop.f32.mrb[0].mxu0
  %v3077 = vadd.f32 0.0, %v3076
  %v3078 = vpop.f32.mrb[0].mxu0
  %v3079 = vadd.f32 0.0, %v3078
  %v3080 = vpop.f32.mrb[0].mxu0
  %v3081 = vpop.f32.mrb[0].mxu0
  %3082 = vdwg.mxu0
  %3083 = vmatprep.subr.bf16.mxu0 %v2910
  %3084 = vmatpush1.bf16.msra.mxu0 %v2909
  %3085 = vmatprep.subr.bf16.mxu0 %v2916
  %3086 = vmatpush1.bf16.msra.mxu0 %v2915
  %3087 = vmatprep.subr.bf16.mxu0 %v2922
  %3088 = vmatpush1.bf16.msra.mxu0 %v2921
  %3089 = vmatprep.subr.bf16.mxu0 %v2928
  %3090 = vmatpush1.bf16.msra.mxu0 %v2927
  %3091 = vmatprep.subr.bf16.mxu0 %v2934
  %3092 = vmatpush1.bf16.msra.mxu0 %v2933
  %3093 = vmatprep.subr.bf16.mxu0 %v2940
  %3094 = vmatpush1.bf16.msra.mxu0 %v2939
  %3095 = vmatprep.subr.bf16.mxu0 %v2946
  %3096 = vmatpush1.bf16.msra.mxu0 %v2945
  %3097 = vmatprep.subr.bf16.mxu0 %v2952
  %3098 = vmatpush1.bf16.msra.mxu0 %v2951
  %3099 = vmatprep.subr.bf16.mxu0 0
  %3100 = vmatpush1.bf16.msra.mxu0 0
  %3101 = vmatprep.subr.bf16.mxu0 0
  %3102 = vmatpush1.bf16.msra.mxu0 0
  %3103 = vmatprep.subr.bf16.mxu0 0
  %3104 = vmatpush1.bf16.msra.mxu0 0
  %3105 = vmatprep.subr.bf16.mxu0 0
  %3106 = vmatpush1.bf16.msra.mxu0 0
  %3107 = vmatprep.subr.bf16.mxu0 0
  %3108 = vmatpush1.bf16.msra.mxu0 0
  %3109 = vmatprep.subr.bf16.mxu0 0
  %3110 = vmatpush1.bf16.msra.mxu0 0
  %3111 = vmatprep.subr.bf16.mxu0 0
  %3112 = vmatpush1.bf16.msra.mxu0 0
  %3113 = vmatprep.subr.bf16.mxu0 0
  %3114 = vmatpush1.bf16.msra.mxu0 0
  %3115 = vmatprep.mubr.bf16.mxu0 0
  %3116 = vmatmul.mubr.bf16.gmra.mrb[0].mxu0 %v2711
  %v3117 = vpop.f32.mrb[0].mxu0
  %v3118 = vadd.f32 0.0, %v3117
  %v3119 = vpop.f32.mrb[0].mxu0
  %v3120 = vadd.f32 0.0, %v3119
  %v3121 = vpop.f32.mrb[0].mxu0
  %v3122 = vpop.f32.mrb[0].mxu0
  %3123 = vdwg.mxu0
  %v3124 = vadd.f32 %v2588, %v3036
  %v3125 = vadd.f32 %v2589, %v3038
  %v3126 = vadd.f32 %v2590, %v3077
  %v3127 = vadd.f32 %v2591, %v3079
  %v3128 = vadd.f32 %v2592, %v3118
  %v3129 = vadd.f32 %v2593, %v3120
  %v3130 = vld [vmem:[%s4] sm:$0x3f]
  %v3132 = vlaneseq
  %v3133 = vshrl.u32 %v3132, 7
  %v3134 = vsub.s32 0, %v3133
  %v3135 = vrot.slane %v3130, %v3134
  %v3136 = vlaneseq
  %v3137 = vshrl.u32 %v3136, 7
  %v3138 = vsub.s32 1, %v3137
  %v3139 = vrot.slane %v3130, %v3138
  %v3140 = vlaneseq
  %v3141 = vshrl.u32 %v3140, 7
  %v3142 = vsub.s32 2, %v3141
  %v3143 = vrot.slane %v3130, %v3142
  %v3144 = vlaneseq
  %v3145 = vshrl.u32 %v3144, 7
  %v3146 = vsub.s32 3, %v3145
  %v3147 = vrot.slane %v3130, %v3146
  %v3148 = vlaneseq
  %v3149 = vshrl.u32 %v3148, 7
  %v3150 = vsub.s32 4, %v3149
  %v3151 = vrot.slane %v3130, %v3150
  %v3152 = vlaneseq
  %v3153 = vshrl.u32 %v3152, 7
  %v3154 = vsub.s32 5, %v3153
  %v3155 = vrot.slane %v3130, %v3154
  %v3162 = vadd.f32 %v3124, %v3135
  %v3163 = vadd.f32 %v3125, %v3139
  %v3164 = vadd.f32 %v3126, %v3143
  %v3165 = vadd.f32 %v3127, %v3147
  %v3166 = vadd.f32 %v3128, %v3151
  %v3167 = vadd.f32 %v3129, %v3155
  %v3168 = vmax.f32 %v3162, 0.0
  %v3169 = vmax.f32 %v3163, 0.0
  %v3170 = vmax.f32 %v3164, 0.0
  %v3171 = vmax.f32 %v3165, 0.0
  %v3172 = vmax.f32 %v3166, 0.0
  %v3173 = vmax.f32 %v3167, 0.0
  %v3174 = vpack.c.bf16 %v3168, %v3168
  %v3175 = vpack.c.bf16 %v3169, %v3169
  %v3176 = vpack.c.bf16 %v3170, %v3170
  %v3177 = vpack.c.bf16 %v3171, %v3171
  %v3178 = vpack.c.bf16 %v3172, %v3172
  %v3179 = vpack.c.bf16 %v3173, %v3173
  %v3180 = vld [vmem:[%s5] sm:$0xf]
  %v3181 = vld [vmem:[%s5 + $0x4] sm:$0xf]
  %v3182 = vld [vmem:[%s5 + $0x8] sm:$0xf]
  %v3183 = vld [vmem:[%s5 + $0xc] sm:$0xf]
  %v3184 = vld [vmem:[%s5 + $0x10] sm:$0xf]
  %v3185 = vld [vmem:[%s5 + $0x14] sm:$0xf]
  %v3186 = vld [vmem:[%s5 + $0x18] sm:$0xf]
  %v3187 = vld [vmem:[%s5 + $0x1c] sm:$0xf]
  %v3188 = vld [vmem:[%s5 + $0x20] sm:$0xf]
  %v3189 = vld [vmem:[%s5 + $0x24] sm:$0xf]
  %v3190 = vld [vmem:[%s5 + $0x28] sm:$0xf]
  %v3191 = vld [vmem:[%s5 + $0x2c] sm:$0xf]
  %v3192 = vld [vmem:[%s5 + $0x30] sm:$0xf]
  %v3193 = vld [vmem:[%s5 + $0x34] sm:$0xf]
  %v3194 = vld [vmem:[%s5 + $0x38] sm:$0xf]
  %v3195 = vld [vmem:[%s5 + $0x3c] sm:$0xf]
  %v3196 = vld [vmem:[%s5 + $0x40] sm:$0xf]
  %v3197 = vld [vmem:[%s5 + $0x44] sm:$0xf]
  %v3198 = vld [vmem:[%s5 + $0x48] sm:$0xf]
  %v3199 = vld [vmem:[%s5 + $0x4c] sm:$0xf]
  %v3200 = vld [vmem:[%s5 + $0x50] sm:$0xf]
  %v3201 = vld [vmem:[%s5 + $0x54] sm:$0xf]
  %v3202 = vld [vmem:[%s5 + $0x58] sm:$0xf]
  %v3203 = vld [vmem:[%s5 + $0x5c] sm:$0xf]
  %v3204 = vld [vmem:[%s5 + $0x60] sm:$0xf]
  %v3205 = vld [vmem:[%s5 + $0x64] sm:$0xf]
  %v3206 = vld [vmem:[%s5 + $0x68] sm:$0xf]
  %v3207 = vld [vmem:[%s5 + $0x6c] sm:$0xf]
  %v3208 = vld [vmem:[%s5 + $0x70] sm:$0xf]
  %v3209 = vld [vmem:[%s5 + $0x74] sm:$0xf]
  %v3210 = vld [vmem:[%s5 + $0x78] sm:$0xf]
  %v3211 = vld [vmem:[%s5 + $0x7c] sm:$0xf]
  %v3212 = vld [vmem:[%s5 + $0x80] sm:$0xf]
  %v3213 = vld [vmem:[%s5 + $0x84] sm:$0xf]
  %v3214 = vld [vmem:[%s5 + $0x88] sm:$0xf]
  %v3215 = vld [vmem:[%s5 + $0x8c] sm:$0xf]
  %v3216 = vld [vmem:[%s5 + $0x90] sm:$0xf]
  %v3217 = vld [vmem:[%s5 + $0x94] sm:$0xf]
  %v3218 = vld [vmem:[%s5 + $0x98] sm:$0xf]
  %v3219 = vld [vmem:[%s5 + $0x9c] sm:$0xf]
  %v3220 = vld [vmem:[%s5 + $0xa0] sm:$0xf]
  %v3221 = vld [vmem:[%s5 + $0xa4] sm:$0xf]
  %v3222 = vld [vmem:[%s5 + $0xa8] sm:$0xf]
  %v3223 = vld [vmem:[%s5 + $0xac] sm:$0xf]
  %v3224 = vld [vmem:[%s5 + $0xb0] sm:$0xf]
  %v3225 = vld [vmem:[%s5 + $0xb4] sm:$0xf]
  %v3226 = vld [vmem:[%s5 + $0xb8] sm:$0xf]
  %v3227 = vld [vmem:[%s5 + $0xbc] sm:$0xf]
  %v3228 = vld [vmem:[%s5 + $0xc0] sm:$0xf]
  %v3229 = vld [vmem:[%s5 + $0xc4] sm:$0xf]
  %v3230 = vld [vmem:[%s5 + $0xc8] sm:$0xf]
  %v3231 = vld [vmem:[%s5 + $0xcc] sm:$0xf]
  %v3232 = vld [vmem:[%s5 + $0xd0] sm:$0xf]
  %v3233 = vld [vmem:[%s5 + $0xd4] sm:$0xf]
  %v3234 = vld [vmem:[%s5 + $0xd8] sm:$0xf]
  %v3235 = vld [vmem:[%s5 + $0xdc] sm:$0xf]
  %v3236 = vld [vmem:[%s5 + $0xe0] sm:$0xf]
  %v3237 = vld [vmem:[%s5 + $0xe4] sm:$0xf]
  %v3238 = vld [vmem:[%s5 + $0xe8] sm:$0xf]
  %v3239 = vld [vmem:[%s5 + $0xec] sm:$0xf]
  %v3240 = vld [vmem:[%s5 + $0xf0] sm:$0xf]
  %v3241 = vld [vmem:[%s5 + $0xf4] sm:$0xf]
  %v3242 = vld [vmem:[%s5 + $0xf8] sm:$0xf]
  %v3243 = vld [vmem:[%s5 + $0xfc] sm:$0xf]
  %v3244 = vld [vmem:[%s5 + $0x100] sm:$0xf]
  %v3245 = vld [vmem:[%s5 + $0x104] sm:$0xf]
  %v3246 = vld [vmem:[%s5 + $0x108] sm:$0xf]
  %v3247 = vld [vmem:[%s5 + $0x10c] sm:$0xf]
  %v3248 = vld [vmem:[%s5 + $0x110] sm:$0xf]
  %v3249 = vld [vmem:[%s5 + $0x114] sm:$0xf]
  %v3250 = vld [vmem:[%s5 + $0x118] sm:$0xf]
  %v3251 = vld [vmem:[%s5 + $0x11c] sm:$0xf]
  %v3252 = vld [vmem:[%s5 + $0x120] sm:$0xf]
  %v3253 = vld [vmem:[%s5 + $0x124] sm:$0xf]
  %v3254 = vld [vmem:[%s5 + $0x128] sm:$0xf]
  %v3255 = vld [vmem:[%s5 + $0x12c] sm:$0xf]
  %v3256 = vld [vmem:[%s5 + $0x130] sm:$0xf]
  %v3257 = vld [vmem:[%s5 + $0x134] sm:$0xf]
  %v3258 = vld [vmem:[%s5 + $0x138] sm:$0xf]
  %v3259 = vld [vmem:[%s5 + $0x13c] sm:$0xf]
  %v3260 = vld [vmem:[%s5 + $0x140] sm:$0xf]
  %v3261 = vld [vmem:[%s5 + $0x144] sm:$0xf]
  %v3262 = vld [vmem:[%s5 + $0x148] sm:$0xf]
  %v3263 = vld [vmem:[%s5 + $0x14c] sm:$0xf]
  %v3264 = vld [vmem:[%s5 + $0x150] sm:$0xf]
  %v3265 = vld [vmem:[%s5 + $0x154] sm:$0xf]
  %v3266 = vld [vmem:[%s5 + $0x158] sm:$0xf]
  %v3267 = vld [vmem:[%s5 + $0x15c] sm:$0xf]
  %v3268 = vld [vmem:[%s5 + $0x160] sm:$0xf]
  %v3269 = vld [vmem:[%s5 + $0x164] sm:$0xf]
  %v3270 = vld [vmem:[%s5 + $0x168] sm:$0xf]
  %v3271 = vld [vmem:[%s5 + $0x16c] sm:$0xf]
  %v3272 = vld [vmem:[%s5 + $0x170] sm:$0xf]
  %v3273 = vld [vmem:[%s5 + $0x174] sm:$0xf]
  %v3274 = vld [vmem:[%s5 + $0x178] sm:$0xf]
  %v3275 = vld [vmem:[%s5 + $0x17c] sm:$0xf]
  %v3276 = vld [vmem:[%s6] sm:$0x1]
  %v3278 = vlaneseq
  %v3279 = vshrl.u32 %v3278, 7
  %v3280 = vsub.s32 0, %v3279
  %v3281 = vrot.slane %v3276, %v3280
  %v3379 = vunpack.c.l.b16 %v3180
  %v3380 = vunpack.c.l.b16 %v3181
  %v3381 = vunpack.c.l.b16 %v3182
  %v3382 = vunpack.c.l.b16 %v3183
  %v3383 = vunpack.c.l.b16 %v3184
  %v3384 = vunpack.c.l.b16 %v3185
  %v3385 = vunpack.c.l.b16 %v3186
  %v3386 = vunpack.c.l.b16 %v3187
  %v3387 = vunpack.c.l.b16 %v3188
  %v3388 = vunpack.c.l.b16 %v3189
  %v3389 = vunpack.c.l.b16 %v3190
  %v3390 = vunpack.c.l.b16 %v3191
  %v3391 = vunpack.c.l.b16 %v3192
  %v3392 = vunpack.c.l.b16 %v3193
  %v3393 = vunpack.c.l.b16 %v3194
  %v3394 = vunpack.c.l.b16 %v3195
  %v3395 = vunpack.c.l.b16 %v3196
  %v3396 = vunpack.c.l.b16 %v3197
  %v3397 = vunpack.c.l.b16 %v3198
  %v3398 = vunpack.c.l.b16 %v3199
  %v3399 = vunpack.c.l.b16 %v3200
  %v3400 = vunpack.c.l.b16 %v3201
  %v3401 = vunpack.c.l.b16 %v3202
  %v3402 = vunpack.c.l.b16 %v3203
  %v3403 = vunpack.c.l.b16 %v3204
  %v3404 = vunpack.c.l.b16 %v3205
  %v3405 = vunpack.c.l.b16 %v3206
  %v3406 = vunpack.c.l.b16 %v3207
  %v3407 = vunpack.c.l.b16 %v3208
  %v3408 = vunpack.c.l.b16 %v3209
  %v3409 = vunpack.c.l.b16 %v3210
  %v3410 = vunpack.c.l.b16 %v3211
  %v3411 = vunpack.c.l.b16 %v3212
  %v3412 = vunpack.c.l.b16 %v3213
  %v3413 = vunpack.c.l.b16 %v3214
  %v3414 = vunpack.c.l.b16 %v3215
  %v3415 = vunpack.c.l.b16 %v3216
  %v3416 = vunpack.c.l.b16 %v3217
  %v3417 = vunpack.c.l.b16 %v3218
  %v3418 = vunpack.c.l.b16 %v3219
  %v3419 = vunpack.c.l.b16 %v3220
  %v3420 = vunpack.c.l.b16 %v3221
  %v3421 = vunpack.c.l.b16 %v3222
  %v3422 = vunpack.c.l.b16 %v3223
  %v3423 = vunpack.c.l.b16 %v3224
  %v3424 = vunpack.c.l.b16 %v3225
  %v3425 = vunpack.c.l.b16 %v3226
  %v3426 = vunpack.c.l.b16 %v3227
  %v3427 = vunpack.c.l.b16 %v3228
  %v3428 = vunpack.c.l.b16 %v3229
  %v3429 = vunpack.c.l.b16 %v3230
  %v3430 = vunpack.c.l.b16 %v3231
  %v3431 = vunpack.c.l.b16 %v3232
  %v3432 = vunpack.c.l.b16 %v3233
  %v3433 = vunpack.c.l.b16 %v3234
  %v3434 = vunpack.c.l.b16 %v3235
  %v3435 = vunpack.c.l.b16 %v3236
  %v3436 = vunpack.c.l.b16 %v3237
  %v3437 = vunpack.c.l.b16 %v3238
  %v3438 = vunpack.c.l.b16 %v3239
  %v3439 = vunpack.c.l.b16 %v3240
  %v3440 = vunpack.c.l.b16 %v3241
  %v3441 = vunpack.c.l.b16 %v3242
  %v3442 = vunpack.c.l.b16 %v3243
  %v3443 = vunpack.c.l.b16 %v3244
  %v3444 = vunpack.c.l.b16 %v3245
  %v3445 = vunpack.c.l.b16 %v3246
  %v3446 = vunpack.c.l.b16 %v3247
  %v3447 = vunpack.c.l.b16 %v3248
  %v3448 = vunpack.c.l.b16 %v3249
  %v3449 = vunpack.c.l.b16 %v3250
  %v3450 = vunpack.c.l.b16 %v3251
  %v3451 = vunpack.c.l.b16 %v3252
  %v3452 = vunpack.c.l.b16 %v3253
  %v3453 = vunpack.c.l.b16 %v3254
  %v3454 = vunpack.c.l.b16 %v3255
  %v3455 = vunpack.c.l.b16 %v3256
  %v3456 = vunpack.c.l.b16 %v3257
  %v3457 = vunpack.c.l.b16 %v3258
  %v3458 = vunpack.c.l.b16 %v3259
  %v3459 = vunpack.c.l.b16 %v3260
  %v3460 = vunpack.c.l.b16 %v3261
  %v3461 = vunpack.c.l.b16 %v3262
  %v3462 = vunpack.c.l.b16 %v3263
  %v3463 = vunpack.c.l.b16 %v3264
  %v3464 = vunpack.c.l.b16 %v3265
  %v3465 = vunpack.c.l.b16 %v3266
  %v3466 = vunpack.c.l.b16 %v3267
  %v3467 = vunpack.c.l.b16 %v3268
  %v3468 = vunpack.c.l.b16 %v3269
  %v3469 = vunpack.c.l.b16 %v3270
  %v3470 = vunpack.c.l.b16 %v3271
  %v3471 = vunpack.c.l.b16 %v3272
  %v3472 = vunpack.c.l.b16 %v3273
  %v3473 = vunpack.c.l.b16 %v3274
  %v3474 = vunpack.c.l.b16 %v3275
  %v3475 = vpack.c.b16 %v3380, %v3379
  %v3476 = vpack.c.b16 %v3382, %v3381
  %v3477 = vpack.c.b16 %v3384, %v3383
  %v3478 = vpack.c.b16 %v3386, %v3385
  %v3479 = vpack.c.b16 %v3388, %v3387
  %v3480 = vpack.c.b16 %v3390, %v3389
  %v3481 = vpack.c.b16 %v3392, %v3391
  %v3482 = vpack.c.b16 %v3394, %v3393
  %v3483 = vpack.c.b16 %v3396, %v3395
  %v3484 = vpack.c.b16 %v3398, %v3397
  %v3485 = vpack.c.b16 %v3400, %v3399
  %v3486 = vpack.c.b16 %v3402, %v3401
  %v3487 = vpack.c.b16 %v3404, %v3403
  %v3488 = vpack.c.b16 %v3406, %v3405
  %v3489 = vpack.c.b16 %v3408, %v3407
  %v3490 = vpack.c.b16 %v3410, %v3409
  %v3491 = vpack.c.b16 %v3412, %v3411
  %v3492 = vpack.c.b16 %v3414, %v3413
  %v3493 = vpack.c.b16 %v3416, %v3415
  %v3494 = vpack.c.b16 %v3418, %v3417
  %v3495 = vpack.c.b16 %v3420, %v3419
  %v3496 = vpack.c.b16 %v3422, %v3421
  %v3497 = vpack.c.b16 %v3424, %v3423
  %v3498 = vpack.c.b16 %v3426, %v3425
  %v3499 = vpack.c.b16 %v3428, %v3427
  %v3500 = vpack.c.b16 %v3430, %v3429
  %v3501 = vpack.c.b16 %v3432, %v3431
  %v3502 = vpack.c.b16 %v3434, %v3433
  %v3503 = vpack.c.b16 %v3436, %v3435
  %v3504 = vpack.c.b16 %v3438, %v3437
  %v3505 = vpack.c.b16 %v3440, %v3439
  %v3506 = vpack.c.b16 %v3442, %v3441
  %v3507 = vpack.c.b16 %v3444, %v3443
  %v3508 = vpack.c.b16 %v3446, %v3445
  %v3509 = vpack.c.b16 %v3448, %v3447
  %v3510 = vpack.c.b16 %v3450, %v3449
  %v3511 = vpack.c.b16 %v3452, %v3451
  %v3512 = vpack.c.b16 %v3454, %v3453
  %v3513 = vpack.c.b16 %v3456, %v3455
  %v3514 = vpack.c.b16 %v3458, %v3457
  %v3515 = vpack.c.b16 %v3460, %v3459
  %v3516 = vpack.c.b16 %v3462, %v3461
  %v3517 = vpack.c.b16 %v3464, %v3463
  %v3518 = vpack.c.b16 %v3466, %v3465
  %v3519 = vpack.c.b16 %v3468, %v3467
  %v3520 = vpack.c.b16 %v3470, %v3469
  %v3521 = vpack.c.b16 %v3472, %v3471
  %v3522 = vpack.c.b16 %v3474, %v3473
  %3571 = vmatprep.subr.bf16.mxu0 0
  %3572 = vmatpush1.bf16.msra.mxu0 %v3475
  %3573 = vmatprep.subr.bf16.mxu0 0
  %3574 = vmatpush1.bf16.msra.mxu0 %v3476
  %3575 = vmatprep.subr.bf16.mxu0 0
  %3576 = vmatpush1.bf16.msra.mxu0 %v3477
  %3577 = vmatprep.subr.bf16.mxu0 0
  %3578 = vmatpush1.bf16.msra.mxu0 %v3478
  %3579 = vmatprep.subr.bf16.mxu0 0
  %3580 = vmatpush1.bf16.msra.mxu0 %v3479
  %3581 = vmatprep.subr.bf16.mxu0 0
  %3582 = vmatpush1.bf16.msra.mxu0 %v3480
  %3583 = vmatprep.subr.bf16.mxu0 0
  %3584 = vmatpush1.bf16.msra.mxu0 %v3481
  %3585 = vmatprep.subr.bf16.mxu0 0
  %3586 = vmatpush1.bf16.msra.mxu0 %v3482
  %3587 = vmatprep.subr.bf16.mxu0 0
  %3588 = vmatpush1.bf16.msra.mxu0 %v3483
  %3589 = vmatprep.subr.bf16.mxu0 0
  %3590 = vmatpush1.bf16.msra.mxu0 %v3484
  %3591 = vmatprep.subr.bf16.mxu0 0
  %3592 = vmatpush1.bf16.msra.mxu0 %v3485
  %3593 = vmatprep.subr.bf16.mxu0 0
  %3594 = vmatpush1.bf16.msra.mxu0 %v3486
  %3595 = vmatprep.subr.bf16.mxu0 0
  %3596 = vmatpush1.bf16.msra.mxu0 %v3487
  %3597 = vmatprep.subr.bf16.mxu0 0
  %3598 = vmatpush1.bf16.msra.mxu0 %v3488
  %3599 = vmatprep.subr.bf16.mxu0 0
  %3600 = vmatpush1.bf16.msra.mxu0 %v3489
  %3601 = vmatprep.subr.bf16.mxu0 0
  %3602 = vmatpush1.bf16.msra.mxu0 %v3490
  %3603 = vmatprep.mubr.bf16.mxu0 %v3175
  %3604 = vmatmul.mubr.bf16.gmra.mrb[0].mxu0 %v3174
  %v3605 = vpop.f32.mrb[0].mxu0
  %v3606 = vadd.f32 %v3281, %v3605
  %v3607 = vpop.f32.mrb[0].mxu0
  %v3608 = vpop.f32.mrb[0].mxu0
  %v3609 = vpop.f32.mrb[0].mxu0
  %3610 = vdwg.mxu0
  %3611 = vmatprep.subr.bf16.mxu0 0
  %3612 = vmatpush1.bf16.msra.mxu0 %v3491
  %3613 = vmatprep.subr.bf16.mxu0 0
  %3614 = vmatpush1.bf16.msra.mxu0 %v3492
  %3615 = vmatprep.subr.bf16.mxu0 0
  %3616 = vmatpush1.bf16.msra.mxu0 %v3493
  %3617 = vmatprep.subr.bf16.mxu0 0
  %3618 = vmatpush1.bf16.msra.mxu0 %v3494
  %3619 = vmatprep.subr.bf16.mxu0 0
  %3620 = vmatpush1.bf16.msra.mxu0 %v3495
  %3621 = vmatprep.subr.bf16.mxu0 0
  %3622 = vmatpush1.bf16.msra.mxu0 %v3496
  %3623 = vmatprep.subr.bf16.mxu0 0
  %3624 = vmatpush1.bf16.msra.mxu0 %v3497
  %3625 = vmatprep.subr.bf16.mxu0 0
  %3626 = vmatpush1.bf16.msra.mxu0 %v3498
  %3627 = vmatprep.subr.bf16.mxu0 0
  %3628 = vmatpush1.bf16.msra.mxu0 %v3499
  %3629 = vmatprep.subr.bf16.mxu0 0
  %3630 = vmatpush1.bf16.msra.mxu0 %v3500
  %3631 = vmatprep.subr.bf16.mxu0 0
  %3632 = vmatpush1.bf16.msra.mxu0 %v3501
  %3633 = vmatprep.subr.bf16.mxu0 0
  %3634 = vmatpush1.bf16.msra.mxu0 %v3502
  %3635 = vmatprep.subr.bf16.mxu0 0
  %3636 = vmatpush1.bf16.msra.mxu0 %v3503
  %3637 = vmatprep.subr.bf16.mxu0 0
  %3638 = vmatpush1.bf16.msra.mxu0 %v3504
  %3639 = vmatprep.subr.bf16.mxu0 0
  %3640 = vmatpush1.bf16.msra.mxu0 %v3505
  %3641 = vmatprep.subr.bf16.mxu0 0
  %3642 = vmatpush1.bf16.msra.mxu0 %v3506
  %3643 = vmatprep.mubr.bf16.mxu0 %v3177
  %3644 = vmatmul.mubr.bf16.gmra.mrb[0].mxu0 %v3176
  %v3645 = vpop.f32.mrb[0].mxu0
  %v3646 = vadd.f32 %v3606, %v3645
  %v3647 = vpop.f32.mrb[0].mxu0
  %v3648 = vpop.f32.mrb[0].mxu0
  %v3649 = vpop.f32.mrb[0].mxu0
  %3650 = vdwg.mxu0
  %3651 = vmatprep.subr.bf16.mxu0 0
  %3652 = vmatpush1.bf16.msra.mxu0 %v3507
  %3653 = vmatprep.subr.bf16.mxu0 0
  %3654 = vmatpush1.bf16.msra.mxu0 %v3508
  %3655 = vmatprep.subr.bf16.mxu0 0
  %3656 = vmatpush1.bf16.msra.mxu0 %v3509
  %3657 = vmatprep.subr.bf16.mxu0 0
  %3658 = vmatpush1.bf16.msra.mxu0 %v3510
  %3659 = vmatprep.subr.bf16.mxu0 0
  %3660 = vmatpush1.bf16.msra.mxu0 %v3511
  %3661 = vmatprep.subr.bf16.mxu0 0
  %3662 = vmatpush1.bf16.msra.mxu0 %v3512
  %3663 = vmatprep.subr.bf16.mxu0 0
  %3664 = vmatpush1.bf16.msra.mxu0 %v3513
  %3665 = vmatprep.subr.bf16.mxu0 0
  %3666 = vmatpush1.bf16.msra.mxu0 %v3514
  %3667 = vmatprep.subr.bf16.mxu0 0
  %3668 = vmatpush1.bf16.msra.mxu0 %v3515
  %3669 = vmatprep.subr.bf16.mxu0 0
  %3670 = vmatpush1.bf16.msra.mxu0 %v3516
  %3671 = vmatprep.subr.bf16.mxu0 0
  %3672 = vmatpush1.bf16.msra.mxu0 %v3517
  %3673 = vmatprep.subr.bf16.mxu0 0
  %3674 = vmatpush1.bf16.msra.mxu0 %v3518
  %3675 = vmatprep.subr.bf16.mxu0 0
  %3676 = vmatpush1.bf16.msra.mxu0 %v3519
  %3677 = vmatprep.subr.bf16.mxu0 0
  %3678 = vmatpush1.bf16.msra.mxu0 %v3520
  %3679 = vmatprep.subr.bf16.mxu0 0
  %3680 = vmatpush1.bf16.msra.mxu0 %v3521
  %3681 = vmatprep.subr.bf16.mxu0 0
  %3682 = vmatpush1.bf16.msra.mxu0 %v3522
  %3683 = vmatprep.mubr.bf16.mxu0 %v3179
  %3684 = vmatmul.mubr.bf16.gmra.mrb[0].mxu0 %v3178
  %v3685 = vpop.f32.mrb[0].mxu0
  %v3686 = vadd.f32 %v3646, %v3685
  %v3687 = vpop.f32.mrb[0].mxu0
  %v3688 = vpop.f32.mrb[0].mxu0
  %v3689 = vpop.f32.mrb[0].mxu0
  %3690 = vdwg.mxu0
  %v3691 = vmax.f32 %v3686, 0.0
  %v3692 = vpack.c.bf16 %v3691, %v3691
  %v3693 = vld [vmem:[%s7] sm:$0xf]
  %v3694 = vld [vmem:[%s7 + $0x4] sm:$0xf]
  %v3695 = vld [vmem:[%s7 + $0x8] sm:$0xf]
  %v3696 = vld [vmem:[%s7 + $0xc] sm:$0xf]
  %v3697 = vld [vmem:[%s8] sm:$0x1]
  %v3699 = vlaneseq
  %v3700 = vshrl.u32 %v3699, 7
  %v3701 = vsub.s32 0, %v3700
  %v3702 = vrot.slane %v3697, %v3701
  %v3708 = vunpack.c.l.b16 %v3693
  %v3709 = vunpack.c.l.b16 %v3694
  %v3710 = vunpack.c.l.b16 %v3695
  %v3711 = vunpack.c.l.b16 %v3696
  %v3712 = vpack.c.b16 %v3709, %v3708
  %v3713 = vpack.c.b16 %v3711, %v3710
  %vm3716 = vcmask 261120
  %v3718 = vsel %vm3716, %v3692, 0
  %3720 = vmatprep.subr.bf16.mxu0 0
  %3721 = vmatpush1.bf16.msra.mxu0 %v3712
  %3722 = vmatprep.subr.bf16.mxu0 0
  %3723 = vmatpush1.bf16.msra.mxu0 %v3713
  %3724 = vmatprep.subr.bf16.mxu0 0
  %3725 = vmatpush1.bf16.msra.mxu0 0
  %3726 = vmatprep.subr.bf16.mxu0 0
  %3727 = vmatpush1.bf16.msra.mxu0 0
  %3728 = vmatprep.subr.bf16.mxu0 0
  %3729 = vmatpush1.bf16.msra.mxu0 0
  %3730 = vmatprep.subr.bf16.mxu0 0
  %3731 = vmatpush1.bf16.msra.mxu0 0
  %3732 = vmatprep.subr.bf16.mxu0 0
  %3733 = vmatpush1.bf16.msra.mxu0 0
  %3734 = vmatprep.subr.bf16.mxu0 0
  %3735 = vmatpush1.bf16.msra.mxu0 0
  %3736 = vmatprep.subr.bf16.mxu0 0
  %3737 = vmatpush1.bf16.msra.mxu0 0
  %3738 = vmatprep.subr.bf16.mxu0 0
  %3739 = vmatpush1.bf16.msra.mxu0 0
  %3740 = vmatprep.subr.bf16.mxu0 0
  %3741 = vmatpush1.bf16.msra.mxu0 0
  %3742 = vmatprep.subr.bf16.mxu0 0
  %3743 = vmatpush1.bf16.msra.mxu0 0
  %3744 = vmatprep.subr.bf16.mxu0 0
  %3745 = vmatpush1.bf16.msra.mxu0 0
  %3746 = vmatprep.subr.bf16.mxu0 0
  %3747 = vmatpush1.bf16.msra.mxu0 0
  %3748 = vmatprep.subr.bf16.mxu0 0
  %3749 = vmatpush1.bf16.msra.mxu0 0
  %3750 = vmatprep.subr.bf16.mxu0 0
  %3751 = vmatpush1.bf16.msra.mxu0 0
  %3752 = vmatprep.mubr.bf16.mxu0 0
  %3753 = vmatmul.mubr.bf16.gmra.mrb[0].mxu0 %v3718
  %v3754 = vpop.f32.mrb[0].mxu0
  %v3755 = vadd.f32 %v3702, %v3754
  %v3756 = vpop.f32.mrb[0].mxu0
  %v3757 = vpop.f32.mrb[0].mxu0
  %v3758 = vpop.f32.mrb[0].mxu0
  %3759 = vdwg.mxu0
  %3760 = vmax.xlane.f32.xlu0 %v3755
  %v3761 = vpop.xlane.xlu0 %3760
  %v3762 = vsub.f32 %v3755, %v3761
  %v3763 = vmul.f32 %v3762, 1.442695
  %v3764 = vpow.pop %v3763
  %3765 = vadd.xlane.f32.xlu0 %v3764
  %v3766 = vpop.xlane.xlu0 %3765
  %v3767 = vrcp.pop %v3766
  %v3768 = vmul.f32 %v3764, %v3767
  %3769 = vst [vmem:[%s9] sm:$0xff] %v3768
  // Predicated region
  $region38: #{actor_forward.5} parent=0 // pred_check
    _
  $region39: #{actor_forward.5} parent=0 // pred_check_branch
    %3771 = sbr.rel (0) target = $region41
  $region40: #{actor_forward.5} parent=0 // pred_region
    _
  $region41: #{actor_forward.5} parent=0 // pred_fallthru
    _
  // Predicated region
  $region42: #{actor_forward.5} parent=0 // pred_check
    _
  $region43: #{actor_forward.5} parent=0 // pred_check_branch
    %3773 = sbr.rel (0) target = $region45
  $region44: #{actor_forward.5} parent=0 // pred_region
    _
  $region45: #{actor_forward.5} parent=0 // pred_fallthru
    _

</llo_original>
